<compile_context>
chip_gen: v5e
topology: v5e:2x2
jax: 0.10.0
libtpu: 0.0.40
codegen_flags: <defaults>
</compile_context>

<pallas_src>
import functools

import jax
import jax.numpy as jnp
import numpy as np
from jax import lax
from jax.experimental import pallas as pl
from jax.experimental.pallas import tpu as pltpu


def _round_up(x, m):
    return (x + m - 1) // m * m


def _vmem_limit_bytes():
    # Generation-aware VMEM budget: ~3/4 of the physical per-core VMEM,
    # clamped to a sane range (raises the old fixed 32 MB cap on v5e/v6e,
    # stays inside 64 MiB on v7x).
    try:
        cap = int(pltpu.get_tpu_info().vmem_capacity_bytes)
    except Exception:  # pragma: no cover - conservative fallback
        cap = 64 * 1024 * 1024
    return int(max(32 * 1024 * 1024, min(cap * 3 // 4, 100 * 1024 * 1024)))


def _pick_tile_h(H, W, tile_h=None):
    """Pick an H-tile size that divides H (amortizes per-step + DMA overhead)."""
    if tile_h is not None and 0 < tile_h <= H and H % tile_h == 0:
        return tile_h
    # Aim for a matmul M of a few thousand rows without blowing VMEM on wide
    # images (xcol temporaries scale with TH * W).
    target = max(8, min(64, 8192 // max(W, 1)))
    for t in range(min(target, H), 0, -1):
        if H % t == 0 and t >= 4:
            return t
    return H  # TODO(synk): ragged-H tiling (masked last tile) not implemented.


# ----------------------------------------------------------------------------
# Fused double-conv kernel: (conv3x3 + BN + ReLU) x 2 for one (batch, H-tile)
# ----------------------------------------------------------------------------
def _double_conv_kernel(x_hbm, w1_ref, s1_ref, b1_ref, w2_ref, s2_ref, b2_ref,
                        o_ref, xbuf, y1buf, sem,
                        *, TH, nI, W, Wx, W2a, Wo_a, Cp, Coutp):
    # x_hbm : (N, H, W, Cp) HBM      unpadded input (channels already lane-padded)
    # w1_ref: (9*Cp,  Coutp) VMEM    conv1 weight, 3x3 taps flattened into K
    # w2_ref: (9*Coutp, Coutp) VMEM  conv2 weight
    # s*/b* : (1, Coutp) f32 VMEM    folded conv-bias + eval-mode BN scale/bias
    # o_ref : (TH, W, Coutp) VMEM    output tile
    # xbuf  : (2, TH+4, Wx, Cp)      double-buffered halo tile of the input
    # y1buf : (TH+2, W2a, Coutp)     conv1 output (+1-pixel halo), stays in VMEM
    # sem   : DMA sems (slot, region); region 0=body, 1=top halo, 2=bottom halo
    n = pl.program_id(0)
    i = pl.program_id(1)
    TH2 = TH + 2
    slot = i % 2

    def start_tile(j, s):
        """Issue the HBM->VMEM DMAs that bring H-tile j into xbuf slot s."""
        row0 = j * TH
        if TH % 8 == 0:
            row0 = pl.multiple_of(row0, 8)
        pltpu.make_async_copy(                                     # body rows
            x_hbm.at[n, pl.ds(row0, TH), :, :],
            xbuf.at[s, pl.ds(2, TH), pl.ds(2, W), :],
            sem.at[s, 0]).start()

        @pl.when(j > 0)                                            # top halo
        def _():
            pltpu.make_async_copy(
                x_hbm.at[n, pl.ds(row0 - 2, 2), :, :],
                xbuf.at[s, pl.ds(0, 2), pl.ds(2, W), :],
                sem.at[s, 1]).start()

        if nI > 1:
            @pl.when(j < nI - 1)                                   # bottom halo
            def _():
                pltpu.make_async_copy(
                    x_hbm.at[n, pl.ds(row0 + TH, 2), :, :],
                    xbuf.at[s, pl.ds(TH + 2, 2), pl.ds(2, W), :],
                    sem.at[s, 2]).start()

    def wait_tile(j, s):
        """Wait for exactly the DMAs that start_tile(j, s) issued."""
        pltpu.make_async_copy(
            x_hbm.at[n, pl.ds(0, TH), :, :],
            xbuf.at[s, pl.ds(2, TH), pl.ds(2, W), :],
            sem.at[s, 0]).wait()
        if nI > 1:
            @pl.when(j > 0)
            def _():
                pltpu.make_async_copy(
                    x_hbm.at[n, pl.ds(0, 2), :, :],
                    xbuf.at[s, pl.ds(0, 2), pl.ds(2, W), :],
                    sem.at[s, 1]).wait()

            @pl.when(j < nI - 1)
            def _():
                pltpu.make_async_copy(
                    x_hbm.at[n, pl.ds(0, 2), :, :],
                    xbuf.at[s, pl.ds(TH + 2, 2), pl.ds(2, W), :],
                    sem.at[s, 2]).wait()

    # -- first tile of each batch row: zero the permanently-zero halo regions
    #    (never touched by any DMA) and prime the DMA pipeline for tile 0.
    @pl.when(i == 0)
    def _():
        xbuf[:, :, 0:2, :] = jnp.zeros((2, TH + 4, 2, Cp), xbuf.dtype)
        xbuf[:, :, W + 2:Wx, :] = jnp.zeros((2, TH + 4, Wx - (W + 2), Cp),
                                            xbuf.dtype)
        xbuf[0, 0:2, :, :] = jnp.zeros((2, Wx, Cp), xbuf.dtype)    # image top
        start_tile(i, slot)                                        # prime tile 0

    # -- prefetch the next H-tile of this batch row into the other slot so its
    #    HBM->VMEM transfer overlaps this step's two matmuls.
    if nI > 1:
        @pl.when(i + 1 < nI)
        def _():
            start_tile(i + 1, 1 - slot)

    # -- block on the current tile's DMAs.
    wait_tile(i, slot)

    # -- last tile of the image: rows below the image must read as zero padding
    #    (they are either uninitialized or stale from an earlier tile).
    s_last = (nI - 1) % 2

    @pl.when(i == nI - 1)
    def _():
        xbuf[s_last, TH + 2:TH + 4, :, :] = jnp.zeros((2, Wx, Cp), xbuf.dtype)

    x = xbuf[slot]                                    # (TH+4, Wx, Cp)

    # ---- conv1 (+ 1-pixel halo) as a single K = 9*Cp MXU matmul -------------
    # Tap widths (W2a) are multiples of 8 so each slice+reshape is
    # layout-preserving (no per-tap relayout copies).
    # TODO(synk): on v7x (MRB accumulation, 64 MiB VMEM) prefer per-ky split-K
    # accumulating dots instead of materializing the (M, 9*Cp) concat.
    cols1 = [x[ky:ky + TH2, kx:kx + W2a, :].reshape(TH2 * W2a, Cp)
             for ky in range(3) for kx in range(3)]
    xcol1 = jnp.concatenate(cols1, axis=-1)           # (TH2*W2a, 9*Cp)
    acc1 = jnp.dot(xcol1, w1_ref[...], preferred_element_type=jnp.float32)
    y1 = jnp.maximum(acc1 * s1_ref[...] + b1_ref[...], 0.0)       # f32 epilogue
    y1buf[...] = y1.reshape(TH2, W2a, Coutp).astype(y1buf.dtype)

    # Zero the out-of-image halo of the intermediate so conv2 sees the original
    # zero padding (replaces the old full-tile iota/where mask with a few tiny
    # static slice stores).
    zcol = jnp.zeros((TH2, 1, Coutp), y1buf.dtype)
    y1buf[:, 0:1, :] = zcol                           # global column -1
    y1buf[:, W + 1:W + 2, :] = zcol                   # global column W
    zrow = jnp.zeros((1, W2a, Coutp), y1buf.dtype)

    @pl.when(i == 0)
    def _():
        y1buf[0:1, :, :] = zrow                       # global row -1

    @pl.when(i == nI - 1)
    def _():
        y1buf[TH + 1:TH + 2, :, :] = zrow             # global row H

    # ---- conv2 as a single K = 9*Coutp MXU matmul ----------------------------
    y1v = y1buf[...]                                  # (TH+2, W2a, Coutp)
    cols2 = [y1v[ky:ky + TH, kx:kx + Wo_a, :].reshape(TH * Wo_a, Coutp)
             for ky in range(3) for kx in range(3)]
    xcol2 = jnp.concatenate(cols2, axis=-1)           # (TH*Wo_a, 9*Coutp)
    acc2 = jnp.dot(xcol2, w2_ref[...], preferred_element_type=jnp.float32)
    y2 = jnp.maximum(acc2 * s2_ref[...] + b2_ref[...], 0.0)
    y2 = y2.reshape(TH, Wo_a, Coutp)
    o_ref[...] = y2[:, :W, :].astype(o_ref.dtype)     # drop aligned junk cols


# ----------------------------------------------------------------------------
# NHWC entry point (preferred; no layout transposes in the hot path)
# ----------------------------------------------------------------------------
def double_conv_nhwc(x_nhwc, params, *, tile_h=None,
                     compute_dtype=jnp.bfloat16, out_dtype=jnp.float32):
    w1, s1, b1, w2, s2, b2 = params
    N, H, W, Cin = x_nhwc.shape
    Cp = w1.shape[0] // 9
    Coutp = w1.shape[1]
    assert Cin <= Cp

    TH = _pick_tile_h(H, W, tile_h)
    nI = H // TH

    Wo_a = _round_up(W, 8)                 # conv2 tap width (aligned)
    W2a = _round_up(Wo_a + 2, 8)           # conv1 output-halo width (aligned)
    Wx = W2a + 2                           # xbuf width

    # Cheap input prep: cast + channel-pad ONLY (no spatial pad -- the kernel
    # builds the 2-pixel halo itself from zero-initialised VMEM).  If the
    # caller already provides compute_dtype data with Cp channels this is a
    # no-op and there is no extra HBM pass at all.
    if Cin != Cp or x_nhwc.dtype != compute_dtype:
        xp = jnp.pad(x_nhwc.astype(compute_dtype),
                     ((0, 0), (0, 0), (0, 0), (0, Cp - Cin)))
    else:
        xp = x_nhwc

    kernel = functools.partial(
        _double_conv_kernel, TH=TH, nI=nI, W=W, Wx=Wx, W2a=W2a, Wo_a=Wo_a,
        Cp=Cp, Coutp=Coutp)

    out = pl.pallas_call(
        kernel,
        # NOTE: pass out_dtype=jnp.bfloat16 if the consumer accepts it --
        # halves the output HBM writes and the double-buffered output tile.
        out_shape=jax.ShapeDtypeStruct((N, H, W, Coutp), out_dtype),
        grid_spec=pltpu.PrefetchScalarGridSpec(
            num_scalar_prefetch=0,
            grid=(N, nI),
            in_specs=[
                pl.BlockSpec(memory_space=pl.ANY),            # x stays in HBM
                pl.BlockSpec((9 * Cp, Coutp), lambda n, i: (0, 0)),
                pl.BlockSpec((1, Coutp), lambda n, i: (0, 0)),
                pl.BlockSpec((1, Coutp), lambda n, i: (0, 0)),
                pl.BlockSpec((9 * Coutp, Coutp), lambda n, i: (0, 0)),
                pl.BlockSpec((1, Coutp), lambda n, i: (0, 0)),
                pl.BlockSpec((1, Coutp), lambda n, i: (0, 0)),
            ],
            out_specs=pl.BlockSpec((None, TH, W, Coutp),
                                   lambda n, i: (n, i, 0, 0)),
            scratch_shapes=[
                pltpu.VMEM((2, TH + 4, Wx, Cp), compute_dtype),     # halo x2
                pltpu.VMEM((TH + 2, W2a, Coutp), compute_dtype),    # conv1 out
                pltpu.SemaphoreType.DMA((2, 3)),
            ],
        ),
        # The H-tile axis carries the manual prefetch chain -> "arbitrary";
        # the batch axis self-primes at i==0 so it stays safely "parallel".
        compiler_params=pltpu.CompilerParams(
            dimension_semantics=("parallel", "arbitrary"),
            vmem_limit_bytes=_vmem_limit_bytes()),
    )(xp, w1.astype(compute_dtype), s1, b1, w2.astype(compute_dtype), s2, b2)

    return out


def double_conv_forward(x_nchw, params, out_ch, *, tile_h=None,
                        compute_dtype=jnp.bfloat16, out_dtype=jnp.float32):
    """PyTorch-interface wrapper: NCHW in, NCHW out.

    The transposes and the channel un-padding exist only to match the
    nn.Module interface; inside an NHWC model call double_conv_nhwc directly
    and keep the lane-padded channels downstream (avoids an extra HBM pass).
    """
    x = jnp.transpose(x_nchw, (0, 2, 3, 1))
    y = double_conv_nhwc(x, params, tile_h=tile_h,
                         compute_dtype=compute_dtype, out_dtype=out_dtype)
    return jnp.transpose(y[..., :out_ch], (0, 3, 1, 2))


# ----------------------------------------------------------------------------
# Deterministic parameter construction (mimics nn.Conv2d / nn.BatchNorm2d)
# ----------------------------------------------------------------------------
def make_params(key, in_ch, out_ch, *, eps=1e-5, lane=128):
    cin_p = _round_up(max(in_ch, 1), lane)
    cout_p = _round_up(max(out_ch, 1), lane)

    def one_block(k, cin, cout, cin_pad, cout_pad):
        kw, kb, kg, kbe, km, kv = jax.random.split(k, 6)
        bound = 1.0 / np.sqrt(cin * 9)
        w_oihw = jax.random.uniform(kw, (cout, cin, 3, 3), jnp.float32,
                                    -bound, bound)
        conv_b = jax.random.uniform(kb, (cout,), jnp.float32, -bound, bound)
        gamma = 1.0 + 0.1 * jax.random.normal(kg, (cout,), jnp.float32)
        beta = 0.1 * jax.random.normal(kbe, (cout,), jnp.float32)
        rmean = 0.1 * jax.random.normal(km, (cout,), jnp.float32)
        rvar = jnp.abs(jax.random.normal(kv, (cout,), jnp.float32)) + 0.5

        # Fold conv-bias + eval-mode BN into a per-channel scale/bias.
        scale = gamma / jnp.sqrt(rvar + eps)
        bias = beta + (conv_b - rmean) * scale

        # (Cout, Cin, 3, 3) -> (3, 3, Cin, Cout) -> pad channels -> (9*Cp, Coutp)
        w = jnp.transpose(w_oihw, (2, 3, 1, 0))
        w = jnp.pad(w, ((0, 0), (0, 0),
                        (0, cin_pad - cin), (0, cout_pad - cout)))
        w = w.reshape(9 * cin_pad, cout_pad)
        scale_p = jnp.pad(scale, (0, cout_pad - cout)).reshape(1, cout_pad)
        bias_p = jnp.pad(bias, (0, cout_pad - cout)).reshape(1, cout_pad)

        ref = (w_oihw, conv_b, gamma, beta, rmean, rvar)
        return (w, scale_p, bias_p), ref

    k1, k2 = jax.random.split(key)
    (w1, s1, b1), ref1 = one_block(k1, in_ch, out_ch, cin_p, cout_p)
    (w2, s2, b2), ref2 = one_block(k2, out_ch, out_ch, cout_p, cout_p)
    return (w1, s1, b1, w2, s2, b2), (ref1, ref2)


# ----------------------------------------------------------------------------
# Pure-JAX reference (lax.conv) for correctness checking
# ----------------------------------------------------------------------------
def reference_forward(x_nchw, refs, eps=1e-5):
    y = x_nchw
    for (w_oihw, conv_b, gamma, beta, rmean, rvar) in refs:
        y = lax.conv_general_dilated(
            y, w_oihw, window_strides=(1, 1), padding="SAME",
            dimension_numbers=("NCHW", "OIHW", "NCHW"))
        y = y + conv_b[None, :, None, None]
        y = (y - rmean[None, :, None, None]) / jnp.sqrt(
            rvar[None, :, None, None] + eps)
        y = y * gamma[None, :, None, None] + beta[None, :, None, None]
        y = jnp.maximum(y, 0.0)
    return y


if __name__ == "__main__":
    key = jax.random.PRNGKey(0)
    kx1, kp1, kx2, kp2 = jax.random.split(key, 4)

    # --- case 1: small module-typical shapes (single H-tile path) -------------
    N, in_ch, out_ch, H, W = 2, 4, 8, 16, 16
    x = jax.random.normal(kx1, (N, in_ch, H, W), jnp.float32)
    params, refs = make_params(kp1, in_ch, out_ch)
    ref = jax.block_until_ready(reference_forward(x, refs))

    out_f32 = jax.block_until_ready(
        double_conv_forward(x, params, out_ch, compute_dtype=jnp.float32))
    np.testing.assert_allclose(np.asarray(out_f32), np.asarray(ref),
                               atol=1e-4, rtol=1e-4)

    out_bf16 = jax.block_until_ready(
        double_conv_forward(x, params, out_ch, compute_dtype=jnp.bfloat16))
    np.testing.assert_allclose(np.asarray(out_bf16), np.asarray(ref),
                               atol=5e-2, rtol=5e-2)

    # --- case 2: multi-tile path (exercises the double-buffered halo DMA,
    #     first/last-tile border zeroing and non-8-aligned W) ------------------
    N2, in2, out2, H2, W2 = 1, 3, 8, 32, 20
    x2 = jax.random.normal(kx2, (N2, in2, H2, W2), jnp.float32)
    params2, refs2 = make_params(kp2, in2, out2)
    ref2 = jax.block_until_ready(reference_forward(x2, refs2))

    out2_f32 = jax.block_until_ready(
        double_conv_forward(x2, params2, out2, tile_h=8,
                            compute_dtype=jnp.float32))
    np.testing.assert_allclose(np.asarray(out2_f32), np.asarray(ref2),
                               atol=1e-4, rtol=1e-4)

    print("KERNEL_OK")
</pallas_src>

<mosaic_0001>
module attributes {stable_mosaic.version = 11 : i64} {
  func.func @_double_conv_kernel(%arg0: i32, %arg1: i32, %arg2: memref<2x16x16x128xf32, #tpu.memory_space<any>>, %arg3: memref<1152x128xf32, #tpu.memory_space<vmem>>, %arg4: memref<1x128xf32, #tpu.memory_space<vmem>>, %arg5: memref<1x128xf32, #tpu.memory_space<vmem>>, %arg6: memref<1152x128xf32, #tpu.memory_space<vmem>>, %arg7: memref<1x128xf32, #tpu.memory_space<vmem>>, %arg8: memref<1x128xf32, #tpu.memory_space<vmem>>, %arg9: memref<1x16x16x128xf32, #tpu.memory_space<vmem>>, %arg10: memref<2x20x26x128xf32, #tpu.memory_space<vmem>>, %arg11: memref<18x24x128xf32, #tpu.memory_space<vmem>>, %arg12: memref<2x3x!tpu.dma_semaphore, #tpu.memory_space<semaphore_mem>>) attributes {dimension_semantics = [#tpu.dimension_semantics<parallel>, #tpu.dimension_semantics<arbitrary>], iteration_bounds = array<i64: 2, 1>, scalar_prefetch = 0 : i64, scratch_operands = 3 : i64, tpu.core_type = #tpu.core_type<tc>, window_params = [{}, {pipeline_mode = #tpu.pipeline_mode<synchronous>, transform_indices = @transform_1, window_bounds = array<i64: 1152, 128>}, {pipeline_mode = #tpu.pipeline_mode<synchronous>, transform_indices = @transform_2, window_bounds = array<i64: 1, 128>}, {pipeline_mode = #tpu.pipeline_mode<synchronous>, transform_indices = @transform_3, window_bounds = array<i64: 1, 128>}, {pipeline_mode = #tpu.pipeline_mode<synchronous>, transform_indices = @transform_4, window_bounds = array<i64: 1152, 128>}, {pipeline_mode = #tpu.pipeline_mode<synchronous>, transform_indices = @transform_5, window_bounds = array<i64: 1, 128>}, {pipeline_mode = #tpu.pipeline_mode<synchronous>, transform_indices = @transform_6, window_bounds = array<i64: 1, 128>}, {transform_indices = @transform_7, window_bounds = array<i64: 1, 16, 16, 128>}]} {
    %c2_i32 = arith.constant 2 : i32
    %c0_i32 = arith.constant 0 : i32
    %0 = arith.cmpi eq, %c2_i32, %c0_i32 : i32
    %c1_i32 = arith.constant 1 : i32
    %1 = arith.select %0, %c1_i32, %c2_i32 : i32
    %2 = arith.remsi %arg1, %1 : i32
    %c0_i32_0 = arith.constant 0 : i32
    %3 = arith.cmpi ne, %2, %c0_i32_0 : i32
    %c0_i32_1 = arith.constant 0 : i32
    %4 = arith.cmpi slt, %2, %c0_i32_1 : i32
    %c0_i32_2 = arith.constant 0 : i32
    %5 = arith.cmpi slt, %1, %c0_i32_2 : i32
    %6 = arith.xori %4, %5 : i1
    %7 = arith.andi %6, %3 : i1
    %8 = arith.addi %2, %1 : i32
    %9 = arith.select %7, %8, %2 : i32
    %c0_i32_3 = arith.constant 0 : i32
    %10 = arith.cmpi eq, %arg1, %c0_i32_3 : i32
    %11 = arith.extui %10 : i1 to i32
    %c0_i32_4 = arith.constant 0 : i32
    %12 = arith.cmpi ne, %11, %c0_i32_4 : i32
    scf.if %12 {
      %cst_52 = arith.constant 0.000000e+00 : f32
      %100 = vector.broadcast %cst_52 : f32 to vector<2x20x2x128xf32>
      %c0_53 = arith.constant 0 : index
      %c0_54 = arith.constant 0 : index
      %c0_55 = arith.constant 0 : index
      %c0_56 = arith.constant 0 : index
      %101 = vector.load %arg10[%c0_53, %c0_54, %c0_55, %c0_56] : memref<2x20x26x128xf32, #tpu.memory_space<vmem>>, vector<2x20x2x128xf32>
      tpu.vector_store %arg10[%c0_53, %c0_54, %c0_55, %c0_56], %100 {strides = array<i32>} : memref<2x20x26x128xf32, #tpu.memory_space<vmem>>, vector<2x20x2x128xf32>,
      %cst_57 = arith.constant 0.000000e+00 : f32
      %102 = vector.broadcast %cst_57 : f32 to vector<2x20x8x128xf32>
      %c0_58 = arith.constant 0 : index
      %c0_59 = arith.constant 0 : index
      %c18 = arith.constant 18 : index
      %c0_60 = arith.constant 0 : index
      %103 = vector.load %arg10[%c0_58, %c0_59, %c18, %c0_60] : memref<2x20x26x128xf32, #tpu.memory_space<vmem>>, vector<2x20x8x128xf32>
      tpu.vector_store %arg10[%c0_58, %c0_59, %c18, %c0_60], %102 {strides = array<i32>} : memref<2x20x26x128xf32, #tpu.memory_space<vmem>>, vector<2x20x8x128xf32>,
      %cst_61 = arith.constant 0.000000e+00 : f32
      %104 = vector.broadcast %cst_61 : f32 to vector<2x26x128xf32>
      %c0_62 = arith.constant 0 : index
      %c0_63 = arith.constant 0 : index
      %c0_64 = arith.constant 0 : index
      %c0_65 = arith.constant 0 : index
      %105 = vector.load %arg10[%c0_62, %c0_63, %c0_64, %c0_65] : memref<2x20x26x128xf32, #tpu.memory_space<vmem>>, vector<1x2x26x128xf32>
      %106 = vector.shape_cast %105 : vector<1x2x26x128xf32> to vector<2x26x128xf32>
      %107 = vector.shape_cast %104 : vector<2x26x128xf32> to vector<1x2x26x128xf32>
      tpu.vector_store %arg10[%c0_62, %c0_63, %c0_64, %c0_65], %107 {strides = array<i32>} : memref<2x20x26x128xf32, #tpu.memory_space<vmem>>, vector<1x2x26x128xf32>,
      %c16_i32 = arith.constant 16 : i32
      %108 = arith.muli %arg1, %c16_i32 : i32
      %109 = tpu.assume_multiple %108, 8 : i32
      %c0_i32_66 = arith.constant 0 : i32
      %c0_i32_67 = arith.constant 0 : i32
      %c0_i32_68 = arith.constant 0 : i32
      %110 = tpu.memref_slice %arg2[%arg0, %109, %c0_i32_67, %c0_i32_68] : memref<2x16x16x128xf32, #tpu.memory_space<any>> -> memref<1x16x16x128xf32, #tpu.memory_space<any>>
      %111 = tpu.memref_squeeze %110 : memref<1x16x16x128xf32, #tpu.memory_space<any>> -> memref<16x16x128xf32, #tpu.memory_space<any>>
      %c2_i32_69 = arith.constant 2 : i32
      %c2_i32_70 = arith.constant 2 : i32
      %c0_i32_71 = arith.constant 0 : i32
      %112 = tpu.memref_slice %arg10[%9, %c2_i32_69, %c2_i32_70, %c0_i32_71] : memref<2x20x26x128xf32, #tpu.memory_space<vmem>> -> memref<1x16x16x128xf32, #tpu.memory_space<vmem>>
      %113 = tpu.memref_squeeze %112 : memref<1x16x16x128xf32, #tpu.memory_space<vmem>> -> memref<16x16x128xf32, #tpu.memory_space<vmem>>
      %114 = tpu.memref_slice %arg12[%9, %c0_i32_66] : memref<2x3x!tpu.dma_semaphore, #tpu.memory_space<semaphore_mem>> -> memref<1x1x!tpu.dma_semaphore, #tpu.memory_space<semaphore_mem>>
      %115 = tpu.memref_squeeze %114 : memref<1x1x!tpu.dma_semaphore, #tpu.memory_space<semaphore_mem>> -> memref<!tpu.dma_semaphore, #tpu.memory_space<semaphore_mem>>
      tpu.enqueue_dma source(%111 : memref<16x16x128xf32, #tpu.memory_space<any>>) target(%113 : memref<16x16x128xf32, #tpu.memory_space<vmem>>) target_semaphore(%115 : memref<!tpu.dma_semaphore, #tpu.memory_space<semaphore_mem>>)
      %c0_i32_72 = arith.constant 0 : i32
      %116 = arith.cmpi sgt, %arg1, %c0_i32_72 : i32
      %117 = arith.extui %116 : i1 to i32
      %c0_i32_73 = arith.constant 0 : i32
      %118 = arith.cmpi ne, %117, %c0_i32_73 : i32
      scf.if %118 {
        %c2_i32_74 = arith.constant 2 : i32
        %119 = arith.subi %109, %c2_i32_74 : i32
        %c1_i32_75 = arith.constant 1 : i32
        %c0_i32_76 = arith.constant 0 : i32
        %c0_i32_77 = arith.constant 0 : i32
        %120 = tpu.memref_slice %arg2[%arg0, %119, %c0_i32_76, %c0_i32_77] : memref<2x16x16x128xf32, #tpu.memory_space<any>> -> memref<1x2x16x128xf32, #tpu.memory_space<any>>
        %121 = tpu.memref_squeeze %120 : memref<1x2x16x128xf32, #tpu.memory_space<any>> -> memref<2x16x128xf32, #tpu.memory_space<any>>
        %c0_i32_78 = arith.constant 0 : i32
        %c2_i32_79 = arith.constant 2 : i32
        %c0_i32_80 = arith.constant 0 : i32
        %122 = tpu.memref_slice %arg10[%9, %c0_i32_78, %c2_i32_79, %c0_i32_80] : memref<2x20x26x128xf32, #tpu.memory_space<vmem>> -> memref<1x2x16x128xf32, #tpu.memory_space<vmem>>
        %123 = tpu.memref_squeeze %122 : memref<1x2x16x128xf32, #tpu.memory_space<vmem>> -> memref<2x16x128xf32, #tpu.memory_space<vmem>>
        %124 = tpu.memref_slice %arg12[%9, %c1_i32_75] : memref<2x3x!tpu.dma_semaphore, #tpu.memory_space<semaphore_mem>> -> memref<1x1x!tpu.dma_semaphore, #tpu.memory_space<semaphore_mem>>
        %125 = tpu.memref_squeeze %124 : memref<1x1x!tpu.dma_semaphore, #tpu.memory_space<semaphore_mem>> -> memref<!tpu.dma_semaphore, #tpu.memory_space<semaphore_mem>>
        tpu.enqueue_dma source(%121 : memref<2x16x128xf32, #tpu.memory_space<any>>) target(%123 : memref<2x16x128xf32, #tpu.memory_space<vmem>>) target_semaphore(%125 : memref<!tpu.dma_semaphore, #tpu.memory_space<semaphore_mem>>)
      } else {
      }
    } else {
    }
    %c0_i32_5 = arith.constant 0 : i32
    %c0_i32_6 = arith.constant 0 : i32
    %c0_i32_7 = arith.constant 0 : i32
    %c0_i32_8 = arith.constant 0 : i32
    %13 = tpu.memref_slice %arg2[%arg0, %c0_i32_6, %c0_i32_7, %c0_i32_8] : memref<2x16x16x128xf32, #tpu.memory_space<any>> -> memref<1x16x16x128xf32, #tpu.memory_space<any>>
    %14 = tpu.memref_squeeze %13 : memref<1x16x16x128xf32, #tpu.memory_space<any>> -> memref<16x16x128xf32, #tpu.memory_space<any>>
    %c2_i32_9 = arith.constant 2 : i32
    %c2_i32_10 = arith.constant 2 : i32
    %c0_i32_11 = arith.constant 0 : i32
    %15 = tpu.memref_slice %arg10[%9, %c2_i32_9, %c2_i32_10, %c0_i32_11] : memref<2x20x26x128xf32, #tpu.memory_space<vmem>> -> memref<1x16x16x128xf32, #tpu.memory_space<vmem>>
    %16 = tpu.memref_squeeze %15 : memref<1x16x16x128xf32, #tpu.memory_space<vmem>> -> memref<16x16x128xf32, #tpu.memory_space<vmem>>
    %17 = tpu.memref_slice %arg12[%9, %c0_i32_5] : memref<2x3x!tpu.dma_semaphore, #tpu.memory_space<semaphore_mem>> -> memref<1x1x!tpu.dma_semaphore, #tpu.memory_space<semaphore_mem>>
    %18 = tpu.memref_squeeze %17 : memref<1x1x!tpu.dma_semaphore, #tpu.memory_space<semaphore_mem>> -> memref<!tpu.dma_semaphore, #tpu.memory_space<semaphore_mem>>
    tpu.wait_dma2 semaphore(%18 : memref<!tpu.dma_semaphore, #tpu.memory_space<semaphore_mem>>) src(%14 : memref<16x16x128xf32, #tpu.memory_space<any>>) dst(%16 : memref<16x16x128xf32, #tpu.memory_space<vmem>>)
    %c0_i32_12 = arith.constant 0 : i32
    %19 = arith.cmpi eq, %arg1, %c0_i32_12 : i32
    %20 = arith.extui %19 : i1 to i32
    %c0_i32_13 = arith.constant 0 : i32
    %21 = arith.cmpi ne, %20, %c0_i32_13 : i32
    scf.if %21 {
      %cst_52 = arith.constant 0.000000e+00 : f32
      %100 = vector.broadcast %cst_52 : f32 to vector<2x26x128xf32>
      %c0_53 = arith.constant 0 : index
      %c18 = arith.constant 18 : index
      %c0_54 = arith.constant 0 : index
      %c0_55 = arith.constant 0 : index
      %101 = vector.load %arg10[%c0_53, %c18, %c0_54, %c0_55] : memref<2x20x26x128xf32, #tpu.memory_space<vmem>>, vector<1x2x26x128xf32>
      %102 = vector.shape_cast %101 : vector<1x2x26x128xf32> to vector<2x26x128xf32>
      %103 = vector.shape_cast %100 : vector<2x26x128xf32> to vector<1x2x26x128xf32>
      tpu.vector_store %arg10[%c0_53, %c18, %c0_54, %c0_55], %103 {strides = array<i32>} : memref<2x20x26x128xf32, #tpu.memory_space<vmem>>, vector<1x2x26x128xf32>,
    } else {
    }
    %22 = arith.index_cast %9 : i32 to index
    %c0 = arith.constant 0 : index
    %c0_14 = arith.constant 0 : index
    %c0_15 = arith.constant 0 : index
    %23 = vector.load %arg10[%22, %c0, %c0_14, %c0_15] : memref<2x20x26x128xf32, #tpu.memory_space<vmem>>, vector<1x20x26x128xf32>
    %24 = vector.shape_cast %23 : vector<1x20x26x128xf32> to vector<20x26x128xf32>
    %25 = vector.extract_strided_slice %24 {offsets = [0, 0, 0], sizes = [18, 24, 128], strides = [1, 1, 1]} : vector<20x26x128xf32> to vector<18x24x128xf32>
    %26 = vector.shape_cast %25 : vector<18x24x128xf32> to vector<432x128xf32>
    %27 = vector.extract_strided_slice %24 {offsets = [0, 1, 0], sizes = [18, 24, 128], strides = [1, 1, 1]} : vector<20x26x128xf32> to vector<18x24x128xf32>
    %28 = vector.shape_cast %27 : vector<18x24x128xf32> to vector<432x128xf32>
    %29 = vector.extract_strided_slice %24 {offsets = [0, 2, 0], sizes = [18, 24, 128], strides = [1, 1, 1]} : vector<20x26x128xf32> to vector<18x24x128xf32>
    %30 = vector.shape_cast %29 : vector<18x24x128xf32> to vector<432x128xf32>
    %31 = vector.extract_strided_slice %24 {offsets = [1, 0, 0], sizes = [18, 24, 128], strides = [1, 1, 1]} : vector<20x26x128xf32> to vector<18x24x128xf32>
    %32 = vector.shape_cast %31 : vector<18x24x128xf32> to vector<432x128xf32>
    %33 = vector.extract_strided_slice %24 {offsets = [1, 1, 0], sizes = [18, 24, 128], strides = [1, 1, 1]} : vector<20x26x128xf32> to vector<18x24x128xf32>
    %34 = vector.shape_cast %33 : vector<18x24x128xf32> to vector<432x128xf32>
    %35 = vector.extract_strided_slice %24 {offsets = [1, 2, 0], sizes = [18, 24, 128], strides = [1, 1, 1]} : vector<20x26x128xf32> to vector<18x24x128xf32>
    %36 = vector.shape_cast %35 : vector<18x24x128xf32> to vector<432x128xf32>
    %37 = vector.extract_strided_slice %24 {offsets = [2, 0, 0], sizes = [18, 24, 128], strides = [1, 1, 1]} : vector<20x26x128xf32> to vector<18x24x128xf32>
    %38 = vector.shape_cast %37 : vector<18x24x128xf32> to vector<432x128xf32>
    %39 = vector.extract_strided_slice %24 {offsets = [2, 1, 0], sizes = [18, 24, 128], strides = [1, 1, 1]} : vector<20x26x128xf32> to vector<18x24x128xf32>
    %40 = vector.shape_cast %39 : vector<18x24x128xf32> to vector<432x128xf32>
    %41 = vector.extract_strided_slice %24 {offsets = [2, 2, 0], sizes = [18, 24, 128], strides = [1, 1, 1]} : vector<20x26x128xf32> to vector<18x24x128xf32>
    %42 = vector.shape_cast %41 : vector<18x24x128xf32> to vector<432x128xf32>
    %43 = tpu.concatenate %26, %28, %30, %32, %34, %36, %38, %40, %42 in 1 : vector<432x128xf32>, vector<432x128xf32>, vector<432x128xf32>, vector<432x128xf32>, vector<432x128xf32>, vector<432x128xf32>, vector<432x128xf32>, vector<432x128xf32>, vector<432x128xf32> -> vector<432x1152xf32>
    %c0_16 = arith.constant 0 : index
    %c0_17 = arith.constant 0 : index
    %44 = vector.load %arg3[%c0_16, %c0_17] : memref<1152x128xf32, #tpu.memory_space<vmem>>, vector<1152x128xf32>
    %cst = arith.constant dense<0.000000e+00> : vector<432x128xf32>
    %45 = tpu.matmul %43, %44, %cst {dimension_numbers = #tpu.dot_dimension_numbers<[1], [0], [0], [1], [0, 0, 1, 1], [], []>} : vector<432x1152xf32>, vector<1152x128xf32>, vector<432x128xf32> -> vector<432x128xf32>
    %c0_18 = arith.constant 0 : index
    %c0_19 = arith.constant 0 : index
    %46 = vector.load %arg4[%c0_18, %c0_19] : memref<1x128xf32, #tpu.memory_space<vmem>>, vector<1x128xf32>
    %47 = vector.broadcast %46 : vector<1x128xf32> to vector<432x128xf32>
    %48 = arith.mulf %45, %47 : vector<432x128xf32>
    %c0_20 = arith.constant 0 : index
    %c0_21 = arith.constant 0 : index
    %49 = vector.load %arg5[%c0_20, %c0_21] : memref<1x128xf32, #tpu.memory_space<vmem>>, vector<1x128xf32>
    %50 = vector.broadcast %49 : vector<1x128xf32> to vector<432x128xf32>
    %51 = arith.addf %48, %50 : vector<432x128xf32>
    %cst_22 = arith.constant 0.000000e+00 : f32
    %52 = vector.broadcast %cst_22 : f32 to vector<432x128xf32>
    %53 = arith.maximumf %51, %52 : vector<432x128xf32>
    %54 = vector.shape_cast %53 : vector<432x128xf32> to vector<18x24x128xf32>
    %c0_23 = arith.constant 0 : index
    %c0_24 = arith.constant 0 : index
    %c0_25 = arith.constant 0 : index
    %55 = vector.load %arg11[%c0_23, %c0_24, %c0_25] : memref<18x24x128xf32, #tpu.memory_space<vmem>>, vector<18x24x128xf32>
    tpu.vector_store %arg11[%c0_23, %c0_24, %c0_25], %54 {strides = array<i32>} : memref<18x24x128xf32, #tpu.memory_space<vmem>>, vector<18x24x128xf32>,
    %cst_26 = arith.constant 0.000000e+00 : f32
    %56 = vector.broadcast %cst_26 : f32 to vector<18x1x128xf32>
    %c0_27 = arith.constant 0 : index
    %c0_28 = arith.constant 0 : index
    %c0_29 = arith.constant 0 : index
    %57 = vector.load %arg11[%c0_27, %c0_28, %c0_29] : memref<18x24x128xf32, #tpu.memory_space<vmem>>, vector<18x1x128xf32>
    tpu.vector_store %arg11[%c0_27, %c0_28, %c0_29], %56 {strides = array<i32>} : memref<18x24x128xf32, #tpu.memory_space<vmem>>, vector<18x1x128xf32>,
    %c0_30 = arith.constant 0 : index
    %c17 = arith.constant 17 : index
    %c0_31 = arith.constant 0 : index
    %58 = vector.load %arg11[%c0_30, %c17, %c0_31] : memref<18x24x128xf32, #tpu.memory_space<vmem>>, vector<18x1x128xf32>
    tpu.vector_store %arg11[%c0_30, %c17, %c0_31], %56 {strides = array<i32>} : memref<18x24x128xf32, #tpu.memory_space<vmem>>, vector<18x1x128xf32>,
    %cst_32 = arith.constant 0.000000e+00 : f32
    %59 = vector.broadcast %cst_32 : f32 to vector<1x24x128xf32>
    %c0_i32_33 = arith.constant 0 : i32
    %60 = arith.cmpi eq, %arg1, %c0_i32_33 : i32
    %61 = arith.extui %60 : i1 to i32
    %c0_i32_34 = arith.constant 0 : i32
    %62 = arith.cmpi ne, %61, %c0_i32_34 : i32
    scf.if %62 {
      %c0_52 = arith.constant 0 : index
      %c0_53 = arith.constant 0 : index
      %c0_54 = arith.constant 0 : index
      %100 = vector.load %arg11[%c0_52, %c0_53, %c0_54] : memref<18x24x128xf32, #tpu.memory_space<vmem>>, vector<1x24x128xf32>
      tpu.vector_store %arg11[%c0_52, %c0_53, %c0_54], %59 {strides = array<i32>} : memref<18x24x128xf32, #tpu.memory_space<vmem>>, vector<1x24x128xf32>,
    } else {
    }
    %c0_i32_35 = arith.constant 0 : i32
    %63 = arith.cmpi eq, %arg1, %c0_i32_35 : i32
    %64 = arith.extui %63 : i1 to i32
    %c0_i32_36 = arith.constant 0 : i32
    %65 = arith.cmpi ne, %64, %c0_i32_36 : i32
    scf.if %65 {
      %c17_52 = arith.constant 17 : index
      %c0_53 = arith.constant 0 : index
      %c0_54 = arith.constant 0 : index
      %100 = vector.load %arg11[%c17_52, %c0_53, %c0_54] : memref<18x24x128xf32, #tpu.memory_space<vmem>>, vector<1x24x128xf32>
      tpu.vector_store %arg11[%c17_52, %c0_53, %c0_54], %59 {strides = array<i32>} : memref<18x24x128xf32, #tpu.memory_space<vmem>>, vector<1x24x128xf32>,
    } else {
    }
    %c0_37 = arith.constant 0 : index
    %c0_38 = arith.constant 0 : index
    %c0_39 = arith.constant 0 : index
    %66 = vector.load %arg11[%c0_37, %c0_38, %c0_39] : memref<18x24x128xf32, #tpu.memory_space<vmem>>, vector<18x24x128xf32>
    %67 = vector.extract_strided_slice %66 {offsets = [0, 0, 0], sizes = [16, 16, 128], strides = [1, 1, 1]} : vector<18x24x128xf32> to vector<16x16x128xf32>
    %68 = vector.shape_cast %67 : vector<16x16x128xf32> to vector<256x128xf32>
    %69 = vector.extract_strided_slice %66 {offsets = [0, 1, 0], sizes = [16, 16, 128], strides = [1, 1, 1]} : vector<18x24x128xf32> to vector<16x16x128xf32>
    %70 = vector.shape_cast %69 : vector<16x16x128xf32> to vector<256x128xf32>
    %71 = vector.extract_strided_slice %66 {offsets = [0, 2, 0], sizes = [16, 16, 128], strides = [1, 1, 1]} : vector<18x24x128xf32> to vector<16x16x128xf32>
    %72 = vector.shape_cast %71 : vector<16x16x128xf32> to vector<256x128xf32>
    %73 = vector.extract_strided_slice %66 {offsets = [1, 0, 0], sizes = [16, 16, 128], strides = [1, 1, 1]} : vector<18x24x128xf32> to vector<16x16x128xf32>
    %74 = vector.shape_cast %73 : vector<16x16x128xf32> to vector<256x128xf32>
    %75 = vector.extract_strided_slice %66 {offsets = [1, 1, 0], sizes = [16, 16, 128], strides = [1, 1, 1]} : vector<18x24x128xf32> to vector<16x16x128xf32>
    %76 = vector.shape_cast %75 : vector<16x16x128xf32> to vector<256x128xf32>
    %77 = vector.extract_strided_slice %66 {offsets = [1, 2, 0], sizes = [16, 16, 128], strides = [1, 1, 1]} : vector<18x24x128xf32> to vector<16x16x128xf32>
    %78 = vector.shape_cast %77 : vector<16x16x128xf32> to vector<256x128xf32>
    %79 = vector.extract_strided_slice %66 {offsets = [2, 0, 0], sizes = [16, 16, 128], strides = [1, 1, 1]} : vector<18x24x128xf32> to vector<16x16x128xf32>
    %80 = vector.shape_cast %79 : vector<16x16x128xf32> to vector<256x128xf32>
    %81 = vector.extract_strided_slice %66 {offsets = [2, 1, 0], sizes = [16, 16, 128], strides = [1, 1, 1]} : vector<18x24x128xf32> to vector<16x16x128xf32>
    %82 = vector.shape_cast %81 : vector<16x16x128xf32> to vector<256x128xf32>
    %83 = vector.extract_strided_slice %66 {offsets = [2, 2, 0], sizes = [16, 16, 128], strides = [1, 1, 1]} : vector<18x24x128xf32> to vector<16x16x128xf32>
    %84 = vector.shape_cast %83 : vector<16x16x128xf32> to vector<256x128xf32>
    %85 = tpu.concatenate %68, %70, %72, %74, %76, %78, %80, %82, %84 in 1 : vector<256x128xf32>, vector<256x128xf32>, vector<256x128xf32>, vector<256x128xf32>, vector<256x128xf32>, vector<256x128xf32>, vector<256x128xf32>, vector<256x128xf32>, vector<256x128xf32> -> vector<256x1152xf32>
    %c0_40 = arith.constant 0 : index
    %c0_41 = arith.constant 0 : index
    %86 = vector.load %arg6[%c0_40, %c0_41] : memref<1152x128xf32, #tpu.memory_space<vmem>>, vector<1152x128xf32>
    %cst_42 = arith.constant dense<0.000000e+00> : vector<256x128xf32>
    %87 = tpu.matmul %85, %86, %cst_42 {dimension_numbers = #tpu.dot_dimension_numbers<[1], [0], [0], [1], [0, 0, 1, 1], [], []>} : vector<256x1152xf32>, vector<1152x128xf32>, vector<256x128xf32> -> vector<256x128xf32>
    %c0_43 = arith.constant 0 : index
    %c0_44 = arith.constant 0 : index
    %88 = vector.load %arg7[%c0_43, %c0_44] : memref<1x128xf32, #tpu.memory_space<vmem>>, vector<1x128xf32>
    %89 = vector.broadcast %88 : vector<1x128xf32> to vector<256x128xf32>
    %90 = arith.mulf %87, %89 : vector<256x128xf32>
    %c0_45 = arith.constant 0 : index
    %c0_46 = arith.constant 0 : index
    %91 = vector.load %arg8[%c0_45, %c0_46] : memref<1x128xf32, #tpu.memory_space<vmem>>, vector<1x128xf32>
    %92 = vector.broadcast %91 : vector<1x128xf32> to vector<256x128xf32>
    %93 = arith.addf %90, %92 : vector<256x128xf32>
    %cst_47 = arith.constant 0.000000e+00 : f32
    %94 = vector.broadcast %cst_47 : f32 to vector<256x128xf32>
    %95 = arith.maximumf %93, %94 : vector<256x128xf32>
    %96 = vector.shape_cast %95 : vector<256x128xf32> to vector<16x16x128xf32>
    %c0_48 = arith.constant 0 : index
    %c0_49 = arith.constant 0 : index
    %c0_50 = arith.constant 0 : index
    %c0_51 = arith.constant 0 : index
    %97 = vector.load %arg9[%c0_48, %c0_49, %c0_50, %c0_51] : memref<1x16x16x128xf32, #tpu.memory_space<vmem>>, vector<1x16x16x128xf32>
    %98 = vector.shape_cast %97 : vector<1x16x16x128xf32> to vector<16x16x128xf32>
    %99 = vector.shape_cast %96 : vector<16x16x128xf32> to vector<1x16x16x128xf32>
    tpu.vector_store %arg9[%c0_48, %c0_49, %c0_50, %c0_51], %99 {strides = array<i32>} : memref<1x16x16x128xf32, #tpu.memory_space<vmem>>, vector<1x16x16x128xf32>,
    return
  }
  func.func @transform_1(%arg0: i32, %arg1: i32) -> (i32, i32) {
    %c0_i32 = arith.constant 0 : i32
    %c0_i32_0 = arith.constant 0 : i32
    %c0_i32_1 = arith.constant 0 : i32
    return %c0_i32, %c0_i32_0 : i32, i32
  }
  func.func @transform_2(%arg0: i32, %arg1: i32) -> (i32, i32) {
    %c0_i32 = arith.constant 0 : i32
    %c0_i32_0 = arith.constant 0 : i32
    %c0_i32_1 = arith.constant 0 : i32
    return %c0_i32, %c0_i32_0 : i32, i32
  }
  func.func @transform_3(%arg0: i32, %arg1: i32) -> (i32, i32) {
    %c0_i32 = arith.constant 0 : i32
    %c0_i32_0 = arith.constant 0 : i32
    %c0_i32_1 = arith.constant 0 : i32
    return %c0_i32, %c0_i32_0 : i32, i32
  }
  func.func @transform_4(%arg0: i32, %arg1: i32) -> (i32, i32) {
    %c0_i32 = arith.constant 0 : i32
    %c0_i32_0 = arith.constant 0 : i32
    %c0_i32_1 = arith.constant 0 : i32
    return %c0_i32, %c0_i32_0 : i32, i32
  }
  func.func @transform_5(%arg0: i32, %arg1: i32) -> (i32, i32) {
    %c0_i32 = arith.constant 0 : i32
    %c0_i32_0 = arith.constant 0 : i32
    %c0_i32_1 = arith.constant 0 : i32
    return %c0_i32, %c0_i32_0 : i32, i32
  }
  func.func @transform_6(%arg0: i32, %arg1: i32) -> (i32, i32) {
    %c0_i32 = arith.constant 0 : i32
    %c0_i32_0 = arith.constant 0 : i32
    %c0_i32_1 = arith.constant 0 : i32
    return %c0_i32, %c0_i32_0 : i32, i32
  }
  func.func @transform_7(%arg0: i32, %arg1: i32) -> (i32, i32, i32, i32) {
    %c0_i32 = arith.constant 0 : i32
    %c0_i32_0 = arith.constant 0 : i32
    %c0_i32_1 = arith.constant 0 : i32
    return %arg0, %arg1, %c0_i32, %c0_i32_0 : i32, i32, i32, i32
  }
}

</mosaic_0001>

<llo_original>
// kernel: tpu_custom_call.1
$region0: #{tpu_custom_call.1}
  #allocation0 [shape = 'u32[]', space=smem, size = 0x4, offset = 0x4, fixed_abs, tag = 'smem constant byte address 0x4 - core index']
  #allocation1 [shape = 'u32[72,128]{1,0:T(1,128)}', space=vmem, size = 0x9000, scoped, tag = 'internal scratch']
  #allocation2 [shape = 'f32[2,20,26,128]{3,2,1,0:T(8,128)}', space=vmem, size = 0xa0000, scoped, tag = 'scratch operand']
  #allocation3 [shape = 'f32[18,24,128]{2,1,0:T(8,128)}', space=vmem, size = 0x36000, scoped, tag = 'scratch operand']
  #allocation4 [shape = 's32[6]{0}', space=sflag, size = 0x18, scoped, tag = 'scratch operand']
  #allocation11 [shape = 's32[]', space=sflag, size = 0x4, offset = 0, fixed_abs, tag = 'sflag constant byte address 0x0 - dummy sync flag']
  #allocation12 [shape = 's32[]', space=sflag, size = 0x4, offset = 0, fixed_abs, tag = 'sflag constant byte address 0x0 - dummy sync flag']
  %s0 = inlined_call_operand.hbm [shape: f32[2,16,16,128], index: 0, kind: input, shape index: {}]
  %s1 = inlined_call_operand.hbm [shape: f32[1152,128], index: 1, kind: input, shape index: {}]
  %s2 = inlined_call_operand.vmem [shape: f32[1,128], index: 2, kind: input, shape index: {}]
  %s3 = inlined_call_operand.vmem [shape: f32[1,128], index: 3, kind: input, shape index: {}]
  %s4 = inlined_call_operand.hbm [shape: f32[1152,128], index: 4, kind: input, shape index: {}]
  %s5 = inlined_call_operand.vmem [shape: f32[1,128], index: 5, kind: input, shape index: {}]
  %s6 = inlined_call_operand.vmem [shape: f32[1,128], index: 6, kind: input, shape index: {}]
  %s7 = inlined_call_operand.hbm [shape: f32[2,16,16,128], index: 7, kind: output, shape index: {}]
  %s8 = sld [smem:[#allocation0]]
  $region81: #{tpu_custom_call.1} parent=0
    _
  %s10 = ssub.s32 1, %s8
  %s11 = scalar_select 0, %s10, %s8
  $region1: #{tpu_custom_call.1} parent=0
    #allocation5 [shape = 'u8[589824]{0}', space=vmem, size = 0x90000, scoped, tag = 'input window, operand 1, single buffered']
    #allocation6 [shape = 's32[2]{0}', space=sflag, size = 0x8, scoped, tag = 'scoped memory for tpu_custom_call.1']
    #allocation7 [shape = 's32[2]{0}', space=sflag, size = 0x8, scoped, tag = 'scoped memory for tpu_custom_call.1']
    #allocation8 [shape = 'u8[589824]{0}', space=vmem, size = 0x90000, scoped, tag = 'input window, operand 4, single buffered']
    #allocation9 [shape = 's32[1]{0}', space=sflag, size = 0x4, scoped, tag = 'scoped memory for tpu_custom_call.1']
    #allocation10 [shape = 'u8[262144]{0}', space=vmem, size = 0x40000, scoped, tag = 'output window, operand 0']
    %12 = vsyncpa [#allocation6], 0
    %13 = vsyncpa [#allocation9], 0
    %14 = vsyncpa [#allocation7], 0
    %s15 = scalar_lea.sflag [#allocation7], 1
    %16 = vsyncpa %s15, 0
    loop: start=0, step=1, limit=4
    $region2: #{tpu_custom_call.1} parent=1 // loop_pre_header
      _
    $region3: #{tpu_custom_call.1} parent=1 // loop_header
      %s18 = sphi 0, %s22
      %p19 = scmp.ge.s32.totalorder %s18, 4
      %s25 = sphi 0, %s37
      %s26 = sphi 0, %s33
      %s27 = sphi 0, %s25
      %s28 = sphi 0, %s26
      %s29 = sphi 0, %s27
      %s30 = sphi 0, %s28
      %s38 = sphi 0, %s38
      %s40 = sphi 0, %s38
      %s41 = sphi 0, %s40
      %s55 = sphi 0, %s41
      %s59 = sphi 0, %s59
      %s61 = sphi 0, %s59
      %s62 = sphi 0, %s61
      %s76 = sphi 0, %s62
      %s80 = sphi 0, %s80
      %s82 = sphi 0, %s80
      %s83 = sphi 0, %s82
      %s97 = sphi 0, %s83
      %s101 = sphi 0, %s101
      %s103 = sphi 0, %s101
      %s104 = sphi 0, %s103
      %s118 = sphi 0, %s104
      %s122 = sphi 0, %s122
      %s124 = sphi 0, %s122
      %s125 = sphi 0, %s124
      %s139 = sphi 0, %s125
      %s143 = sphi 0, %s143
      %s145 = sphi 0, %s143
      %s146 = sphi 0, %s145
      %s160 = sphi 0, %s146
      %s168 = sphi 0, %s170
      %s171 = sphi 0, %s168
      %s172 = sphi 0, %s171
      %s188 = sphi 0, %s172
    $region4: #{tpu_custom_call.1} parent=1 // loop_header_branch
      %21 = sbr.rel (%p19) target = $region8
    $region5: #{tpu_custom_call.1} parent=1 // loop_body
      %s23 = ssub.s32 %s18, 1
      %s24 = ssub.s32 %s18, 2
      %s31 = sadd.s32 1, %s26
      %p32 = scmp.ge.s32.totalorder %s31, 1
      %s33 = scalar_select %p32, 0, %s31
      %s34 = sadd.s32 1, %s25
      %s35 = scalar_select %p32, %s34, %s25
      %p36 = scmp.ge.s32.totalorder %s35, 2
      %s37 = scalar_select %p36, 0, %s35
      %s39 = sadd.s32 %s38, 1
      %p42 = scmp.eq.s32.totalorder %s18, 1
      %p43 = scmp.ne.s32.totalorder %s38, %s40
      %p44 = scmp.eq.s32.totalorder %s18, 0
      %p45 = por %p43, %p44
      %p46 = scmp.ne.s32.totalorder %s38, %s40
      %p47 = scmp.eq.s32.totalorder %s23, 1
      %p48 = por %p46, %p47
      %p49 = scmp.ne.s32.totalorder %s40, %s41
      %p50 = scmp.eq.s32.totalorder %s23, 0
      %p51 = por %p49, %p50
      %p52 = scmp.ne.s32.totalorder %s40, %s41
      %p53 = scmp.eq.s32.totalorder %s24, 1
      %p54 = por %p52, %p53
      %p56 = scmp.ne.s32.totalorder %s41, %s55
      %p57 = scmp.eq.s32.totalorder %s24, 0
      %p58 = por %p56, %p57
      %s60 = sadd.s32 %s59, 1
      %p63 = scmp.eq.s32.totalorder %s18, 1
      %p64 = scmp.ne.s32.totalorder %s59, %s61
      %p65 = scmp.eq.s32.totalorder %s18, 0
      %p66 = por %p64, %p65
      %p67 = scmp.ne.s32.totalorder %s59, %s61
      %p68 = scmp.eq.s32.totalorder %s23, 1
      %p69 = por %p67, %p68
      %p70 = scmp.ne.s32.totalorder %s61, %s62
      %p71 = scmp.eq.s32.totalorder %s23, 0
      %p72 = por %p70, %p71
      %p73 = scmp.ne.s32.totalorder %s61, %s62
      %p74 = scmp.eq.s32.totalorder %s24, 1
      %p75 = por %p73, %p74
      %p77 = scmp.ne.s32.totalorder %s62, %s76
      %p78 = scmp.eq.s32.totalorder %s24, 0
      %p79 = por %p77, %p78
      %s81 = sadd.s32 %s80, 1
      %p84 = scmp.eq.s32.totalorder %s18, 1
      %p85 = scmp.ne.s32.totalorder %s80, %s82
      %p86 = scmp.eq.s32.totalorder %s18, 0
      %p87 = por %p85, %p86
      %p88 = scmp.ne.s32.totalorder %s80, %s82
      %p89 = scmp.eq.s32.totalorder %s23, 1
      %p90 = por %p88, %p89
      %p91 = scmp.ne.s32.totalorder %s82, %s83
      %p92 = scmp.eq.s32.totalorder %s23, 0
      %p93 = por %p91, %p92
      %p94 = scmp.ne.s32.totalorder %s82, %s83
      %p95 = scmp.eq.s32.totalorder %s24, 1
      %p96 = por %p94, %p95
      %p98 = scmp.ne.s32.totalorder %s83, %s97
      %p99 = scmp.eq.s32.totalorder %s24, 0
      %p100 = por %p98, %p99
      %s102 = sadd.s32 %s101, 1
      %p105 = scmp.eq.s32.totalorder %s18, 1
      %p106 = scmp.ne.s32.totalorder %s101, %s103
      %p107 = scmp.eq.s32.totalorder %s18, 0
      %p108 = por %p106, %p107
      %p109 = scmp.ne.s32.totalorder %s101, %s103
      %p110 = scmp.eq.s32.totalorder %s23, 1
      %p111 = por %p109, %p110
      %p112 = scmp.ne.s32.totalorder %s103, %s104
      %p113 = scmp.eq.s32.totalorder %s23, 0
      %p114 = por %p112, %p113
      %p115 = scmp.ne.s32.totalorder %s103, %s104
      %p116 = scmp.eq.s32.totalorder %s24, 1
      %p117 = por %p115, %p116
      %p119 = scmp.ne.s32.totalorder %s104, %s118
      %p120 = scmp.eq.s32.totalorder %s24, 0
      %p121 = por %p119, %p120
      %s123 = sadd.s32 %s122, 1
      %p126 = scmp.eq.s32.totalorder %s18, 1
      %p127 = scmp.ne.s32.totalorder %s122, %s124
      %p128 = scmp.eq.s32.totalorder %s18, 0
      %p129 = por %p127, %p128
      %p130 = scmp.ne.s32.totalorder %s122, %s124
      %p131 = scmp.eq.s32.totalorder %s23, 1
      %p132 = por %p130, %p131
      %p133 = scmp.ne.s32.totalorder %s124, %s125
      %p134 = scmp.eq.s32.totalorder %s23, 0
      %p135 = por %p133, %p134
      %p136 = scmp.ne.s32.totalorder %s124, %s125
      %p137 = scmp.eq.s32.totalorder %s24, 1
      %p138 = por %p136, %p137
      %p140 = scmp.ne.s32.totalorder %s125, %s139
      %p141 = scmp.eq.s32.totalorder %s24, 0
      %p142 = por %p140, %p141
      %s144 = sadd.s32 %s143, 1
      %p147 = scmp.eq.s32.totalorder %s18, 1
      %p148 = scmp.ne.s32.totalorder %s143, %s145
      %p149 = scmp.eq.s32.totalorder %s18, 0
      %p150 = por %p148, %p149
      %p151 = scmp.ne.s32.totalorder %s143, %s145
      %p152 = scmp.eq.s32.totalorder %s23, 1
      %p153 = por %p151, %p152
      %p154 = scmp.ne.s32.totalorder %s145, %s146
      %p155 = scmp.eq.s32.totalorder %s23, 0
      %p156 = por %p154, %p155
      %p157 = scmp.ne.s32.totalorder %s145, %s146
      %p158 = scmp.eq.s32.totalorder %s24, 1
      %p159 = por %p157, %p158
      %p161 = scmp.ne.s32.totalorder %s146, %s160
      %p162 = scmp.eq.s32.totalorder %s24, 0
      %p163 = por %p161, %p162
      %s164 = ssub.s32 %s25, %s37
      %s165 = ssub.s32 %s26, %s33
      %s166 = sor.u32 %s164, %s165
      %p167 = scmp.eq.s32.totalorder %s166, 0
      %s169 = sadd.s32 %s168, 1
      %s170 = scalar_select %p167, %s168, %s169
      %p173 = pneg %p167
      %p174 = scmp.eq.s32.totalorder %s18, 1
      %p175 = por %p173, %p174
      %p176 = scmp.ne.s32.totalorder %s168, %s171
      %p177 = scmp.eq.s32.totalorder %s18, 0
      %p178 = por %p176, %p177
      %p179 = scmp.ne.s32.totalorder %s168, %s171
      %p180 = scmp.eq.s32.totalorder %s23, 1
      %p181 = por %p179, %p180
      %p182 = scmp.ne.s32.totalorder %s171, %s172
      %p183 = scmp.eq.s32.totalorder %s23, 0
      %p184 = por %p182, %p183
      %p185 = scmp.ne.s32.totalorder %s171, %s172
      %p186 = scmp.eq.s32.totalorder %s24, 1
      %p187 = por %p185, %p186
      %p189 = scmp.ne.s32.totalorder %s172, %s188
      %p190 = scmp.eq.s32.totalorder %s24, 0
      %p191 = por %p189, %p190
      %p192 = scmp.le.s32.totalorder 1, %s18
      %p193 = scmp.lt.s32.totalorder %s18, 3
      %p194 = pnand %p192, %p193
      %p195 = pneg %p194
      // Predicated region
      $region9: #{tpu_custom_call.1} parent=5 // pred_check
        _
      $region10: #{tpu_custom_call.1} parent=5 // pred_check_branch
        %197 = sbr.rel (%p194) target = $region12
      $region11: #{tpu_custom_call.1} parent=5 // pred_region
        %s198 = ssub.s32 %s18, 1
        // Predicated region
        $region13: #{tpu_custom_call.1} parent=11 // pred_check
          %p199 = pneg %p51
        $region14: #{tpu_custom_call.1} parent=11 // pred_check_branch
          %201 = sbr.rel (%p199) target = $region16
        $region15: #{tpu_custom_call.1} parent=11 // pred_region
          %203 = vsyncadd [#allocation6], 0
          %s204 = sshll.u32 %s1, 4
          %s205 = int_to_ptr.hbm [resolvable:$true] %s204
          %s206 = sshll.u32 [#allocation5], 4
          %s207 = int_to_ptr.vmem [resolvable:$true] %s206
          %212 = dma.hbm_to_vmem [thread:$0]  %s205, 18432, %s207, [#allocation6], 128, 128, 8
        $region16: #{tpu_custom_call.1} parent=11 // pred_fallthru
          _
        // Predicated region
        $region17: #{tpu_custom_call.1} parent=11 // pred_check
          %p213 = pneg %p72
        $region18: #{tpu_custom_call.1} parent=11 // pred_check_branch
          %215 = sbr.rel (%p213) target = $region20
        $region19: #{tpu_custom_call.1} parent=11 // pred_region
          _
        $region20: #{tpu_custom_call.1} parent=11 // pred_fallthru
          _
        // Predicated region
        $region21: #{tpu_custom_call.1} parent=11 // pred_check
          %p216 = pneg %p93
        $region22: #{tpu_custom_call.1} parent=11 // pred_check_branch
          %218 = sbr.rel (%p216) target = $region24
        $region23: #{tpu_custom_call.1} parent=11 // pred_region
          _
        $region24: #{tpu_custom_call.1} parent=11 // pred_fallthru
          _
        // Predicated region
        $region25: #{tpu_custom_call.1} parent=11 // pred_check
          %p219 = pneg %p114
        $region26: #{tpu_custom_call.1} parent=11 // pred_check_branch
          %221 = sbr.rel (%p219) target = $region28
        $region27: #{tpu_custom_call.1} parent=11 // pred_region
          %223 = vsyncadd [#allocation9], 0
          %s224 = sshll.u32 %s4, 4
          %s225 = int_to_ptr.hbm [resolvable:$true] %s224
          %s226 = sshll.u32 [#allocation8], 4
          %s227 = int_to_ptr.vmem [resolvable:$true] %s226
          %232 = dma.hbm_to_vmem [thread:$0]  %s225, 18432, %s227, [#allocation9], 128, 128, 8
        $region28: #{tpu_custom_call.1} parent=11 // pred_fallthru
          _
        // Predicated region
        $region29: #{tpu_custom_call.1} parent=11 // pred_check
          %p233 = pneg %p135
        $region30: #{tpu_custom_call.1} parent=11 // pred_check_branch
          %235 = sbr.rel (%p233) target = $region32
        $region31: #{tpu_custom_call.1} parent=11 // pred_region
          _
        $region32: #{tpu_custom_call.1} parent=11 // pred_fallthru
          _
        // Predicated region
        $region33: #{tpu_custom_call.1} parent=11 // pred_check
          %p236 = pneg %p156
        $region34: #{tpu_custom_call.1} parent=11 // pred_check_branch
          %238 = sbr.rel (%p236) target = $region36
        $region35: #{tpu_custom_call.1} parent=11 // pred_region
          _
        $region36: #{tpu_custom_call.1} parent=11 // pred_fallthru
          _
      $region12: #{tpu_custom_call.1} parent=5 // pred_fallthru
        _
      %p239 = scmp.lt.s32.totalorder %s18, 2
      // Predicated region
      $region37: #{tpu_custom_call.1} parent=5 // pred_check
        %p240 = pneg %p239
      $region38: #{tpu_custom_call.1} parent=5 // pred_check_branch
        %242 = sbr.rel (%p240) target = $region40
      $region39: #{tpu_custom_call.1} parent=5 // pred_region
        _
      $region40: #{tpu_custom_call.1} parent=5 // pred_fallthru
        _
      %p243 = scmp.le.s32.totalorder 1, %s18
      %p244 = scmp.lt.s32.totalorder %s18, 3
      %p245 = pnand %p243, %p244
      %p246 = pneg %p245
      // Predicated region
      $region41: #{tpu_custom_call.1} parent=5 // pred_check
        _
      $region42: #{tpu_custom_call.1} parent=5 // pred_check_branch
        %248 = sbr.rel (%p245) target = $region44
      $region43: #{tpu_custom_call.1} parent=5 // pred_region
        %s249 = ssub.s32 %s18, 1
        // Predicated region
        $region45: #{tpu_custom_call.1} parent=43 // pred_check
          %p250 = pneg %p51
        $region46: #{tpu_custom_call.1} parent=43 // pred_check_branch
          %252 = sbr.rel (%p250) target = $region48
        $region47: #{tpu_custom_call.1} parent=43 // pred_region
          %254 = dma.done [#allocation6], 18432
        $region48: #{tpu_custom_call.1} parent=43 // pred_fallthru
          _
        // Predicated region
        $region49: #{tpu_custom_call.1} parent=43 // pred_check
          %p255 = pneg %p114
        $region50: #{tpu_custom_call.1} parent=43 // pred_check_branch
          %257 = sbr.rel (%p255) target = $region52
        $region51: #{tpu_custom_call.1} parent=43 // pred_region
          %259 = dma.done [#allocation9], 18432
        $region52: #{tpu_custom_call.1} parent=43 // pred_fallthru
          _
        %p260 = pneg %p51
        %p261 = pneg %p48
        %p262 = pneg %p72
        %p263 = pneg %p69
        %p264 = pneg %p93
        %p265 = pneg %p90
        %p266 = pneg %p114
        %p267 = pneg %p111
        %p268 = pneg %p135
        %p269 = pneg %p132
        %p270 = pneg %p156
        %p271 = pneg %p153
        %p272 = pneg %p184
        %p273 = pneg %p181
        %s274 = sand.u32 %s171, 1
        %s275 = scalar_lea.sflag [#allocation7], %s274
        %s276 = sand.u32 %s171, 1
        %s277 = smul.addr %s276, 256
        %s278 = scalar_lea.vmem [#allocation10], %s277
        %s279 = smul.u32 16, %s28
        %p280 = scmp.lt.s32.totalorder %s28, 0
        %s281 = ssub.s32 0, %s28
        %s282 = scalar_select %p280, %s281, %s28
        %s283 = sand.u32 %s282, 1
        %s284 = ssub.s32 0, %s283
        %s285 = scalar_select %p280, %s284, %s283
        %p286 = scmp.ne.s32.totalorder %s285, 0
        %p287 = scmp.lt.s32.totalorder %s285, 0
        %p288 = pnand %p287, %p286
        %p289 = pneg %p288
        %s290 = sadd.s32 %s285, 2
        %s291 = scalar_select %p289, %s290, %s285
        %p292 = scmp.eq.s32.totalorder %s28, 0
        // Predicated region
        $region53: #{tpu_custom_call.1} parent=43 // pred_check
          %p293 = pneg %p292
        $region54: #{tpu_custom_call.1} parent=43 // pred_check_branch
          %295 = sbr.rel (%p293) target = $region56
        $region55: #{tpu_custom_call.1} parent=43 // pred_region
          %296 = vst [vmem:[#allocation2] sm:$0x3] 0.0
          %297 = vst [vmem:[#allocation2 + $0x20] sm:$0x3] 0.0
          %298 = vst [vmem:[#allocation2 + $0x40] sm:$0x3] 0.0
          %299 = vst [vmem:[#allocation2 + $0x60] sm:$0x3] 0.0
          %300 = vst [vmem:[#allocation2 + $0x80] sm:$0x3] 0.0
          %301 = vst [vmem:[#allocation2 + $0xa0] sm:$0x3] 0.0
          %302 = vst [vmem:[#allocation2 + $0xc0] sm:$0x3] 0.0
          %303 = vst [vmem:[#allocation2 + $0xe0] sm:$0x3] 0.0
          %304 = vst [vmem:[#allocation2 + $0x100] sm:$0x3] 0.0
          %305 = vst [vmem:[#allocation2 + $0x120] sm:$0x3] 0.0
          %306 = vst [vmem:[#allocation2 + $0x140] sm:$0x3] 0.0
          %307 = vst [vmem:[#allocation2 + $0x160] sm:$0x3] 0.0
          %308 = vst [vmem:[#allocation2 + $0x180] sm:$0x3] 0.0
          %309 = vst [vmem:[#allocation2 + $0x1a0] sm:$0x3] 0.0
          %310 = vst [vmem:[#allocation2 + $0x1c0] sm:$0x3] 0.0
          %311 = vst [vmem:[#allocation2 + $0x1e0] sm:$0x3] 0.0
          %312 = vst [vmem:[#allocation2 + $0x200] sm:$0x3] 0.0
          %313 = vst [vmem:[#allocation2 + $0x220] sm:$0x3] 0.0
          %314 = vst [vmem:[#allocation2 + $0x240] sm:$0x3] 0.0
          %315 = vst [vmem:[#allocation2 + $0x260] sm:$0x3] 0.0
          %316 = vst [vmem:[#allocation2 + $0x280] sm:$0x3] 0.0
          %317 = vst [vmem:[#allocation2 + $0x2a0] sm:$0x3] 0.0
          %318 = vst [vmem:[#allocation2 + $0x2c0] sm:$0x3] 0.0
          %319 = vst [vmem:[#allocation2 + $0x2e0] sm:$0x3] 0.0
          %320 = vst [vmem:[#allocation2 + $0x300] sm:$0x3] 0.0
          %321 = vst [vmem:[#allocation2 + $0x320] sm:$0x3] 0.0
          %322 = vst [vmem:[#allocation2 + $0x340] sm:$0x3] 0.0
          %323 = vst [vmem:[#allocation2 + $0x360] sm:$0x3] 0.0
          %324 = vst [vmem:[#allocation2 + $0x380] sm:$0x3] 0.0
          %325 = vst [vmem:[#allocation2 + $0x3a0] sm:$0x3] 0.0
          %326 = vst [vmem:[#allocation2 + $0x3c0] sm:$0x3] 0.0
          %327 = vst [vmem:[#allocation2 + $0x3e0] sm:$0x3] 0.0
          %328 = vst [vmem:[#allocation2 + $0x400] sm:$0x3] 0.0
          %329 = vst [vmem:[#allocation2 + $0x420] sm:$0x3] 0.0
          %330 = vst [vmem:[#allocation2 + $0x440] sm:$0x3] 0.0
          %331 = vst [vmem:[#allocation2 + $0x460] sm:$0x3] 0.0
          %332 = vst [vmem:[#allocation2 + $0x480] sm:$0x3] 0.0
          %333 = vst [vmem:[#allocation2 + $0x4a0] sm:$0x3] 0.0
          %334 = vst [vmem:[#allocation2 + $0x4c0] sm:$0x3] 0.0
          %335 = vst [vmem:[#allocation2 + $0x4e0] sm:$0x3] 0.0
          %336 = vst [vmem:[#allocation2 + $0x12] sm:$0xff] 0.0
          %337 = vst [vmem:[#allocation2 + $0x32] sm:$0xff] 0.0
          %338 = vst [vmem:[#allocation2 + $0x52] sm:$0xff] 0.0
          %339 = vst [vmem:[#allocation2 + $0x72] sm:$0xff] 0.0
          %340 = vst [vmem:[#allocation2 + $0x92] sm:$0xff] 0.0
          %341 = vst [vmem:[#allocation2 + $0xb2] sm:$0xff] 0.0
          %342 = vst [vmem:[#allocation2 + $0xd2] sm:$0xff] 0.0
          %343 = vst [vmem:[#allocation2 + $0xf2] sm:$0xff] 0.0
          %344 = vst [vmem:[#allocation2 + $0x112] sm:$0xff] 0.0
          %345 = vst [vmem:[#allocation2 + $0x132] sm:$0xff] 0.0
          %346 = vst [vmem:[#allocation2 + $0x152] sm:$0xff] 0.0
          %347 = vst [vmem:[#allocation2 + $0x172] sm:$0xff] 0.0
          %348 = vst [vmem:[#allocation2 + $0x192] sm:$0xff] 0.0
          %349 = vst [vmem:[#allocation2 + $0x1b2] sm:$0xff] 0.0
          %350 = vst [vmem:[#allocation2 + $0x1d2] sm:$0xff] 0.0
          %351 = vst [vmem:[#allocation2 + $0x1f2] sm:$0xff] 0.0
          %352 = vst [vmem:[#allocation2 + $0x212] sm:$0xff] 0.0
          %353 = vst [vmem:[#allocation2 + $0x232] sm:$0xff] 0.0
          %354 = vst [vmem:[#allocation2 + $0x252] sm:$0xff] 0.0
          %355 = vst [vmem:[#allocation2 + $0x272] sm:$0xff] 0.0
          %356 = vst [vmem:[#allocation2 + $0x292] sm:$0xff] 0.0
          %357 = vst [vmem:[#allocation2 + $0x2b2] sm:$0xff] 0.0
          %358 = vst [vmem:[#allocation2 + $0x2d2] sm:$0xff] 0.0
          %359 = vst [vmem:[#allocation2 + $0x2f2] sm:$0xff] 0.0
          %360 = vst [vmem:[#allocation2 + $0x312] sm:$0xff] 0.0
          %361 = vst [vmem:[#allocation2 + $0x332] sm:$0xff] 0.0
          %362 = vst [vmem:[#allocation2 + $0x352] sm:$0xff] 0.0
          %363 = vst [vmem:[#allocation2 + $0x372] sm:$0xff] 0.0
          %364 = vst [vmem:[#allocation2 + $0x392] sm:$0xff] 0.0
          %365 = vst [vmem:[#allocation2 + $0x3b2] sm:$0xff] 0.0
          %366 = vst [vmem:[#allocation2 + $0x3d2] sm:$0xff] 0.0
          %367 = vst [vmem:[#allocation2 + $0x3f2] sm:$0xff] 0.0
          %368 = vst [vmem:[#allocation2 + $0x412] sm:$0xff] 0.0
          %369 = vst [vmem:[#allocation2 + $0x432] sm:$0xff] 0.0
          %370 = vst [vmem:[#allocation2 + $0x452] sm:$0xff] 0.0
          %371 = vst [vmem:[#allocation2 + $0x472] sm:$0xff] 0.0
          %372 = vst [vmem:[#allocation2 + $0x492] sm:$0xff] 0.0
          %373 = vst [vmem:[#allocation2 + $0x4b2] sm:$0xff] 0.0
          %374 = vst [vmem:[#allocation2 + $0x4d2] sm:$0xff] 0.0
          %375 = vst [vmem:[#allocation2 + $0x4f2] sm:$0xff] 0.0
          %376 = vst [vmem:[#allocation2] sm:$0xff] 0.0
          %377 = vst [vmem:[#allocation2 + $0x8] sm:$0xff] 0.0
          %378 = vst [vmem:[#allocation2 + $0x10] sm:$0xff] 0.0
          %379 = vst [vmem:[#allocation2 + $0x18] sm:$0x3] 0.0
          %380 = vst [vmem:[#allocation2 + $0x20] sm:$0xff] 0.0
          %381 = vst [vmem:[#allocation2 + $0x28] sm:$0xff] 0.0
          %382 = vst [vmem:[#allocation2 + $0x30] sm:$0xff] 0.0
          %383 = vst [vmem:[#allocation2 + $0x38] sm:$0x3] 0.0
          %s384 = smul.u32 %s28, 16
          %s385 = smul.u32 %s384, 16
          %s386 = smul.u32 %s27, 256
          %s387 = sadd.s32 %s385, %s386
          %s388 = scalar_lea.hbm %s0, %s387
          %s389 = smul.u32 %s291, 640
          %s390 = sadd.s32 66, %s389
          %s391 = scalar_lea.vmem [#allocation2], %s390
          %s392 = smul.u32 %s291, 3
          %s393 = scalar_lea.sflag [#allocation4], %s392
          %s394 = sshll.u32 %s388, 4
          %s395 = int_to_ptr.hbm [resolvable:$true] %s394
          %s396 = sshll.u32 %s391, 4
          %s397 = int_to_ptr.vmem [resolvable:$true] %s396
          %401 = dma.hbm_to_vmem [thread:$0]  %s395, 4096, %s397, %s393, 256, 512, 16
          %p402 = scmp.gt.s32.totalorder %s28, 0
          // Predicated region
          $region57: #{tpu_custom_call.1} parent=55 // pred_check
            %p403 = pneg %p402
          $region58: #{tpu_custom_call.1} parent=55 // pred_check_branch
            %405 = sbr.rel (%p403) target = $region60
          $region59: #{tpu_custom_call.1} parent=55 // pred_region
            %s406 = ssub.s32 %s384, 2
            %s407 = smul.u32 %s406, 16
            %s408 = sadd.s32 %s407, %s386
            %s409 = scalar_lea.hbm %s0, %s408
            %s410 = sadd.s32 2, %s389
            %s411 = scalar_lea.vmem [#allocation2], %s410
            %s412 = sadd.s32 1, %s392
            %s413 = scalar_lea.sflag [#allocation4], %s412
            %s414 = sshll.u32 %s409, 4
            %s415 = int_to_ptr.hbm [resolvable:$true] %s414
            %s416 = sshll.u32 %s411, 4
            %s417 = int_to_ptr.vmem [resolvable:$true] %s416
            %421 = dma.hbm_to_vmem [thread:$0]  %s415, 512, %s417, %s413, 256, 512, 16
          $region60: #{tpu_custom_call.1} parent=55 // pred_fallthru
            _
        $region56: #{tpu_custom_call.1} parent=43 // pred_fallthru
          _
        %s422 = smul.u32 %s291, 3
        %s423 = scalar_lea.sflag [#allocation4], %s422
        %s424 = smul.u32 16, 16
        %s425 = smul.u32 %s424, 1
        %s426 = sshll.u32 %s425, 4
        %427 = dma.done %s423, %s426
        // Predicated region
        $region61: #{tpu_custom_call.1} parent=43 // pred_check
          %p428 = pneg %p292
        $region62: #{tpu_custom_call.1} parent=43 // pred_check_branch
          %430 = sbr.rel (%p428) target = $region64
        $region63: #{tpu_custom_call.1} parent=43 // pred_region
          %s431 = scalar_lea.vmem [#allocation2], 576
          %432 = vst [vmem:[%s431] sm:$0xff] 0.0
          %433 = vst [vmem:[%s431 + $0x8] sm:$0xff] 0.0
          %434 = vst [vmem:[%s431 + $0x10] sm:$0xff] 0.0
          %435 = vst [vmem:[%s431 + $0x18] sm:$0x3] 0.0
          %436 = vst [vmem:[%s431 + $0x20] sm:$0xff] 0.0
          %437 = vst [vmem:[%s431 + $0x28] sm:$0xff] 0.0
          %438 = vst [vmem:[%s431 + $0x30] sm:$0xff] 0.0
          %439 = vst [vmem:[%s431 + $0x38] sm:$0x3] 0.0
        $region64: #{tpu_custom_call.1} parent=43 // pred_fallthru
          _
        %s440 = smul.u32 %s291, 640
        %s441 = scalar_lea.vmem [#allocation2], %s440
        %v442 = vld [vmem:[%s441] sm:$0xff]
        %v443 = vld [vmem:[%s441 + $0x8] sm:$0xff]
        %v444 = vld [vmem:[%s441 + $0x10] sm:$0xff]
        %v445 = vld [vmem:[%s441 + $0x18] sm:$0x3]
        %v446 = vld [vmem:[%s441 + $0x20] sm:$0xff]
        %v447 = vld [vmem:[%s441 + $0x28] sm:$0xff]
        %v448 = vld [vmem:[%s441 + $0x30] sm:$0xff]
        %v449 = vld [vmem:[%s441 + $0x38] sm:$0x3]
        %v450 = vld [vmem:[%s441 + $0x40] sm:$0xff]
        %v451 = vld [vmem:[%s441 + $0x48] sm:$0xff]
        %v452 = vld [vmem:[%s441 + $0x50] sm:$0xff]
        %v453 = vld [vmem:[%s441 + $0x58] sm:$0x3]
        %v454 = vld [vmem:[%s441 + $0x60] sm:$0xff]
        %v455 = vld [vmem:[%s441 + $0x68] sm:$0xff]
        %v456 = vld [vmem:[%s441 + $0x70] sm:$0xff]
        %v457 = vld [vmem:[%s441 + $0x78] sm:$0x3]
        %v458 = vld [vmem:[%s441 + $0x80] sm:$0xff]
        %v459 = vld [vmem:[%s441 + $0x88] sm:$0xff]
        %v460 = vld [vmem:[%s441 + $0x90] sm:$0xff]
        %v461 = vld [vmem:[%s441 + $0x98] sm:$0x3]
        %v462 = vld [vmem:[%s441 + $0xa0] sm:$0xff]
        %v463 = vld [vmem:[%s441 + $0xa8] sm:$0xff]
        %v464 = vld [vmem:[%s441 + $0xb0] sm:$0xff]
        %v465 = vld [vmem:[%s441 + $0xb8] sm:$0x3]
        %v466 = vld [vmem:[%s441 + $0xc0] sm:$0xff]
        %v467 = vld [vmem:[%s441 + $0xc8] sm:$0xff]
        %v468 = vld [vmem:[%s441 + $0xd0] sm:$0xff]
        %v469 = vld [vmem:[%s441 + $0xd8] sm:$0x3]
        %v470 = vld [vmem:[%s441 + $0xe0] sm:$0xff]
        %v471 = vld [vmem:[%s441 + $0xe8] sm:$0xff]
        %v472 = vld [vmem:[%s441 + $0xf0] sm:$0xff]
        %v473 = vld [vmem:[%s441 + $0xf8] sm:$0x3]
        %v474 = vld [vmem:[%s441 + $0x100] sm:$0xff]
        %v475 = vld [vmem:[%s441 + $0x108] sm:$0xff]
        %v476 = vld [vmem:[%s441 + $0x110] sm:$0xff]
        %v477 = vld [vmem:[%s441 + $0x118] sm:$0x3]
        %v478 = vld [vmem:[%s441 + $0x120] sm:$0xff]
        %v479 = vld [vmem:[%s441 + $0x128] sm:$0xff]
        %v480 = vld [vmem:[%s441 + $0x130] sm:$0xff]
        %v481 = vld [vmem:[%s441 + $0x138] sm:$0x3]
        %v482 = vld [vmem:[%s441 + $0x140] sm:$0xff]
        %v483 = vld [vmem:[%s441 + $0x148] sm:$0xff]
        %v484 = vld [vmem:[%s441 + $0x150] sm:$0xff]
        %v485 = vld [vmem:[%s441 + $0x158] sm:$0x3]
        %v486 = vld [vmem:[%s441 + $0x160] sm:$0xff]
        %v487 = vld [vmem:[%s441 + $0x168] sm:$0xff]
        %v488 = vld [vmem:[%s441 + $0x170] sm:$0xff]
        %v489 = vld [vmem:[%s441 + $0x178] sm:$0x3]
        %v490 = vld [vmem:[%s441 + $0x180] sm:$0xff]
        %v491 = vld [vmem:[%s441 + $0x188] sm:$0xff]
        %v492 = vld [vmem:[%s441 + $0x190] sm:$0xff]
        %v493 = vld [vmem:[%s441 + $0x198] sm:$0x3]
        %v494 = vld [vmem:[%s441 + $0x1a0] sm:$0xff]
        %v495 = vld [vmem:[%s441 + $0x1a8] sm:$0xff]
        %v496 = vld [vmem:[%s441 + $0x1b0] sm:$0xff]
        %v497 = vld [vmem:[%s441 + $0x1b8] sm:$0x3]
        %v498 = vld [vmem:[%s441 + $0x1c0] sm:$0xff]
        %v499 = vld [vmem:[%s441 + $0x1c8] sm:$0xff]
        %v500 = vld [vmem:[%s441 + $0x1d0] sm:$0xff]
        %v501 = vld [vmem:[%s441 + $0x1d8] sm:$0x3]
        %v502 = vld [vmem:[%s441 + $0x1e0] sm:$0xff]
        %v503 = vld [vmem:[%s441 + $0x1e8] sm:$0xff]
        %v504 = vld [vmem:[%s441 + $0x1f0] sm:$0xff]
        %v505 = vld [vmem:[%s441 + $0x1f8] sm:$0x3]
        %v506 = vld [vmem:[%s441 + $0x200] sm:$0xff]
        %v507 = vld [vmem:[%s441 + $0x208] sm:$0xff]
        %v508 = vld [vmem:[%s441 + $0x210] sm:$0xff]
        %v509 = vld [vmem:[%s441 + $0x218] sm:$0x3]
        %v510 = vld [vmem:[%s441 + $0x220] sm:$0xff]
        %v511 = vld [vmem:[%s441 + $0x228] sm:$0xff]
        %v512 = vld [vmem:[%s441 + $0x230] sm:$0xff]
        %v513 = vld [vmem:[%s441 + $0x238] sm:$0x3]
        %v514 = vld [vmem:[%s441 + $0x240] sm:$0xff]
        %v515 = vld [vmem:[%s441 + $0x248] sm:$0xff]
        %v516 = vld [vmem:[%s441 + $0x250] sm:$0xff]
        %v517 = vld [vmem:[%s441 + $0x258] sm:$0x3]
        %v518 = vld [vmem:[%s441 + $0x260] sm:$0xff]
        %v519 = vld [vmem:[%s441 + $0x268] sm:$0xff]
        %v520 = vld [vmem:[%s441 + $0x270] sm:$0xff]
        %v521 = vld [vmem:[%s441 + $0x278] sm:$0x3]
        %vm594 = vcmask 1046528
        %v595 = vrot.slane %v442, 1
        %v596 = vrot.slane %v443, 1
        %v597 = vsel %vm594, %v595, %v596
        %v598 = vrot.slane %v444, 1
        %v599 = vsel %vm594, %v596, %v598
        %v600 = vrot.slane %v445, 1
        %v601 = vsel %vm594, %v598, %v600
        %v602 = vrot.slane %v446, 1
        %v603 = vrot.slane %v447, 1
        %v604 = vsel %vm594, %v602, %v603
        %v605 = vrot.slane %v448, 1
        %v606 = vsel %vm594, %v603, %v605
        %v607 = vrot.slane %v449, 1
        %v608 = vsel %vm594, %v605, %v607
        %v609 = vrot.slane %v450, 1
        %v610 = vrot.slane %v451, 1
        %v611 = vsel %vm594, %v609, %v610
        %v612 = vrot.slane %v452, 1
        %v613 = vsel %vm594, %v610, %v612
        %v614 = vrot.slane %v453, 1
        %v615 = vsel %vm594, %v612, %v614
        %v616 = vrot.slane %v454, 1
        %v617 = vrot.slane %v455, 1
        %v618 = vsel %vm594, %v616, %v617
        %v619 = vrot.slane %v456, 1
        %v620 = vsel %vm594, %v617, %v619
        %v621 = vrot.slane %v457, 1
        %v622 = vsel %vm594, %v619, %v621
        %v623 = vrot.slane %v458, 1
        %v624 = vrot.slane %v459, 1
        %v625 = vsel %vm594, %v623, %v624
        %v626 = vrot.slane %v460, 1
        %v627 = vsel %vm594, %v624, %v626
        %v628 = vrot.slane %v461, 1
        %v629 = vsel %vm594, %v626, %v628
        %v630 = vrot.slane %v462, 1
        %v631 = vrot.slane %v463, 1
        %v632 = vsel %vm594, %v630, %v631
        %v633 = vrot.slane %v464, 1
        %v634 = vsel %vm594, %v631, %v633
        %v635 = vrot.slane %v465, 1
        %v636 = vsel %vm594, %v633, %v635
        %v637 = vrot.slane %v466, 1
        %v638 = vrot.slane %v467, 1
        %v639 = vsel %vm594, %v637, %v638
        %v640 = vrot.slane %v468, 1
        %v641 = vsel %vm594, %v638, %v640
        %v642 = vrot.slane %v469, 1
        %v643 = vsel %vm594, %v640, %v642
        %v644 = vrot.slane %v470, 1
        %v645 = vrot.slane %v471, 1
        %v646 = vsel %vm594, %v644, %v645
        %v647 = vrot.slane %v472, 1
        %v648 = vsel %vm594, %v645, %v647
        %v649 = vrot.slane %v473, 1
        %v650 = vsel %vm594, %v647, %v649
        %v651 = vrot.slane %v474, 1
        %v652 = vrot.slane %v475, 1
        %v653 = vsel %vm594, %v651, %v652
        %v654 = vrot.slane %v476, 1
        %v655 = vsel %vm594, %v652, %v654
        %v656 = vrot.slane %v477, 1
        %v657 = vsel %vm594, %v654, %v656
        %v658 = vrot.slane %v478, 1
        %v659 = vrot.slane %v479, 1
        %v660 = vsel %vm594, %v658, %v659
        %v661 = vrot.slane %v480, 1
        %v662 = vsel %vm594, %v659, %v661
        %v663 = vrot.slane %v481, 1
        %v664 = vsel %vm594, %v661, %v663
        %v665 = vrot.slane %v482, 1
        %v666 = vrot.slane %v483, 1
        %v667 = vsel %vm594, %v665, %v666
        %v668 = vrot.slane %v484, 1
        %v669 = vsel %vm594, %v666, %v668
        %v670 = vrot.slane %v485, 1
        %v671 = vsel %vm594, %v668, %v670
        %v672 = vrot.slane %v486, 1
        %v673 = vrot.slane %v487, 1
        %v674 = vsel %vm594, %v672, %v673
        %v675 = vrot.slane %v488, 1
        %v676 = vsel %vm594, %v673, %v675
        %v677 = vrot.slane %v489, 1
        %v678 = vsel %vm594, %v675, %v677
        %v679 = vrot.slane %v490, 1
        %v680 = vrot.slane %v491, 1
        %v681 = vsel %vm594, %v679, %v680
        %v682 = vrot.slane %v492, 1
        %v683 = vsel %vm594, %v680, %v682
        %v684 = vrot.slane %v493, 1
        %v685 = vsel %vm594, %v682, %v684
        %v686 = vrot.slane %v494, 1
        %v687 = vrot.slane %v495, 1
        %v688 = vsel %vm594, %v686, %v687
        %v689 = vrot.slane %v496, 1
        %v690 = vsel %vm594, %v687, %v689
        %v691 = vrot.slane %v497, 1
        %v692 = vsel %vm594, %v689, %v691
        %v693 = vrot.slane %v498, 1
        %v694 = vrot.slane %v499, 1
        %v695 = vsel %vm594, %v693, %v694
        %v696 = vrot.slane %v500, 1
        %v697 = vsel %vm594, %v694, %v696
        %v698 = vrot.slane %v501, 1
        %v699 = vsel %vm594, %v696, %v698
        %v700 = vrot.slane %v502, 1
        %v701 = vrot.slane %v503, 1
        %v702 = vsel %vm594, %v700, %v701
        %v703 = vrot.slane %v504, 1
        %v704 = vsel %vm594, %v701, %v703
        %v705 = vrot.slane %v505, 1
        %v706 = vsel %vm594, %v703, %v705
        %v707 = vrot.slane %v506, 1
        %v708 = vrot.slane %v507, 1
        %v709 = vsel %vm594, %v707, %v708
        %v710 = vrot.slane %v508, 1
        %v711 = vsel %vm594, %v708, %v710
        %v712 = vrot.slane %v509, 1
        %v713 = vsel %vm594, %v710, %v712
        %v714 = vrot.slane %v510, 1
        %v715 = vrot.slane %v511, 1
        %v716 = vsel %vm594, %v714, %v715
        %v717 = vrot.slane %v512, 1
        %v718 = vsel %vm594, %v715, %v717
        %v719 = vrot.slane %v513, 1
        %v720 = vsel %vm594, %v717, %v719
        %vm775 = vcmask 1045504
        %v776 = vrot.slane %v442, 2
        %v777 = vrot.slane %v443, 2
        %v778 = vsel %vm775, %v776, %v777
        %v779 = vrot.slane %v444, 2
        %v780 = vsel %vm775, %v777, %v779
        %v781 = vrot.slane %v445, 2
        %v782 = vsel %vm775, %v779, %v781
        %v783 = vrot.slane %v446, 2
        %v784 = vrot.slane %v447, 2
        %v785 = vsel %vm775, %v783, %v784
        %v786 = vrot.slane %v448, 2
        %v787 = vsel %vm775, %v784, %v786
        %v788 = vrot.slane %v449, 2
        %v789 = vsel %vm775, %v786, %v788
        %v790 = vrot.slane %v450, 2
        %v791 = vrot.slane %v451, 2
        %v792 = vsel %vm775, %v790, %v791
        %v793 = vrot.slane %v452, 2
        %v794 = vsel %vm775, %v791, %v793
        %v795 = vrot.slane %v453, 2
        %v796 = vsel %vm775, %v793, %v795
        %v797 = vrot.slane %v454, 2
        %v798 = vrot.slane %v455, 2
        %v799 = vsel %vm775, %v797, %v798
        %v800 = vrot.slane %v456, 2
        %v801 = vsel %vm775, %v798, %v800
        %v802 = vrot.slane %v457, 2
        %v803 = vsel %vm775, %v800, %v802
        %v804 = vrot.slane %v458, 2
        %v805 = vrot.slane %v459, 2
        %v806 = vsel %vm775, %v804, %v805
        %v807 = vrot.slane %v460, 2
        %v808 = vsel %vm775, %v805, %v807
        %v809 = vrot.slane %v461, 2
        %v810 = vsel %vm775, %v807, %v809
        %v811 = vrot.slane %v462, 2
        %v812 = vrot.slane %v463, 2
        %v813 = vsel %vm775, %v811, %v812
        %v814 = vrot.slane %v464, 2
        %v815 = vsel %vm775, %v812, %v814
        %v816 = vrot.slane %v465, 2
        %v817 = vsel %vm775, %v814, %v816
        %v818 = vrot.slane %v466, 2
        %v819 = vrot.slane %v467, 2
        %v820 = vsel %vm775, %v818, %v819
        %v821 = vrot.slane %v468, 2
        %v822 = vsel %vm775, %v819, %v821
        %v823 = vrot.slane %v469, 2
        %v824 = vsel %vm775, %v821, %v823
        %v825 = vrot.slane %v470, 2
        %v826 = vrot.slane %v471, 2
        %v827 = vsel %vm775, %v825, %v826
        %v828 = vrot.slane %v472, 2
        %v829 = vsel %vm775, %v826, %v828
        %v830 = vrot.slane %v473, 2
        %v831 = vsel %vm775, %v828, %v830
        %v832 = vrot.slane %v474, 2
        %v833 = vrot.slane %v475, 2
        %v834 = vsel %vm775, %v832, %v833
        %v835 = vrot.slane %v476, 2
        %v836 = vsel %vm775, %v833, %v835
        %v837 = vrot.slane %v477, 2
        %v838 = vsel %vm775, %v835, %v837
        %v839 = vrot.slane %v478, 2
        %v840 = vrot.slane %v479, 2
        %v841 = vsel %vm775, %v839, %v840
        %v842 = vrot.slane %v480, 2
        %v843 = vsel %vm775, %v840, %v842
        %v844 = vrot.slane %v481, 2
        %v845 = vsel %vm775, %v842, %v844
        %v846 = vrot.slane %v482, 2
        %v847 = vrot.slane %v483, 2
        %v848 = vsel %vm775, %v846, %v847
        %v849 = vrot.slane %v484, 2
        %v850 = vsel %vm775, %v847, %v849
        %v851 = vrot.slane %v485, 2
        %v852 = vsel %vm775, %v849, %v851
        %v853 = vrot.slane %v486, 2
        %v854 = vrot.slane %v487, 2
        %v855 = vsel %vm775, %v853, %v854
        %v856 = vrot.slane %v488, 2
        %v857 = vsel %vm775, %v854, %v856
        %v858 = vrot.slane %v489, 2
        %v859 = vsel %vm775, %v856, %v858
        %v860 = vrot.slane %v490, 2
        %v861 = vrot.slane %v491, 2
        %v862 = vsel %vm775, %v860, %v861
        %v863 = vrot.slane %v492, 2
        %v864 = vsel %vm775, %v861, %v863
        %v865 = vrot.slane %v493, 2
        %v866 = vsel %vm775, %v863, %v865
        %v867 = vrot.slane %v494, 2
        %v868 = vrot.slane %v495, 2
        %v869 = vsel %vm775, %v867, %v868
        %v870 = vrot.slane %v496, 2
        %v871 = vsel %vm775, %v868, %v870
        %v872 = vrot.slane %v497, 2
        %v873 = vsel %vm775, %v870, %v872
        %v874 = vrot.slane %v498, 2
        %v875 = vrot.slane %v499, 2
        %v876 = vsel %vm775, %v874, %v875
        %v877 = vrot.slane %v500, 2
        %v878 = vsel %vm775, %v875, %v877
        %v879 = vrot.slane %v501, 2
        %v880 = vsel %vm775, %v877, %v879
        %v881 = vrot.slane %v502, 2
        %v882 = vrot.slane %v503, 2
        %v883 = vsel %vm775, %v881, %v882
        %v884 = vrot.slane %v504, 2
        %v885 = vsel %vm775, %v882, %v884
        %v886 = vrot.slane %v505, 2
        %v887 = vsel %vm775, %v884, %v886
        %v888 = vrot.slane %v506, 2
        %v889 = vrot.slane %v507, 2
        %v890 = vsel %vm775, %v888, %v889
        %v891 = vrot.slane %v508, 2
        %v892 = vsel %vm775, %v889, %v891
        %v893 = vrot.slane %v509, 2
        %v894 = vsel %vm775, %v891, %v893
        %v895 = vrot.slane %v510, 2
        %v896 = vrot.slane %v511, 2
        %v897 = vsel %vm775, %v895, %v896
        %v898 = vrot.slane %v512, 2
        %v899 = vsel %vm775, %v896, %v898
        %v900 = vrot.slane %v513, 2
        %v901 = vsel %vm775, %v898, %v900
        %v960 = vrot.slane %v514, 1
        %v961 = vrot.slane %v515, 1
        %v962 = vsel %vm594, %v960, %v961
        %v963 = vrot.slane %v516, 1
        %v964 = vsel %vm594, %v961, %v963
        %v965 = vrot.slane %v517, 1
        %v966 = vsel %vm594, %v963, %v965
        %v970 = vrot.slane %v514, 2
        %v971 = vrot.slane %v515, 2
        %v972 = vsel %vm775, %v970, %v971
        %v973 = vrot.slane %v516, 2
        %v974 = vsel %vm775, %v971, %v973
        %v975 = vrot.slane %v517, 2
        %v976 = vsel %vm775, %v973, %v975
        %v984 = vrot.slane %v518, 1
        %v985 = vrot.slane %v519, 1
        %v986 = vsel %vm594, %v984, %v985
        %v987 = vrot.slane %v520, 1
        %v988 = vsel %vm594, %v985, %v987
        %v989 = vrot.slane %v521, 1
        %v990 = vsel %vm594, %v987, %v989
        %v994 = vrot.slane %v518, 2
        %v995 = vrot.slane %v519, 2
        %v996 = vsel %vm775, %v994, %v995
        %v997 = vrot.slane %v520, 2
        %v998 = vsel %vm775, %v995, %v997
        %v999 = vrot.slane %v521, 2
        %v1000 = vsel %vm775, %v997, %v999
        %v1004 = vld [vmem:[#allocation5] sm:$0xff]
        %v1005 = vld [vmem:[#allocation5 + $0x8] sm:$0xff]
        %v1006 = vld [vmem:[#allocation5 + $0x10] sm:$0xff]
        %v1007 = vld [vmem:[#allocation5 + $0x18] sm:$0xff]
        %v1008 = vld [vmem:[#allocation5 + $0x20] sm:$0xff]
        %v1009 = vld [vmem:[#allocation5 + $0x28] sm:$0xff]
        %v1010 = vld [vmem:[#allocation5 + $0x30] sm:$0xff]
        %v1011 = vld [vmem:[#allocation5 + $0x38] sm:$0xff]
        %v1012 = vld [vmem:[#allocation5 + $0x40] sm:$0xff]
        %v1013 = vld [vmem:[#allocation5 + $0x48] sm:$0xff]
        %v1014 = vld [vmem:[#allocation5 + $0x50] sm:$0xff]
        %v1015 = vld [vmem:[#allocation5 + $0x58] sm:$0xff]
        %v1016 = vld [vmem:[#allocation5 + $0x60] sm:$0xff]
        %v1017 = vld [vmem:[#allocation5 + $0x68] sm:$0xff]
        %v1018 = vld [vmem:[#allocation5 + $0x70] sm:$0xff]
        %v1019 = vld [vmem:[#allocation5 + $0x78] sm:$0xff]
        %v1020 = vld [vmem:[#allocation5 + $0x80] sm:$0xff]
        %v1021 = vld [vmem:[#allocation5 + $0x88] sm:$0xff]
        %v1022 = vld [vmem:[#allocation5 + $0x90] sm:$0xff]
        %v1023 = vld [vmem:[#allocation5 + $0x98] sm:$0xff]
        %v1024 = vld [vmem:[#allocation5 + $0xa0] sm:$0xff]
        %v1025 = vld [vmem:[#allocation5 + $0xa8] sm:$0xff]
        %v1026 = vld [vmem:[#allocation5 + $0xb0] sm:$0xff]
        %v1027 = vld [vmem:[#allocation5 + $0xb8] sm:$0xff]
        %v1028 = vld [vmem:[#allocation5 + $0xc0] sm:$0xff]
        %v1029 = vld [vmem:[#allocation5 + $0xc8] sm:$0xff]
        %v1030 = vld [vmem:[#allocation5 + $0xd0] sm:$0xff]
        %v1031 = vld [vmem:[#allocation5 + $0xd8] sm:$0xff]
        %v1032 = vld [vmem:[#allocation5 + $0xe0] sm:$0xff]
        %v1033 = vld [vmem:[#allocation5 + $0xe8] sm:$0xff]
        %v1034 = vld [vmem:[#allocation5 + $0xf0] sm:$0xff]
        %v1035 = vld [vmem:[#allocation5 + $0xf8] sm:$0xff]
        %v1036 = vld [vmem:[#allocation5 + $0x100] sm:$0xff]
        %v1037 = vld [vmem:[#allocation5 + $0x108] sm:$0xff]
        %v1038 = vld [vmem:[#allocation5 + $0x110] sm:$0xff]
        %v1039 = vld [vmem:[#allocation5 + $0x118] sm:$0xff]
        %v1040 = vld [vmem:[#allocation5 + $0x120] sm:$0xff]
        %v1041 = vld [vmem:[#allocation5 + $0x128] sm:$0xff]
        %v1042 = vld [vmem:[#allocation5 + $0x130] sm:$0xff]
        %v1043 = vld [vmem:[#allocation5 + $0x138] sm:$0xff]
        %v1044 = vld [vmem:[#allocation5 + $0x140] sm:$0xff]
        %v1045 = vld [vmem:[#allocation5 + $0x148] sm:$0xff]
        %v1046 = vld [vmem:[#allocation5 + $0x150] sm:$0xff]
        %v1047 = vld [vmem:[#allocation5 + $0x158] sm:$0xff]
        %v1048 = vld [vmem:[#allocation5 + $0x160] sm:$0xff]
        %v1049 = vld [vmem:[#allocation5 + $0x168] sm:$0xff]
        %v1050 = vld [vmem:[#allocation5 + $0x170] sm:$0xff]
        %v1051 = vld [vmem:[#allocation5 + $0x178] sm:$0xff]
        %v1052 = vld [vmem:[#allocation5 + $0x180] sm:$0xff]
        %v1053 = vld [vmem:[#allocation5 + $0x188] sm:$0xff]
        %v1054 = vld [vmem:[#allocation5 + $0x190] sm:$0xff]
        %v1055 = vld [vmem:[#allocation5 + $0x198] sm:$0xff]
        %v1056 = vld [vmem:[#allocation5 + $0x1a0] sm:$0xff]
        %v1057 = vld [vmem:[#allocation5 + $0x1a8] sm:$0xff]
        %v1058 = vld [vmem:[#allocation5 + $0x1b0] sm:$0xff]
        %v1059 = vld [vmem:[#allocation5 + $0x1b8] sm:$0xff]
        %v1060 = vld [vmem:[#allocation5 + $0x1c0] sm:$0xff]
        %v1061 = vld [vmem:[#allocation5 + $0x1c8] sm:$0xff]
        %v1062 = vld [vmem:[#allocation5 + $0x1d0] sm:$0xff]
        %v1063 = vld [vmem:[#allocation5 + $0x1d8] sm:$0xff]
        %v1064 = vld [vmem:[#allocation5 + $0x1e0] sm:$0xff]
        %v1065 = vld [vmem:[#allocation5 + $0x1e8] sm:$0xff]
        %v1066 = vld [vmem:[#allocation5 + $0x1f0] sm:$0xff]
        %v1067 = vld [vmem:[#allocation5 + $0x1f8] sm:$0xff]
        %v1068 = vld [vmem:[#allocation5 + $0x200] sm:$0xff]
        %v1069 = vld [vmem:[#allocation5 + $0x208] sm:$0xff]
        %v1070 = vld [vmem:[#allocation5 + $0x210] sm:$0xff]
        %v1071 = vld [vmem:[#allocation5 + $0x218] sm:$0xff]
        %v1072 = vld [vmem:[#allocation5 + $0x220] sm:$0xff]
        %v1073 = vld [vmem:[#allocation5 + $0x228] sm:$0xff]
        %v1074 = vld [vmem:[#allocation5 + $0x230] sm:$0xff]
        %v1075 = vld [vmem:[#allocation5 + $0x238] sm:$0xff]
        %v1076 = vld [vmem:[#allocation5 + $0x240] sm:$0xff]
        %v1077 = vld [vmem:[#allocation5 + $0x248] sm:$0xff]
        %v1078 = vld [vmem:[#allocation5 + $0x250] sm:$0xff]
        %v1079 = vld [vmem:[#allocation5 + $0x258] sm:$0xff]
        %v1080 = vld [vmem:[#allocation5 + $0x260] sm:$0xff]
        %v1081 = vld [vmem:[#allocation5 + $0x268] sm:$0xff]
        %v1082 = vld [vmem:[#allocation5 + $0x270] sm:$0xff]
        %v1083 = vld [vmem:[#allocation5 + $0x278] sm:$0xff]
        %v1084 = vld [vmem:[#allocation5 + $0x280] sm:$0xff]
        %v1085 = vld [vmem:[#allocation5 + $0x288] sm:$0xff]
        %v1086 = vld [vmem:[#allocation5 + $0x290] sm:$0xff]
        %v1087 = vld [vmem:[#allocation5 + $0x298] sm:$0xff]
        %v1088 = vld [vmem:[#allocation5 + $0x2a0] sm:$0xff]
        %v1089 = vld [vmem:[#allocation5 + $0x2a8] sm:$0xff]
        %v1090 = vld [vmem:[#allocation5 + $0x2b0] sm:$0xff]
        %v1091 = vld [vmem:[#allocation5 + $0x2b8] sm:$0xff]
        %v1092 = vld [vmem:[#allocation5 + $0x2c0] sm:$0xff]
        %v1093 = vld [vmem:[#allocation5 + $0x2c8] sm:$0xff]
        %v1094 = vld [vmem:[#allocation5 + $0x2d0] sm:$0xff]
        %v1095 = vld [vmem:[#allocation5 + $0x2d8] sm:$0xff]
        %v1096 = vld [vmem:[#allocation5 + $0x2e0] sm:$0xff]
        %v1097 = vld [vmem:[#allocation5 + $0x2e8] sm:$0xff]
        %v1098 = vld [vmem:[#allocation5 + $0x2f0] sm:$0xff]
        %v1099 = vld [vmem:[#allocation5 + $0x2f8] sm:$0xff]
        %v1100 = vld [vmem:[#allocation5 + $0x300] sm:$0xff]
        %v1101 = vld [vmem:[#allocation5 + $0x308] sm:$0xff]
        %v1102 = vld [vmem:[#allocation5 + $0x310] sm:$0xff]
        %v1103 = vld [vmem:[#allocation5 + $0x318] sm:$0xff]
        %v1104 = vld [vmem:[#allocation5 + $0x320] sm:$0xff]
        %v1105 = vld [vmem:[#allocation5 + $0x328] sm:$0xff]
        %v1106 = vld [vmem:[#allocation5 + $0x330] sm:$0xff]
        %v1107 = vld [vmem:[#allocation5 + $0x338] sm:$0xff]
        %v1108 = vld [vmem:[#allocation5 + $0x340] sm:$0xff]
        %v1109 = vld [vmem:[#allocation5 + $0x348] sm:$0xff]
        %v1110 = vld [vmem:[#allocation5 + $0x350] sm:$0xff]
        %v1111 = vld [vmem:[#allocation5 + $0x358] sm:$0xff]
        %v1112 = vld [vmem:[#allocation5 + $0x360] sm:$0xff]
        %v1113 = vld [vmem:[#allocation5 + $0x368] sm:$0xff]
        %v1114 = vld [vmem:[#allocation5 + $0x370] sm:$0xff]
        %v1115 = vld [vmem:[#allocation5 + $0x378] sm:$0xff]
        %v1116 = vld [vmem:[#allocation5 + $0x380] sm:$0xff]
        %v1117 = vld [vmem:[#allocation5 + $0x388] sm:$0xff]
        %v1118 = vld [vmem:[#allocation5 + $0x390] sm:$0xff]
        %v1119 = vld [vmem:[#allocation5 + $0x398] sm:$0xff]
        %v1120 = vld [vmem:[#allocation5 + $0x3a0] sm:$0xff]
        %v1121 = vld [vmem:[#allocation5 + $0x3a8] sm:$0xff]
        %v1122 = vld [vmem:[#allocation5 + $0x3b0] sm:$0xff]
        %v1123 = vld [vmem:[#allocation5 + $0x3b8] sm:$0xff]
        %v1124 = vld [vmem:[#allocation5 + $0x3c0] sm:$0xff]
        %v1125 = vld [vmem:[#allocation5 + $0x3c8] sm:$0xff]
        %v1126 = vld [vmem:[#allocation5 + $0x3d0] sm:$0xff]
        %v1127 = vld [vmem:[#allocation5 + $0x3d8] sm:$0xff]
        %v1128 = vld [vmem:[#allocation5 + $0x3e0] sm:$0xff]
        %v1129 = vld [vmem:[#allocation5 + $0x3e8] sm:$0xff]
        %v1130 = vld [vmem:[#allocation5 + $0x3f0] sm:$0xff]
        %v1131 = vld [vmem:[#allocation5 + $0x3f8] sm:$0xff]
        %v1132 = vld [vmem:[#allocation5 + $0x400] sm:$0xff]
        %v1133 = vld [vmem:[#allocation5 + $0x408] sm:$0xff]
        %v1134 = vld [vmem:[#allocation5 + $0x410] sm:$0xff]
        %v1135 = vld [vmem:[#allocation5 + $0x418] sm:$0xff]
        %v1136 = vld [vmem:[#allocation5 + $0x420] sm:$0xff]
        %v1137 = vld [vmem:[#allocation5 + $0x428] sm:$0xff]
        %v1138 = vld [vmem:[#allocation5 + $0x430] sm:$0xff]
        %v1139 = vld [vmem:[#allocation5 + $0x438] sm:$0xff]
        %v1140 = vld [vmem:[#allocation5 + $0x440] sm:$0xff]
        %v1141 = vld [vmem:[#allocation5 + $0x448] sm:$0xff]
        %v1142 = vld [vmem:[#allocation5 + $0x450] sm:$0xff]
        %v1143 = vld [vmem:[#allocation5 + $0x458] sm:$0xff]
        %v1144 = vld [vmem:[#allocation5 + $0x460] sm:$0xff]
        %v1145 = vld [vmem:[#allocation5 + $0x468] sm:$0xff]
        %v1146 = vld [vmem:[#allocation5 + $0x470] sm:$0xff]
        %v1147 = vld [vmem:[#allocation5 + $0x478] sm:$0xff]
        %1148 = vmatpush.msra.mxu0 %v1019
        %1149 = vmatpush.msra.mxu0 %v1018
        %1150 = vmatpush.msra.mxu0 %v1017
        %1151 = vmatpush.msra.mxu0 %v1016
        %1152 = vmatpush.msra.mxu0 %v1015
        %1153 = vmatpush.msra.mxu0 %v1014
        %1154 = vmatpush.msra.mxu0 %v1013
        %1155 = vmatpush.msra.mxu0 %v1012
        %1156 = vmatpush.msra.mxu0 %v1011
        %1157 = vmatpush.msra.mxu0 %v1010
        %1158 = vmatpush.msra.mxu0 %v1009
        %1159 = vmatpush.msra.mxu0 %v1008
        %1160 = vmatpush.msra.mxu0 %v1007
        %1161 = vmatpush.msra.mxu0 %v1006
        %1162 = vmatpush.msra.mxu0 %v1005
        %1163 = vmatpush.msra.mxu0 %v1004
        %1164 = vmatmul.f32.gmra.mxu0 %v442
        %v1165 = vpop.f32.mrf.mxu0
        %v1166 = vadd.f32 0.0, %v1165
        %1167 = vmatmul.f32.gmra.mxu0 %v443
        %v1168 = vpop.f32.mrf.mxu0
        %v1169 = vadd.f32 0.0, %v1168
        %1170 = vmatmul.f32.gmra.mxu0 %v444
        %v1171 = vpop.f32.mrf.mxu0
        %v1172 = vadd.f32 0.0, %v1171
        %1173 = vmatmul.f32.gmra.mxu0 %v446
        %v1174 = vpop.f32.mrf.mxu0
        %v1175 = vadd.f32 0.0, %v1174
        %1176 = vmatmul.f32.gmra.mxu0 %v447
        %v1177 = vpop.f32.mrf.mxu0
        %v1178 = vadd.f32 0.0, %v1177
        %1179 = vmatmul.f32.gmra.mxu0 %v448
        %v1180 = vpop.f32.mrf.mxu0
        %v1181 = vadd.f32 0.0, %v1180
        %1182 = vmatmul.f32.gmra.mxu0 %v450
        %v1183 = vpop.f32.mrf.mxu0
        %v1184 = vadd.f32 0.0, %v1183
        %1185 = vmatmul.f32.gmra.mxu0 %v451
        %v1186 = vpop.f32.mrf.mxu0
        %v1187 = vadd.f32 0.0, %v1186
        %1188 = vmatmul.f32.gmra.mxu0 %v452
        %v1189 = vpop.f32.mrf.mxu0
        %v1190 = vadd.f32 0.0, %v1189
        %1191 = vmatmul.f32.gmra.mxu0 %v454
        %v1192 = vpop.f32.mrf.mxu0
        %v1193 = vadd.f32 0.0, %v1192
        %1194 = vmatmul.f32.gmra.mxu0 %v455
        %v1195 = vpop.f32.mrf.mxu0
        %v1196 = vadd.f32 0.0, %v1195
        %1197 = vmatmul.f32.gmra.mxu0 %v456
        %v1198 = vpop.f32.mrf.mxu0
        %v1199 = vadd.f32 0.0, %v1198
        %1200 = vmatmul.f32.gmra.mxu0 %v458
        %v1201 = vpop.f32.mrf.mxu0
        %v1202 = vadd.f32 0.0, %v1201
        %1203 = vmatmul.f32.gmra.mxu0 %v459
        %v1204 = vpop.f32.mrf.mxu0
        %v1205 = vadd.f32 0.0, %v1204
        %1206 = vmatmul.f32.gmra.mxu0 %v460
        %v1207 = vpop.f32.mrf.mxu0
        %v1208 = vadd.f32 0.0, %v1207
        %1209 = vmatmul.f32.gmra.mxu0 %v462
        %v1210 = vpop.f32.mrf.mxu0
        %v1211 = vadd.f32 0.0, %v1210
        %1212 = vmatmul.f32.gmra.mxu0 %v463
        %v1213 = vpop.f32.mrf.mxu0
        %v1214 = vadd.f32 0.0, %v1213
        %1215 = vmatmul.f32.gmra.mxu0 %v464
        %v1216 = vpop.f32.mrf.mxu0
        %v1217 = vadd.f32 0.0, %v1216
        %1218 = vmatmul.f32.gmra.mxu0 %v466
        %v1219 = vpop.f32.mrf.mxu0
        %v1220 = vadd.f32 0.0, %v1219
        %1221 = vmatmul.f32.gmra.mxu0 %v467
        %v1222 = vpop.f32.mrf.mxu0
        %v1223 = vadd.f32 0.0, %v1222
        %1224 = vmatmul.f32.gmra.mxu0 %v468
        %v1225 = vpop.f32.mrf.mxu0
        %v1226 = vadd.f32 0.0, %v1225
        %1227 = vmatmul.f32.gmra.mxu0 %v470
        %v1228 = vpop.f32.mrf.mxu0
        %v1229 = vadd.f32 0.0, %v1228
        %1230 = vmatmul.f32.gmra.mxu0 %v471
        %v1231 = vpop.f32.mrf.mxu0
        %v1232 = vadd.f32 0.0, %v1231
        %1233 = vmatmul.f32.gmra.mxu0 %v472
        %v1234 = vpop.f32.mrf.mxu0
        %v1235 = vadd.f32 0.0, %v1234
        %1236 = vmatmul.f32.gmra.mxu0 %v474
        %v1237 = vpop.f32.mrf.mxu0
        %v1238 = vadd.f32 0.0, %v1237
        %1239 = vmatmul.f32.gmra.mxu0 %v475
        %v1240 = vpop.f32.mrf.mxu0
        %v1241 = vadd.f32 0.0, %v1240
        %1242 = vmatmul.f32.gmra.mxu0 %v476
        %v1243 = vpop.f32.mrf.mxu0
        %v1244 = vadd.f32 0.0, %v1243
        %1245 = vmatmul.f32.gmra.mxu0 %v478
        %v1246 = vpop.f32.mrf.mxu0
        %v1247 = vadd.f32 0.0, %v1246
        %1248 = vmatmul.f32.gmra.mxu0 %v479
        %v1249 = vpop.f32.mrf.mxu0
        %v1250 = vadd.f32 0.0, %v1249
        %1251 = vmatmul.f32.gmra.mxu0 %v480
        %v1252 = vpop.f32.mrf.mxu0
        %v1253 = vadd.f32 0.0, %v1252
        %1254 = vmatmul.f32.gmra.mxu0 %v482
        %v1255 = vpop.f32.mrf.mxu0
        %v1256 = vadd.f32 0.0, %v1255
        %1257 = vmatmul.f32.gmra.mxu0 %v483
        %v1258 = vpop.f32.mrf.mxu0
        %v1259 = vadd.f32 0.0, %v1258
        %1260 = vmatmul.f32.gmra.mxu0 %v484
        %v1261 = vpop.f32.mrf.mxu0
        %v1262 = vadd.f32 0.0, %v1261
        %1263 = vmatmul.f32.gmra.mxu0 %v486
        %v1264 = vpop.f32.mrf.mxu0
        %v1265 = vadd.f32 0.0, %v1264
        %1266 = vmatmul.f32.gmra.mxu0 %v487
        %v1267 = vpop.f32.mrf.mxu0
        %v1268 = vadd.f32 0.0, %v1267
        %1269 = vmatmul.f32.gmra.mxu0 %v488
        %v1270 = vpop.f32.mrf.mxu0
        %v1271 = vadd.f32 0.0, %v1270
        %1272 = vmatmul.f32.gmra.mxu0 %v490
        %v1273 = vpop.f32.mrf.mxu0
        %v1274 = vadd.f32 0.0, %v1273
        %1275 = vmatmul.f32.gmra.mxu0 %v491
        %v1276 = vpop.f32.mrf.mxu0
        %v1277 = vadd.f32 0.0, %v1276
        %1278 = vmatmul.f32.gmra.mxu0 %v492
        %v1279 = vpop.f32.mrf.mxu0
        %v1280 = vadd.f32 0.0, %v1279
        %1281 = vmatmul.f32.gmra.mxu0 %v494
        %v1282 = vpop.f32.mrf.mxu0
        %v1283 = vadd.f32 0.0, %v1282
        %1284 = vmatmul.f32.gmra.mxu0 %v495
        %v1285 = vpop.f32.mrf.mxu0
        %v1286 = vadd.f32 0.0, %v1285
        %1287 = vmatmul.f32.gmra.mxu0 %v496
        %v1288 = vpop.f32.mrf.mxu0
        %v1289 = vadd.f32 0.0, %v1288
        %1290 = vmatmul.f32.gmra.mxu0 %v498
        %v1291 = vpop.f32.mrf.mxu0
        %v1292 = vadd.f32 0.0, %v1291
        %1293 = vmatmul.f32.gmra.mxu0 %v499
        %v1294 = vpop.f32.mrf.mxu0
        %v1295 = vadd.f32 0.0, %v1294
        %1296 = vmatmul.f32.gmra.mxu0 %v500
        %v1297 = vpop.f32.mrf.mxu0
        %v1298 = vadd.f32 0.0, %v1297
        %1299 = vmatmul.f32.gmra.mxu0 %v502
        %v1300 = vpop.f32.mrf.mxu0
        %v1301 = vadd.f32 0.0, %v1300
        %1302 = vmatmul.f32.gmra.mxu0 %v503
        %v1303 = vpop.f32.mrf.mxu0
        %v1304 = vadd.f32 0.0, %v1303
        %1305 = vmatmul.f32.gmra.mxu0 %v504
        %v1306 = vpop.f32.mrf.mxu0
        %v1307 = vadd.f32 0.0, %v1306
        %1308 = vmatmul.f32.gmra.mxu0 %v506
        %v1309 = vpop.f32.mrf.mxu0
        %v1310 = vadd.f32 0.0, %v1309
        %1311 = vmatmul.f32.gmra.mxu0 %v507
        %v1312 = vpop.f32.mrf.mxu0
        %v1313 = vadd.f32 0.0, %v1312
        %1314 = vmatmul.f32.gmra.mxu0 %v508
        %v1315 = vpop.f32.mrf.mxu0
        %v1316 = vadd.f32 0.0, %v1315
        %1317 = vmatmul.f32.gmra.mxu0 %v510
        %v1318 = vpop.f32.mrf.mxu0
        %v1319 = vadd.f32 0.0, %v1318
        %1320 = vmatmul.f32.gmra.mxu0 %v511
        %v1321 = vpop.f32.mrf.mxu0
        %v1322 = vadd.f32 0.0, %v1321
        %1323 = vmatmul.f32.gmra.mxu0 %v512
        %v1324 = vpop.f32.mrf.mxu0
        %v1325 = vadd.f32 0.0, %v1324
        %1326 = vdwg.mxu0
        %1327 = vmatpush.msra.mxu0 %v1035
        %1328 = vmatpush.msra.mxu0 %v1034
        %1329 = vmatpush.msra.mxu0 %v1033
        %1330 = vmatpush.msra.mxu0 %v1032
        %1331 = vmatpush.msra.mxu0 %v1031
        %1332 = vmatpush.msra.mxu0 %v1030
        %1333 = vmatpush.msra.mxu0 %v1029
        %1334 = vmatpush.msra.mxu0 %v1028
        %1335 = vmatpush.msra.mxu0 %v1027
        %1336 = vmatpush.msra.mxu0 %v1026
        %1337 = vmatpush.msra.mxu0 %v1025
        %1338 = vmatpush.msra.mxu0 %v1024
        %1339 = vmatpush.msra.mxu0 %v1023
        %1340 = vmatpush.msra.mxu0 %v1022
        %1341 = vmatpush.msra.mxu0 %v1021
        %1342 = vmatpush.msra.mxu0 %v1020
        %1343 = vmatmul.f32.gmra.mxu0 %v597
        %v1344 = vpop.f32.mrf.mxu0
        %v1345 = vadd.f32 %v1166, %v1344
        %1346 = vmatmul.f32.gmra.mxu0 %v599
        %v1347 = vpop.f32.mrf.mxu0
        %v1348 = vadd.f32 %v1169, %v1347
        %1349 = vmatmul.f32.gmra.mxu0 %v601
        %v1350 = vpop.f32.mrf.mxu0
        %v1351 = vadd.f32 %v1172, %v1350
        %1352 = vmatmul.f32.gmra.mxu0 %v604
        %v1353 = vpop.f32.mrf.mxu0
        %v1354 = vadd.f32 %v1175, %v1353
        %1355 = vmatmul.f32.gmra.mxu0 %v606
        %v1356 = vpop.f32.mrf.mxu0
        %v1357 = vadd.f32 %v1178, %v1356
        %1358 = vmatmul.f32.gmra.mxu0 %v608
        %v1359 = vpop.f32.mrf.mxu0
        %v1360 = vadd.f32 %v1181, %v1359
        %1361 = vmatmul.f32.gmra.mxu0 %v611
        %v1362 = vpop.f32.mrf.mxu0
        %v1363 = vadd.f32 %v1184, %v1362
        %1364 = vmatmul.f32.gmra.mxu0 %v613
        %v1365 = vpop.f32.mrf.mxu0
        %v1366 = vadd.f32 %v1187, %v1365
        %1367 = vmatmul.f32.gmra.mxu0 %v615
        %v1368 = vpop.f32.mrf.mxu0
        %v1369 = vadd.f32 %v1190, %v1368
        %1370 = vmatmul.f32.gmra.mxu0 %v618
        %v1371 = vpop.f32.mrf.mxu0
        %v1372 = vadd.f32 %v1193, %v1371
        %1373 = vmatmul.f32.gmra.mxu0 %v620
        %v1374 = vpop.f32.mrf.mxu0
        %v1375 = vadd.f32 %v1196, %v1374
        %1376 = vmatmul.f32.gmra.mxu0 %v622
        %v1377 = vpop.f32.mrf.mxu0
        %v1378 = vadd.f32 %v1199, %v1377
        %1379 = vmatmul.f32.gmra.mxu0 %v625
        %v1380 = vpop.f32.mrf.mxu0
        %v1381 = vadd.f32 %v1202, %v1380
        %1382 = vmatmul.f32.gmra.mxu0 %v627
        %v1383 = vpop.f32.mrf.mxu0
        %v1384 = vadd.f32 %v1205, %v1383
        %1385 = vmatmul.f32.gmra.mxu0 %v629
        %v1386 = vpop.f32.mrf.mxu0
        %v1387 = vadd.f32 %v1208, %v1386
        %1388 = vmatmul.f32.gmra.mxu0 %v632
        %v1389 = vpop.f32.mrf.mxu0
        %v1390 = vadd.f32 %v1211, %v1389
        %1391 = vmatmul.f32.gmra.mxu0 %v634
        %v1392 = vpop.f32.mrf.mxu0
        %v1393 = vadd.f32 %v1214, %v1392
        %1394 = vmatmul.f32.gmra.mxu0 %v636
        %v1395 = vpop.f32.mrf.mxu0
        %v1396 = vadd.f32 %v1217, %v1395
        %1397 = vmatmul.f32.gmra.mxu0 %v639
        %v1398 = vpop.f32.mrf.mxu0
        %v1399 = vadd.f32 %v1220, %v1398
        %1400 = vmatmul.f32.gmra.mxu0 %v641
        %v1401 = vpop.f32.mrf.mxu0
        %v1402 = vadd.f32 %v1223, %v1401
        %1403 = vmatmul.f32.gmra.mxu0 %v643
        %v1404 = vpop.f32.mrf.mxu0
        %v1405 = vadd.f32 %v1226, %v1404
        %1406 = vmatmul.f32.gmra.mxu0 %v646
        %v1407 = vpop.f32.mrf.mxu0
        %v1408 = vadd.f32 %v1229, %v1407
        %1409 = vmatmul.f32.gmra.mxu0 %v648
        %v1410 = vpop.f32.mrf.mxu0
        %v1411 = vadd.f32 %v1232, %v1410
        %1412 = vmatmul.f32.gmra.mxu0 %v650
        %v1413 = vpop.f32.mrf.mxu0
        %v1414 = vadd.f32 %v1235, %v1413
        %1415 = vmatmul.f32.gmra.mxu0 %v653
        %v1416 = vpop.f32.mrf.mxu0
        %v1417 = vadd.f32 %v1238, %v1416
        %1418 = vmatmul.f32.gmra.mxu0 %v655
        %v1419 = vpop.f32.mrf.mxu0
        %v1420 = vadd.f32 %v1241, %v1419
        %1421 = vmatmul.f32.gmra.mxu0 %v657
        %v1422 = vpop.f32.mrf.mxu0
        %v1423 = vadd.f32 %v1244, %v1422
        %1424 = vmatmul.f32.gmra.mxu0 %v660
        %v1425 = vpop.f32.mrf.mxu0
        %v1426 = vadd.f32 %v1247, %v1425
        %1427 = vmatmul.f32.gmra.mxu0 %v662
        %v1428 = vpop.f32.mrf.mxu0
        %v1429 = vadd.f32 %v1250, %v1428
        %1430 = vmatmul.f32.gmra.mxu0 %v664
        %v1431 = vpop.f32.mrf.mxu0
        %v1432 = vadd.f32 %v1253, %v1431
        %1433 = vmatmul.f32.gmra.mxu0 %v667
        %v1434 = vpop.f32.mrf.mxu0
        %v1435 = vadd.f32 %v1256, %v1434
        %1436 = vmatmul.f32.gmra.mxu0 %v669
        %v1437 = vpop.f32.mrf.mxu0
        %v1438 = vadd.f32 %v1259, %v1437
        %1439 = vmatmul.f32.gmra.mxu0 %v671
        %v1440 = vpop.f32.mrf.mxu0
        %v1441 = vadd.f32 %v1262, %v1440
        %1442 = vmatmul.f32.gmra.mxu0 %v674
        %v1443 = vpop.f32.mrf.mxu0
        %v1444 = vadd.f32 %v1265, %v1443
        %1445 = vmatmul.f32.gmra.mxu0 %v676
        %v1446 = vpop.f32.mrf.mxu0
        %v1447 = vadd.f32 %v1268, %v1446
        %1448 = vmatmul.f32.gmra.mxu0 %v678
        %v1449 = vpop.f32.mrf.mxu0
        %v1450 = vadd.f32 %v1271, %v1449
        %1451 = vmatmul.f32.gmra.mxu0 %v681
        %v1452 = vpop.f32.mrf.mxu0
        %v1453 = vadd.f32 %v1274, %v1452
        %1454 = vmatmul.f32.gmra.mxu0 %v683
        %v1455 = vpop.f32.mrf.mxu0
        %v1456 = vadd.f32 %v1277, %v1455
        %1457 = vmatmul.f32.gmra.mxu0 %v685
        %v1458 = vpop.f32.mrf.mxu0
        %v1459 = vadd.f32 %v1280, %v1458
        %1460 = vmatmul.f32.gmra.mxu0 %v688
        %v1461 = vpop.f32.mrf.mxu0
        %v1462 = vadd.f32 %v1283, %v1461
        %1463 = vmatmul.f32.gmra.mxu0 %v690
        %v1464 = vpop.f32.mrf.mxu0
        %v1465 = vadd.f32 %v1286, %v1464
        %1466 = vmatmul.f32.gmra.mxu0 %v692
        %v1467 = vpop.f32.mrf.mxu0
        %v1468 = vadd.f32 %v1289, %v1467
        %1469 = vmatmul.f32.gmra.mxu0 %v695
        %v1470 = vpop.f32.mrf.mxu0
        %v1471 = vadd.f32 %v1292, %v1470
        %1472 = vmatmul.f32.gmra.mxu0 %v697
        %v1473 = vpop.f32.mrf.mxu0
        %v1474 = vadd.f32 %v1295, %v1473
        %1475 = vmatmul.f32.gmra.mxu0 %v699
        %v1476 = vpop.f32.mrf.mxu0
        %v1477 = vadd.f32 %v1298, %v1476
        %1478 = vmatmul.f32.gmra.mxu0 %v702
        %v1479 = vpop.f32.mrf.mxu0
        %v1480 = vadd.f32 %v1301, %v1479
        %1481 = vmatmul.f32.gmra.mxu0 %v704
        %v1482 = vpop.f32.mrf.mxu0
        %v1483 = vadd.f32 %v1304, %v1482
        %1484 = vmatmul.f32.gmra.mxu0 %v706
        %v1485 = vpop.f32.mrf.mxu0
        %v1486 = vadd.f32 %v1307, %v1485
        %1487 = vmatmul.f32.gmra.mxu0 %v709
        %v1488 = vpop.f32.mrf.mxu0
        %v1489 = vadd.f32 %v1310, %v1488
        %1490 = vmatmul.f32.gmra.mxu0 %v711
        %v1491 = vpop.f32.mrf.mxu0
        %v1492 = vadd.f32 %v1313, %v1491
        %1493 = vmatmul.f32.gmra.mxu0 %v713
        %v1494 = vpop.f32.mrf.mxu0
        %v1495 = vadd.f32 %v1316, %v1494
        %1496 = vmatmul.f32.gmra.mxu0 %v716
        %v1497 = vpop.f32.mrf.mxu0
        %v1498 = vadd.f32 %v1319, %v1497
        %1499 = vmatmul.f32.gmra.mxu0 %v718
        %v1500 = vpop.f32.mrf.mxu0
        %v1501 = vadd.f32 %v1322, %v1500
        %1502 = vmatmul.f32.gmra.mxu0 %v720
        %v1503 = vpop.f32.mrf.mxu0
        %v1504 = vadd.f32 %v1325, %v1503
        %1505 = vdwg.mxu0
        %1506 = vmatpush.msra.mxu0 %v1051
        %1507 = vmatpush.msra.mxu0 %v1050
        %1508 = vmatpush.msra.mxu0 %v1049
        %1509 = vmatpush.msra.mxu0 %v1048
        %1510 = vmatpush.msra.mxu0 %v1047
        %1511 = vmatpush.msra.mxu0 %v1046
        %1512 = vmatpush.msra.mxu0 %v1045
        %1513 = vmatpush.msra.mxu0 %v1044
        %1514 = vmatpush.msra.mxu0 %v1043
        %1515 = vmatpush.msra.mxu0 %v1042
        %1516 = vmatpush.msra.mxu0 %v1041
        %1517 = vmatpush.msra.mxu0 %v1040
        %1518 = vmatpush.msra.mxu0 %v1039
        %1519 = vmatpush.msra.mxu0 %v1038
        %1520 = vmatpush.msra.mxu0 %v1037
        %1521 = vmatpush.msra.mxu0 %v1036
        %1522 = vmatmul.f32.gmra.mxu0 %v778
        %v1523 = vpop.f32.mrf.mxu0
        %v1524 = vadd.f32 %v1345, %v1523
        %1525 = vmatmul.f32.gmra.mxu0 %v780
        %v1526 = vpop.f32.mrf.mxu0
        %v1527 = vadd.f32 %v1348, %v1526
        %1528 = vmatmul.f32.gmra.mxu0 %v782
        %v1529 = vpop.f32.mrf.mxu0
        %v1530 = vadd.f32 %v1351, %v1529
        %1531 = vmatmul.f32.gmra.mxu0 %v785
        %v1532 = vpop.f32.mrf.mxu0
        %v1533 = vadd.f32 %v1354, %v1532
        %1534 = vmatmul.f32.gmra.mxu0 %v787
        %v1535 = vpop.f32.mrf.mxu0
        %v1536 = vadd.f32 %v1357, %v1535
        %1537 = vmatmul.f32.gmra.mxu0 %v789
        %v1538 = vpop.f32.mrf.mxu0
        %v1539 = vadd.f32 %v1360, %v1538
        %1540 = vmatmul.f32.gmra.mxu0 %v792
        %v1541 = vpop.f32.mrf.mxu0
        %v1542 = vadd.f32 %v1363, %v1541
        %1543 = vmatmul.f32.gmra.mxu0 %v794
        %v1544 = vpop.f32.mrf.mxu0
        %v1545 = vadd.f32 %v1366, %v1544
        %1546 = vmatmul.f32.gmra.mxu0 %v796
        %v1547 = vpop.f32.mrf.mxu0
        %v1548 = vadd.f32 %v1369, %v1547
        %1549 = vmatmul.f32.gmra.mxu0 %v799
        %v1550 = vpop.f32.mrf.mxu0
        %v1551 = vadd.f32 %v1372, %v1550
        %1552 = vmatmul.f32.gmra.mxu0 %v801
        %v1553 = vpop.f32.mrf.mxu0
        %v1554 = vadd.f32 %v1375, %v1553
        %1555 = vmatmul.f32.gmra.mxu0 %v803
        %v1556 = vpop.f32.mrf.mxu0
        %v1557 = vadd.f32 %v1378, %v1556
        %1558 = vmatmul.f32.gmra.mxu0 %v806
        %v1559 = vpop.f32.mrf.mxu0
        %v1560 = vadd.f32 %v1381, %v1559
        %1561 = vmatmul.f32.gmra.mxu0 %v808
        %v1562 = vpop.f32.mrf.mxu0
        %v1563 = vadd.f32 %v1384, %v1562
        %1564 = vmatmul.f32.gmra.mxu0 %v810
        %v1565 = vpop.f32.mrf.mxu0
        %v1566 = vadd.f32 %v1387, %v1565
        %1567 = vmatmul.f32.gmra.mxu0 %v813
        %v1568 = vpop.f32.mrf.mxu0
        %v1569 = vadd.f32 %v1390, %v1568
        %1570 = vmatmul.f32.gmra.mxu0 %v815
        %v1571 = vpop.f32.mrf.mxu0
        %v1572 = vadd.f32 %v1393, %v1571
        %1573 = vmatmul.f32.gmra.mxu0 %v817
        %v1574 = vpop.f32.mrf.mxu0
        %v1575 = vadd.f32 %v1396, %v1574
        %1576 = vmatmul.f32.gmra.mxu0 %v820
        %v1577 = vpop.f32.mrf.mxu0
        %v1578 = vadd.f32 %v1399, %v1577
        %1579 = vmatmul.f32.gmra.mxu0 %v822
        %v1580 = vpop.f32.mrf.mxu0
        %v1581 = vadd.f32 %v1402, %v1580
        %1582 = vmatmul.f32.gmra.mxu0 %v824
        %v1583 = vpop.f32.mrf.mxu0
        %v1584 = vadd.f32 %v1405, %v1583
        %1585 = vmatmul.f32.gmra.mxu0 %v827
        %v1586 = vpop.f32.mrf.mxu0
        %v1587 = vadd.f32 %v1408, %v1586
        %1588 = vmatmul.f32.gmra.mxu0 %v829
        %v1589 = vpop.f32.mrf.mxu0
        %v1590 = vadd.f32 %v1411, %v1589
        %1591 = vmatmul.f32.gmra.mxu0 %v831
        %v1592 = vpop.f32.mrf.mxu0
        %v1593 = vadd.f32 %v1414, %v1592
        %1594 = vmatmul.f32.gmra.mxu0 %v834
        %v1595 = vpop.f32.mrf.mxu0
        %v1596 = vadd.f32 %v1417, %v1595
        %1597 = vmatmul.f32.gmra.mxu0 %v836
        %v1598 = vpop.f32.mrf.mxu0
        %v1599 = vadd.f32 %v1420, %v1598
        %1600 = vmatmul.f32.gmra.mxu0 %v838
        %v1601 = vpop.f32.mrf.mxu0
        %v1602 = vadd.f32 %v1423, %v1601
        %1603 = vmatmul.f32.gmra.mxu0 %v841
        %v1604 = vpop.f32.mrf.mxu0
        %v1605 = vadd.f32 %v1426, %v1604
        %1606 = vmatmul.f32.gmra.mxu0 %v843
        %v1607 = vpop.f32.mrf.mxu0
        %v1608 = vadd.f32 %v1429, %v1607
        %1609 = vmatmul.f32.gmra.mxu0 %v845
        %v1610 = vpop.f32.mrf.mxu0
        %v1611 = vadd.f32 %v1432, %v1610
        %1612 = vmatmul.f32.gmra.mxu0 %v848
        %v1613 = vpop.f32.mrf.mxu0
        %v1614 = vadd.f32 %v1435, %v1613
        %1615 = vmatmul.f32.gmra.mxu0 %v850
        %v1616 = vpop.f32.mrf.mxu0
        %v1617 = vadd.f32 %v1438, %v1616
        %1618 = vmatmul.f32.gmra.mxu0 %v852
        %v1619 = vpop.f32.mrf.mxu0
        %v1620 = vadd.f32 %v1441, %v1619
        %1621 = vmatmul.f32.gmra.mxu0 %v855
        %v1622 = vpop.f32.mrf.mxu0
        %v1623 = vadd.f32 %v1444, %v1622
        %1624 = vmatmul.f32.gmra.mxu0 %v857
        %v1625 = vpop.f32.mrf.mxu0
        %v1626 = vadd.f32 %v1447, %v1625
        %1627 = vmatmul.f32.gmra.mxu0 %v859
        %v1628 = vpop.f32.mrf.mxu0
        %v1629 = vadd.f32 %v1450, %v1628
        %1630 = vmatmul.f32.gmra.mxu0 %v862
        %v1631 = vpop.f32.mrf.mxu0
        %v1632 = vadd.f32 %v1453, %v1631
        %1633 = vmatmul.f32.gmra.mxu0 %v864
        %v1634 = vpop.f32.mrf.mxu0
        %v1635 = vadd.f32 %v1456, %v1634
        %1636 = vmatmul.f32.gmra.mxu0 %v866
        %v1637 = vpop.f32.mrf.mxu0
        %v1638 = vadd.f32 %v1459, %v1637
        %1639 = vmatmul.f32.gmra.mxu0 %v869
        %v1640 = vpop.f32.mrf.mxu0
        %v1641 = vadd.f32 %v1462, %v1640
        %1642 = vmatmul.f32.gmra.mxu0 %v871
        %v1643 = vpop.f32.mrf.mxu0
        %v1644 = vadd.f32 %v1465, %v1643
        %1645 = vmatmul.f32.gmra.mxu0 %v873
        %v1646 = vpop.f32.mrf.mxu0
        %v1647 = vadd.f32 %v1468, %v1646
        %1648 = vmatmul.f32.gmra.mxu0 %v876
        %v1649 = vpop.f32.mrf.mxu0
        %v1650 = vadd.f32 %v1471, %v1649
        %1651 = vmatmul.f32.gmra.mxu0 %v878
        %v1652 = vpop.f32.mrf.mxu0
        %v1653 = vadd.f32 %v1474, %v1652
        %1654 = vmatmul.f32.gmra.mxu0 %v880
        %v1655 = vpop.f32.mrf.mxu0
        %v1656 = vadd.f32 %v1477, %v1655
        %1657 = vmatmul.f32.gmra.mxu0 %v883
        %v1658 = vpop.f32.mrf.mxu0
        %v1659 = vadd.f32 %v1480, %v1658
        %1660 = vmatmul.f32.gmra.mxu0 %v885
        %v1661 = vpop.f32.mrf.mxu0
        %v1662 = vadd.f32 %v1483, %v1661
        %1663 = vmatmul.f32.gmra.mxu0 %v887
        %v1664 = vpop.f32.mrf.mxu0
        %v1665 = vadd.f32 %v1486, %v1664
        %1666 = vmatmul.f32.gmra.mxu0 %v890
        %v1667 = vpop.f32.mrf.mxu0
        %v1668 = vadd.f32 %v1489, %v1667
        %1669 = vmatmul.f32.gmra.mxu0 %v892
        %v1670 = vpop.f32.mrf.mxu0
        %v1671 = vadd.f32 %v1492, %v1670
        %1672 = vmatmul.f32.gmra.mxu0 %v894
        %v1673 = vpop.f32.mrf.mxu0
        %v1674 = vadd.f32 %v1495, %v1673
        %1675 = vmatmul.f32.gmra.mxu0 %v897
        %v1676 = vpop.f32.mrf.mxu0
        %v1677 = vadd.f32 %v1498, %v1676
        %1678 = vmatmul.f32.gmra.mxu0 %v899
        %v1679 = vpop.f32.mrf.mxu0
        %v1680 = vadd.f32 %v1501, %v1679
        %1681 = vmatmul.f32.gmra.mxu0 %v901
        %v1682 = vpop.f32.mrf.mxu0
        %v1683 = vadd.f32 %v1504, %v1682
        %1684 = vdwg.mxu0
        %1685 = vmatpush.msra.mxu0 %v1067
        %1686 = vmatpush.msra.mxu0 %v1066
        %1687 = vmatpush.msra.mxu0 %v1065
        %1688 = vmatpush.msra.mxu0 %v1064
        %1689 = vmatpush.msra.mxu0 %v1063
        %1690 = vmatpush.msra.mxu0 %v1062
        %1691 = vmatpush.msra.mxu0 %v1061
        %1692 = vmatpush.msra.mxu0 %v1060
        %1693 = vmatpush.msra.mxu0 %v1059
        %1694 = vmatpush.msra.mxu0 %v1058
        %1695 = vmatpush.msra.mxu0 %v1057
        %1696 = vmatpush.msra.mxu0 %v1056
        %1697 = vmatpush.msra.mxu0 %v1055
        %1698 = vmatpush.msra.mxu0 %v1054
        %1699 = vmatpush.msra.mxu0 %v1053
        %1700 = vmatpush.msra.mxu0 %v1052
        %1701 = vmatmul.f32.gmra.mxu0 %v446
        %v1702 = vpop.f32.mrf.mxu0
        %v1703 = vadd.f32 %v1524, %v1702
        %1704 = vmatmul.f32.gmra.mxu0 %v447
        %v1705 = vpop.f32.mrf.mxu0
        %v1706 = vadd.f32 %v1527, %v1705
        %1707 = vmatmul.f32.gmra.mxu0 %v448
        %v1708 = vpop.f32.mrf.mxu0
        %v1709 = vadd.f32 %v1530, %v1708
        %1710 = vmatmul.f32.gmra.mxu0 %v450
        %v1711 = vpop.f32.mrf.mxu0
        %v1712 = vadd.f32 %v1533, %v1711
        %1713 = vmatmul.f32.gmra.mxu0 %v451
        %v1714 = vpop.f32.mrf.mxu0
        %v1715 = vadd.f32 %v1536, %v1714
        %1716 = vmatmul.f32.gmra.mxu0 %v452
        %v1717 = vpop.f32.mrf.mxu0
        %v1718 = vadd.f32 %v1539, %v1717
        %1719 = vmatmul.f32.gmra.mxu0 %v454
        %v1720 = vpop.f32.mrf.mxu0
        %v1721 = vadd.f32 %v1542, %v1720
        %1722 = vmatmul.f32.gmra.mxu0 %v455
        %v1723 = vpop.f32.mrf.mxu0
        %v1724 = vadd.f32 %v1545, %v1723
        %1725 = vmatmul.f32.gmra.mxu0 %v456
        %v1726 = vpop.f32.mrf.mxu0
        %v1727 = vadd.f32 %v1548, %v1726
        %1728 = vmatmul.f32.gmra.mxu0 %v458
        %v1729 = vpop.f32.mrf.mxu0
        %v1730 = vadd.f32 %v1551, %v1729
        %1731 = vmatmul.f32.gmra.mxu0 %v459
        %v1732 = vpop.f32.mrf.mxu0
        %v1733 = vadd.f32 %v1554, %v1732
        %1734 = vmatmul.f32.gmra.mxu0 %v460
        %v1735 = vpop.f32.mrf.mxu0
        %v1736 = vadd.f32 %v1557, %v1735
        %1737 = vmatmul.f32.gmra.mxu0 %v462
        %v1738 = vpop.f32.mrf.mxu0
        %v1739 = vadd.f32 %v1560, %v1738
        %1740 = vmatmul.f32.gmra.mxu0 %v463
        %v1741 = vpop.f32.mrf.mxu0
        %v1742 = vadd.f32 %v1563, %v1741
        %1743 = vmatmul.f32.gmra.mxu0 %v464
        %v1744 = vpop.f32.mrf.mxu0
        %v1745 = vadd.f32 %v1566, %v1744
        %1746 = vmatmul.f32.gmra.mxu0 %v466
        %v1747 = vpop.f32.mrf.mxu0
        %v1748 = vadd.f32 %v1569, %v1747
        %1749 = vmatmul.f32.gmra.mxu0 %v467
        %v1750 = vpop.f32.mrf.mxu0
        %v1751 = vadd.f32 %v1572, %v1750
        %1752 = vmatmul.f32.gmra.mxu0 %v468
        %v1753 = vpop.f32.mrf.mxu0
        %v1754 = vadd.f32 %v1575, %v1753
        %1755 = vmatmul.f32.gmra.mxu0 %v470
        %v1756 = vpop.f32.mrf.mxu0
        %v1757 = vadd.f32 %v1578, %v1756
        %1758 = vmatmul.f32.gmra.mxu0 %v471
        %v1759 = vpop.f32.mrf.mxu0
        %v1760 = vadd.f32 %v1581, %v1759
        %1761 = vmatmul.f32.gmra.mxu0 %v472
        %v1762 = vpop.f32.mrf.mxu0
        %v1763 = vadd.f32 %v1584, %v1762
        %1764 = vmatmul.f32.gmra.mxu0 %v474
        %v1765 = vpop.f32.mrf.mxu0
        %v1766 = vadd.f32 %v1587, %v1765
        %1767 = vmatmul.f32.gmra.mxu0 %v475
        %v1768 = vpop.f32.mrf.mxu0
        %v1769 = vadd.f32 %v1590, %v1768
        %1770 = vmatmul.f32.gmra.mxu0 %v476
        %v1771 = vpop.f32.mrf.mxu0
        %v1772 = vadd.f32 %v1593, %v1771
        %1773 = vmatmul.f32.gmra.mxu0 %v478
        %v1774 = vpop.f32.mrf.mxu0
        %v1775 = vadd.f32 %v1596, %v1774
        %1776 = vmatmul.f32.gmra.mxu0 %v479
        %v1777 = vpop.f32.mrf.mxu0
        %v1778 = vadd.f32 %v1599, %v1777
        %1779 = vmatmul.f32.gmra.mxu0 %v480
        %v1780 = vpop.f32.mrf.mxu0
        %v1781 = vadd.f32 %v1602, %v1780
        %1782 = vmatmul.f32.gmra.mxu0 %v482
        %v1783 = vpop.f32.mrf.mxu0
        %v1784 = vadd.f32 %v1605, %v1783
        %1785 = vmatmul.f32.gmra.mxu0 %v483
        %v1786 = vpop.f32.mrf.mxu0
        %v1787 = vadd.f32 %v1608, %v1786
        %1788 = vmatmul.f32.gmra.mxu0 %v484
        %v1789 = vpop.f32.mrf.mxu0
        %v1790 = vadd.f32 %v1611, %v1789
        %1791 = vmatmul.f32.gmra.mxu0 %v486
        %v1792 = vpop.f32.mrf.mxu0
        %v1793 = vadd.f32 %v1614, %v1792
        %1794 = vmatmul.f32.gmra.mxu0 %v487
        %v1795 = vpop.f32.mrf.mxu0
        %v1796 = vadd.f32 %v1617, %v1795
        %1797 = vmatmul.f32.gmra.mxu0 %v488
        %v1798 = vpop.f32.mrf.mxu0
        %v1799 = vadd.f32 %v1620, %v1798
        %1800 = vmatmul.f32.gmra.mxu0 %v490
        %v1801 = vpop.f32.mrf.mxu0
        %v1802 = vadd.f32 %v1623, %v1801
        %1803 = vmatmul.f32.gmra.mxu0 %v491
        %v1804 = vpop.f32.mrf.mxu0
        %v1805 = vadd.f32 %v1626, %v1804
        %1806 = vmatmul.f32.gmra.mxu0 %v492
        %v1807 = vpop.f32.mrf.mxu0
        %v1808 = vadd.f32 %v1629, %v1807
        %1809 = vmatmul.f32.gmra.mxu0 %v494
        %v1810 = vpop.f32.mrf.mxu0
        %v1811 = vadd.f32 %v1632, %v1810
        %1812 = vmatmul.f32.gmra.mxu0 %v495
        %v1813 = vpop.f32.mrf.mxu0
        %v1814 = vadd.f32 %v1635, %v1813
        %1815 = vmatmul.f32.gmra.mxu0 %v496
        %v1816 = vpop.f32.mrf.mxu0
        %v1817 = vadd.f32 %v1638, %v1816
        %1818 = vmatmul.f32.gmra.mxu0 %v498
        %v1819 = vpop.f32.mrf.mxu0
        %v1820 = vadd.f32 %v1641, %v1819
        %1821 = vmatmul.f32.gmra.mxu0 %v499
        %v1822 = vpop.f32.mrf.mxu0
        %v1823 = vadd.f32 %v1644, %v1822
        %1824 = vmatmul.f32.gmra.mxu0 %v500
        %v1825 = vpop.f32.mrf.mxu0
        %v1826 = vadd.f32 %v1647, %v1825
        %1827 = vmatmul.f32.gmra.mxu0 %v502
        %v1828 = vpop.f32.mrf.mxu0
        %v1829 = vadd.f32 %v1650, %v1828
        %1830 = vmatmul.f32.gmra.mxu0 %v503
        %v1831 = vpop.f32.mrf.mxu0
        %v1832 = vadd.f32 %v1653, %v1831
        %1833 = vmatmul.f32.gmra.mxu0 %v504
        %v1834 = vpop.f32.mrf.mxu0
        %v1835 = vadd.f32 %v1656, %v1834
        %1836 = vmatmul.f32.gmra.mxu0 %v506
        %v1837 = vpop.f32.mrf.mxu0
        %v1838 = vadd.f32 %v1659, %v1837
        %1839 = vmatmul.f32.gmra.mxu0 %v507
        %v1840 = vpop.f32.mrf.mxu0
        %v1841 = vadd.f32 %v1662, %v1840
        %1842 = vmatmul.f32.gmra.mxu0 %v508
        %v1843 = vpop.f32.mrf.mxu0
        %v1844 = vadd.f32 %v1665, %v1843
        %1845 = vmatmul.f32.gmra.mxu0 %v510
        %v1846 = vpop.f32.mrf.mxu0
        %v1847 = vadd.f32 %v1668, %v1846
        %1848 = vmatmul.f32.gmra.mxu0 %v511
        %v1849 = vpop.f32.mrf.mxu0
        %v1850 = vadd.f32 %v1671, %v1849
        %1851 = vmatmul.f32.gmra.mxu0 %v512
        %v1852 = vpop.f32.mrf.mxu0
        %v1853 = vadd.f32 %v1674, %v1852
        %1854 = vmatmul.f32.gmra.mxu0 %v514
        %v1855 = vpop.f32.mrf.mxu0
        %v1856 = vadd.f32 %v1677, %v1855
        %1857 = vmatmul.f32.gmra.mxu0 %v515
        %v1858 = vpop.f32.mrf.mxu0
        %v1859 = vadd.f32 %v1680, %v1858
        %1860 = vmatmul.f32.gmra.mxu0 %v516
        %v1861 = vpop.f32.mrf.mxu0
        %v1862 = vadd.f32 %v1683, %v1861
        %1863 = vdwg.mxu0
        %1864 = vmatpush.msra.mxu0 %v1083
        %1865 = vmatpush.msra.mxu0 %v1082
        %1866 = vmatpush.msra.mxu0 %v1081
        %1867 = vmatpush.msra.mxu0 %v1080
        %1868 = vmatpush.msra.mxu0 %v1079
        %1869 = vmatpush.msra.mxu0 %v1078
        %1870 = vmatpush.msra.mxu0 %v1077
        %1871 = vmatpush.msra.mxu0 %v1076
        %1872 = vmatpush.msra.mxu0 %v1075
        %1873 = vmatpush.msra.mxu0 %v1074
        %1874 = vmatpush.msra.mxu0 %v1073
        %1875 = vmatpush.msra.mxu0 %v1072
        %1876 = vmatpush.msra.mxu0 %v1071
        %1877 = vmatpush.msra.mxu0 %v1070
        %1878 = vmatpush.msra.mxu0 %v1069
        %1879 = vmatpush.msra.mxu0 %v1068
        %1880 = vmatmul.f32.gmra.mxu0 %v604
        %v1881 = vpop.f32.mrf.mxu0
        %v1882 = vadd.f32 %v1703, %v1881
        %1883 = vmatmul.f32.gmra.mxu0 %v606
        %v1884 = vpop.f32.mrf.mxu0
        %v1885 = vadd.f32 %v1706, %v1884
        %1886 = vmatmul.f32.gmra.mxu0 %v608
        %v1887 = vpop.f32.mrf.mxu0
        %v1888 = vadd.f32 %v1709, %v1887
        %1889 = vmatmul.f32.gmra.mxu0 %v611
        %v1890 = vpop.f32.mrf.mxu0
        %v1891 = vadd.f32 %v1712, %v1890
        %1892 = vmatmul.f32.gmra.mxu0 %v613
        %v1893 = vpop.f32.mrf.mxu0
        %v1894 = vadd.f32 %v1715, %v1893
        %1895 = vmatmul.f32.gmra.mxu0 %v615
        %v1896 = vpop.f32.mrf.mxu0
        %v1897 = vadd.f32 %v1718, %v1896
        %1898 = vmatmul.f32.gmra.mxu0 %v618
        %v1899 = vpop.f32.mrf.mxu0
        %v1900 = vadd.f32 %v1721, %v1899
        %1901 = vmatmul.f32.gmra.mxu0 %v620
        %v1902 = vpop.f32.mrf.mxu0
        %v1903 = vadd.f32 %v1724, %v1902
        %1904 = vmatmul.f32.gmra.mxu0 %v622
        %v1905 = vpop.f32.mrf.mxu0
        %v1906 = vadd.f32 %v1727, %v1905
        %1907 = vmatmul.f32.gmra.mxu0 %v625
        %v1908 = vpop.f32.mrf.mxu0
        %v1909 = vadd.f32 %v1730, %v1908
        %1910 = vmatmul.f32.gmra.mxu0 %v627
        %v1911 = vpop.f32.mrf.mxu0
        %v1912 = vadd.f32 %v1733, %v1911
        %1913 = vmatmul.f32.gmra.mxu0 %v629
        %v1914 = vpop.f32.mrf.mxu0
        %v1915 = vadd.f32 %v1736, %v1914
        %1916 = vmatmul.f32.gmra.mxu0 %v632
        %v1917 = vpop.f32.mrf.mxu0
        %v1918 = vadd.f32 %v1739, %v1917
        %1919 = vmatmul.f32.gmra.mxu0 %v634
        %v1920 = vpop.f32.mrf.mxu0
        %v1921 = vadd.f32 %v1742, %v1920
        %1922 = vmatmul.f32.gmra.mxu0 %v636
        %v1923 = vpop.f32.mrf.mxu0
        %v1924 = vadd.f32 %v1745, %v1923
        %1925 = vmatmul.f32.gmra.mxu0 %v639
        %v1926 = vpop.f32.mrf.mxu0
        %v1927 = vadd.f32 %v1748, %v1926
        %1928 = vmatmul.f32.gmra.mxu0 %v641
        %v1929 = vpop.f32.mrf.mxu0
        %v1930 = vadd.f32 %v1751, %v1929
        %1931 = vmatmul.f32.gmra.mxu0 %v643
        %v1932 = vpop.f32.mrf.mxu0
        %v1933 = vadd.f32 %v1754, %v1932
        %1934 = vmatmul.f32.gmra.mxu0 %v646
        %v1935 = vpop.f32.mrf.mxu0
        %v1936 = vadd.f32 %v1757, %v1935
        %1937 = vmatmul.f32.gmra.mxu0 %v648
        %v1938 = vpop.f32.mrf.mxu0
        %v1939 = vadd.f32 %v1760, %v1938
        %1940 = vmatmul.f32.gmra.mxu0 %v650
        %v1941 = vpop.f32.mrf.mxu0
        %v1942 = vadd.f32 %v1763, %v1941
        %1943 = vmatmul.f32.gmra.mxu0 %v653
        %v1944 = vpop.f32.mrf.mxu0
        %v1945 = vadd.f32 %v1766, %v1944
        %1946 = vmatmul.f32.gmra.mxu0 %v655
        %v1947 = vpop.f32.mrf.mxu0
        %v1948 = vadd.f32 %v1769, %v1947
        %1949 = vmatmul.f32.gmra.mxu0 %v657
        %v1950 = vpop.f32.mrf.mxu0
        %v1951 = vadd.f32 %v1772, %v1950
        %1952 = vmatmul.f32.gmra.mxu0 %v660
        %v1953 = vpop.f32.mrf.mxu0
        %v1954 = vadd.f32 %v1775, %v1953
        %1955 = vmatmul.f32.gmra.mxu0 %v662
        %v1956 = vpop.f32.mrf.mxu0
        %v1957 = vadd.f32 %v1778, %v1956
        %1958 = vmatmul.f32.gmra.mxu0 %v664
        %v1959 = vpop.f32.mrf.mxu0
        %v1960 = vadd.f32 %v1781, %v1959
        %1961 = vmatmul.f32.gmra.mxu0 %v667
        %v1962 = vpop.f32.mrf.mxu0
        %v1963 = vadd.f32 %v1784, %v1962
        %1964 = vmatmul.f32.gmra.mxu0 %v669
        %v1965 = vpop.f32.mrf.mxu0
        %v1966 = vadd.f32 %v1787, %v1965
        %1967 = vmatmul.f32.gmra.mxu0 %v671
        %v1968 = vpop.f32.mrf.mxu0
        %v1969 = vadd.f32 %v1790, %v1968
        %1970 = vmatmul.f32.gmra.mxu0 %v674
        %v1971 = vpop.f32.mrf.mxu0
        %v1972 = vadd.f32 %v1793, %v1971
        %1973 = vmatmul.f32.gmra.mxu0 %v676
        %v1974 = vpop.f32.mrf.mxu0
        %v1975 = vadd.f32 %v1796, %v1974
        %1976 = vmatmul.f32.gmra.mxu0 %v678
        %v1977 = vpop.f32.mrf.mxu0
        %v1978 = vadd.f32 %v1799, %v1977
        %1979 = vmatmul.f32.gmra.mxu0 %v681
        %v1980 = vpop.f32.mrf.mxu0
        %v1981 = vadd.f32 %v1802, %v1980
        %1982 = vmatmul.f32.gmra.mxu0 %v683
        %v1983 = vpop.f32.mrf.mxu0
        %v1984 = vadd.f32 %v1805, %v1983
        %1985 = vmatmul.f32.gmra.mxu0 %v685
        %v1986 = vpop.f32.mrf.mxu0
        %v1987 = vadd.f32 %v1808, %v1986
        %1988 = vmatmul.f32.gmra.mxu0 %v688
        %v1989 = vpop.f32.mrf.mxu0
        %v1990 = vadd.f32 %v1811, %v1989
        %1991 = vmatmul.f32.gmra.mxu0 %v690
        %v1992 = vpop.f32.mrf.mxu0
        %v1993 = vadd.f32 %v1814, %v1992
        %1994 = vmatmul.f32.gmra.mxu0 %v692
        %v1995 = vpop.f32.mrf.mxu0
        %v1996 = vadd.f32 %v1817, %v1995
        %1997 = vmatmul.f32.gmra.mxu0 %v695
        %v1998 = vpop.f32.mrf.mxu0
        %v1999 = vadd.f32 %v1820, %v1998
        %2000 = vmatmul.f32.gmra.mxu0 %v697
        %v2001 = vpop.f32.mrf.mxu0
        %v2002 = vadd.f32 %v1823, %v2001
        %2003 = vmatmul.f32.gmra.mxu0 %v699
        %v2004 = vpop.f32.mrf.mxu0
        %v2005 = vadd.f32 %v1826, %v2004
        %2006 = vmatmul.f32.gmra.mxu0 %v702
        %v2007 = vpop.f32.mrf.mxu0
        %v2008 = vadd.f32 %v1829, %v2007
        %2009 = vmatmul.f32.gmra.mxu0 %v704
        %v2010 = vpop.f32.mrf.mxu0
        %v2011 = vadd.f32 %v1832, %v2010
        %2012 = vmatmul.f32.gmra.mxu0 %v706
        %v2013 = vpop.f32.mrf.mxu0
        %v2014 = vadd.f32 %v1835, %v2013
        %2015 = vmatmul.f32.gmra.mxu0 %v709
        %v2016 = vpop.f32.mrf.mxu0
        %v2017 = vadd.f32 %v1838, %v2016
        %2018 = vmatmul.f32.gmra.mxu0 %v711
        %v2019 = vpop.f32.mrf.mxu0
        %v2020 = vadd.f32 %v1841, %v2019
        %2021 = vmatmul.f32.gmra.mxu0 %v713
        %v2022 = vpop.f32.mrf.mxu0
        %v2023 = vadd.f32 %v1844, %v2022
        %2024 = vmatmul.f32.gmra.mxu0 %v716
        %v2025 = vpop.f32.mrf.mxu0
        %v2026 = vadd.f32 %v1847, %v2025
        %2027 = vmatmul.f32.gmra.mxu0 %v718
        %v2028 = vpop.f32.mrf.mxu0
        %v2029 = vadd.f32 %v1850, %v2028
        %2030 = vmatmul.f32.gmra.mxu0 %v720
        %v2031 = vpop.f32.mrf.mxu0
        %v2032 = vadd.f32 %v1853, %v2031
        %2033 = vmatmul.f32.gmra.mxu0 %v962
        %v2034 = vpop.f32.mrf.mxu0
        %v2035 = vadd.f32 %v1856, %v2034
        %2036 = vmatmul.f32.gmra.mxu0 %v964
        %v2037 = vpop.f32.mrf.mxu0
        %v2038 = vadd.f32 %v1859, %v2037
        %2039 = vmatmul.f32.gmra.mxu0 %v966
        %v2040 = vpop.f32.mrf.mxu0
        %v2041 = vadd.f32 %v1862, %v2040
        %2042 = vdwg.mxu0
        %2043 = vmatpush.msra.mxu0 %v1099
        %2044 = vmatpush.msra.mxu0 %v1098
        %2045 = vmatpush.msra.mxu0 %v1097
        %2046 = vmatpush.msra.mxu0 %v1096
        %2047 = vmatpush.msra.mxu0 %v1095
        %2048 = vmatpush.msra.mxu0 %v1094
        %2049 = vmatpush.msra.mxu0 %v1093
        %2050 = vmatpush.msra.mxu0 %v1092
        %2051 = vmatpush.msra.mxu0 %v1091
        %2052 = vmatpush.msra.mxu0 %v1090
        %2053 = vmatpush.msra.mxu0 %v1089
        %2054 = vmatpush.msra.mxu0 %v1088
        %2055 = vmatpush.msra.mxu0 %v1087
        %2056 = vmatpush.msra.mxu0 %v1086
        %2057 = vmatpush.msra.mxu0 %v1085
        %2058 = vmatpush.msra.mxu0 %v1084
        %2059 = vmatmul.f32.gmra.mxu0 %v785
        %v2060 = vpop.f32.mrf.mxu0
        %v2061 = vadd.f32 %v1882, %v2060
        %2062 = vmatmul.f32.gmra.mxu0 %v787
        %v2063 = vpop.f32.mrf.mxu0
        %v2064 = vadd.f32 %v1885, %v2063
        %2065 = vmatmul.f32.gmra.mxu0 %v789
        %v2066 = vpop.f32.mrf.mxu0
        %v2067 = vadd.f32 %v1888, %v2066
        %2068 = vmatmul.f32.gmra.mxu0 %v792
        %v2069 = vpop.f32.mrf.mxu0
        %v2070 = vadd.f32 %v1891, %v2069
        %2071 = vmatmul.f32.gmra.mxu0 %v794
        %v2072 = vpop.f32.mrf.mxu0
        %v2073 = vadd.f32 %v1894, %v2072
        %2074 = vmatmul.f32.gmra.mxu0 %v796
        %v2075 = vpop.f32.mrf.mxu0
        %v2076 = vadd.f32 %v1897, %v2075
        %2077 = vmatmul.f32.gmra.mxu0 %v799
        %v2078 = vpop.f32.mrf.mxu0
        %v2079 = vadd.f32 %v1900, %v2078
        %2080 = vmatmul.f32.gmra.mxu0 %v801
        %v2081 = vpop.f32.mrf.mxu0
        %v2082 = vadd.f32 %v1903, %v2081
        %2083 = vmatmul.f32.gmra.mxu0 %v803
        %v2084 = vpop.f32.mrf.mxu0
        %v2085 = vadd.f32 %v1906, %v2084
        %2086 = vmatmul.f32.gmra.mxu0 %v806
        %v2087 = vpop.f32.mrf.mxu0
        %v2088 = vadd.f32 %v1909, %v2087
        %2089 = vmatmul.f32.gmra.mxu0 %v808
        %v2090 = vpop.f32.mrf.mxu0
        %v2091 = vadd.f32 %v1912, %v2090
        %2092 = vmatmul.f32.gmra.mxu0 %v810
        %v2093 = vpop.f32.mrf.mxu0
        %v2094 = vadd.f32 %v1915, %v2093
        %2095 = vmatmul.f32.gmra.mxu0 %v813
        %v2096 = vpop.f32.mrf.mxu0
        %v2097 = vadd.f32 %v1918, %v2096
        %2098 = vmatmul.f32.gmra.mxu0 %v815
        %v2099 = vpop.f32.mrf.mxu0
        %v2100 = vadd.f32 %v1921, %v2099
        %2101 = vmatmul.f32.gmra.mxu0 %v817
        %v2102 = vpop.f32.mrf.mxu0
        %v2103 = vadd.f32 %v1924, %v2102
        %2104 = vmatmul.f32.gmra.mxu0 %v820
        %v2105 = vpop.f32.mrf.mxu0
        %v2106 = vadd.f32 %v1927, %v2105
        %2107 = vmatmul.f32.gmra.mxu0 %v822
        %v2108 = vpop.f32.mrf.mxu0
        %v2109 = vadd.f32 %v1930, %v2108
        %2110 = vmatmul.f32.gmra.mxu0 %v824
        %v2111 = vpop.f32.mrf.mxu0
        %v2112 = vadd.f32 %v1933, %v2111
        %2113 = vmatmul.f32.gmra.mxu0 %v827
        %v2114 = vpop.f32.mrf.mxu0
        %v2115 = vadd.f32 %v1936, %v2114
        %2116 = vmatmul.f32.gmra.mxu0 %v829
        %v2117 = vpop.f32.mrf.mxu0
        %v2118 = vadd.f32 %v1939, %v2117
        %2119 = vmatmul.f32.gmra.mxu0 %v831
        %v2120 = vpop.f32.mrf.mxu0
        %v2121 = vadd.f32 %v1942, %v2120
        %2122 = vmatmul.f32.gmra.mxu0 %v834
        %v2123 = vpop.f32.mrf.mxu0
        %v2124 = vadd.f32 %v1945, %v2123
        %2125 = vmatmul.f32.gmra.mxu0 %v836
        %v2126 = vpop.f32.mrf.mxu0
        %v2127 = vadd.f32 %v1948, %v2126
        %2128 = vmatmul.f32.gmra.mxu0 %v838
        %v2129 = vpop.f32.mrf.mxu0
        %v2130 = vadd.f32 %v1951, %v2129
        %2131 = vmatmul.f32.gmra.mxu0 %v841
        %v2132 = vpop.f32.mrf.mxu0
        %v2133 = vadd.f32 %v1954, %v2132
        %2134 = vmatmul.f32.gmra.mxu0 %v843
        %v2135 = vpop.f32.mrf.mxu0
        %v2136 = vadd.f32 %v1957, %v2135
        %2137 = vmatmul.f32.gmra.mxu0 %v845
        %v2138 = vpop.f32.mrf.mxu0
        %v2139 = vadd.f32 %v1960, %v2138
        %2140 = vmatmul.f32.gmra.mxu0 %v848
        %v2141 = vpop.f32.mrf.mxu0
        %v2142 = vadd.f32 %v1963, %v2141
        %2143 = vmatmul.f32.gmra.mxu0 %v850
        %v2144 = vpop.f32.mrf.mxu0
        %v2145 = vadd.f32 %v1966, %v2144
        %2146 = vmatmul.f32.gmra.mxu0 %v852
        %v2147 = vpop.f32.mrf.mxu0
        %v2148 = vadd.f32 %v1969, %v2147
        %2149 = vmatmul.f32.gmra.mxu0 %v855
        %v2150 = vpop.f32.mrf.mxu0
        %v2151 = vadd.f32 %v1972, %v2150
        %2152 = vmatmul.f32.gmra.mxu0 %v857
        %v2153 = vpop.f32.mrf.mxu0
        %v2154 = vadd.f32 %v1975, %v2153
        %2155 = vmatmul.f32.gmra.mxu0 %v859
        %v2156 = vpop.f32.mrf.mxu0
        %v2157 = vadd.f32 %v1978, %v2156
        %2158 = vmatmul.f32.gmra.mxu0 %v862
        %v2159 = vpop.f32.mrf.mxu0
        %v2160 = vadd.f32 %v1981, %v2159
        %2161 = vmatmul.f32.gmra.mxu0 %v864
        %v2162 = vpop.f32.mrf.mxu0
        %v2163 = vadd.f32 %v1984, %v2162
        %2164 = vmatmul.f32.gmra.mxu0 %v866
        %v2165 = vpop.f32.mrf.mxu0
        %v2166 = vadd.f32 %v1987, %v2165
        %2167 = vmatmul.f32.gmra.mxu0 %v869
        %v2168 = vpop.f32.mrf.mxu0
        %v2169 = vadd.f32 %v1990, %v2168
        %2170 = vmatmul.f32.gmra.mxu0 %v871
        %v2171 = vpop.f32.mrf.mxu0
        %v2172 = vadd.f32 %v1993, %v2171
        %2173 = vmatmul.f32.gmra.mxu0 %v873
        %v2174 = vpop.f32.mrf.mxu0
        %v2175 = vadd.f32 %v1996, %v2174
        %2176 = vmatmul.f32.gmra.mxu0 %v876
        %v2177 = vpop.f32.mrf.mxu0
        %v2178 = vadd.f32 %v1999, %v2177
        %2179 = vmatmul.f32.gmra.mxu0 %v878
        %v2180 = vpop.f32.mrf.mxu0
        %v2181 = vadd.f32 %v2002, %v2180
        %2182 = vmatmul.f32.gmra.mxu0 %v880
        %v2183 = vpop.f32.mrf.mxu0
        %v2184 = vadd.f32 %v2005, %v2183
        %2185 = vmatmul.f32.gmra.mxu0 %v883
        %v2186 = vpop.f32.mrf.mxu0
        %v2187 = vadd.f32 %v2008, %v2186
        %2188 = vmatmul.f32.gmra.mxu0 %v885
        %v2189 = vpop.f32.mrf.mxu0
        %v2190 = vadd.f32 %v2011, %v2189
        %2191 = vmatmul.f32.gmra.mxu0 %v887
        %v2192 = vpop.f32.mrf.mxu0
        %v2193 = vadd.f32 %v2014, %v2192
        %2194 = vmatmul.f32.gmra.mxu0 %v890
        %v2195 = vpop.f32.mrf.mxu0
        %v2196 = vadd.f32 %v2017, %v2195
        %2197 = vmatmul.f32.gmra.mxu0 %v892
        %v2198 = vpop.f32.mrf.mxu0
        %v2199 = vadd.f32 %v2020, %v2198
        %2200 = vmatmul.f32.gmra.mxu0 %v894
        %v2201 = vpop.f32.mrf.mxu0
        %v2202 = vadd.f32 %v2023, %v2201
        %2203 = vmatmul.f32.gmra.mxu0 %v897
        %v2204 = vpop.f32.mrf.mxu0
        %v2205 = vadd.f32 %v2026, %v2204
        %2206 = vmatmul.f32.gmra.mxu0 %v899
        %v2207 = vpop.f32.mrf.mxu0
        %v2208 = vadd.f32 %v2029, %v2207
        %2209 = vmatmul.f32.gmra.mxu0 %v901
        %v2210 = vpop.f32.mrf.mxu0
        %v2211 = vadd.f32 %v2032, %v2210
        %2212 = vmatmul.f32.gmra.mxu0 %v972
        %v2213 = vpop.f32.mrf.mxu0
        %v2214 = vadd.f32 %v2035, %v2213
        %2215 = vmatmul.f32.gmra.mxu0 %v974
        %v2216 = vpop.f32.mrf.mxu0
        %v2217 = vadd.f32 %v2038, %v2216
        %2218 = vmatmul.f32.gmra.mxu0 %v976
        %v2219 = vpop.f32.mrf.mxu0
        %v2220 = vadd.f32 %v2041, %v2219
        %2221 = vdwg.mxu0
        %2222 = vmatpush.msra.mxu0 %v1115
        %2223 = vmatpush.msra.mxu0 %v1114
        %2224 = vmatpush.msra.mxu0 %v1113
        %2225 = vmatpush.msra.mxu0 %v1112
        %2226 = vmatpush.msra.mxu0 %v1111
        %2227 = vmatpush.msra.mxu0 %v1110
        %2228 = vmatpush.msra.mxu0 %v1109
        %2229 = vmatpush.msra.mxu0 %v1108
        %2230 = vmatpush.msra.mxu0 %v1107
        %2231 = vmatpush.msra.mxu0 %v1106
        %2232 = vmatpush.msra.mxu0 %v1105
        %2233 = vmatpush.msra.mxu0 %v1104
        %2234 = vmatpush.msra.mxu0 %v1103
        %2235 = vmatpush.msra.mxu0 %v1102
        %2236 = vmatpush.msra.mxu0 %v1101
        %2237 = vmatpush.msra.mxu0 %v1100
        %2238 = vmatmul.f32.gmra.mxu0 %v450
        %v2239 = vpop.f32.mrf.mxu0
        %v2240 = vadd.f32 %v2061, %v2239
        %2241 = vmatmul.f32.gmra.mxu0 %v451
        %v2242 = vpop.f32.mrf.mxu0
        %v2243 = vadd.f32 %v2064, %v2242
        %2244 = vmatmul.f32.gmra.mxu0 %v452
        %v2245 = vpop.f32.mrf.mxu0
        %v2246 = vadd.f32 %v2067, %v2245
        %2247 = vmatmul.f32.gmra.mxu0 %v454
        %v2248 = vpop.f32.mrf.mxu0
        %v2249 = vadd.f32 %v2070, %v2248
        %2250 = vmatmul.f32.gmra.mxu0 %v455
        %v2251 = vpop.f32.mrf.mxu0
        %v2252 = vadd.f32 %v2073, %v2251
        %2253 = vmatmul.f32.gmra.mxu0 %v456
        %v2254 = vpop.f32.mrf.mxu0
        %v2255 = vadd.f32 %v2076, %v2254
        %2256 = vmatmul.f32.gmra.mxu0 %v458
        %v2257 = vpop.f32.mrf.mxu0
        %v2258 = vadd.f32 %v2079, %v2257
        %2259 = vmatmul.f32.gmra.mxu0 %v459
        %v2260 = vpop.f32.mrf.mxu0
        %v2261 = vadd.f32 %v2082, %v2260
        %2262 = vmatmul.f32.gmra.mxu0 %v460
        %v2263 = vpop.f32.mrf.mxu0
        %v2264 = vadd.f32 %v2085, %v2263
        %2265 = vmatmul.f32.gmra.mxu0 %v462
        %v2266 = vpop.f32.mrf.mxu0
        %v2267 = vadd.f32 %v2088, %v2266
        %2268 = vmatmul.f32.gmra.mxu0 %v463
        %v2269 = vpop.f32.mrf.mxu0
        %v2270 = vadd.f32 %v2091, %v2269
        %2271 = vmatmul.f32.gmra.mxu0 %v464
        %v2272 = vpop.f32.mrf.mxu0
        %v2273 = vadd.f32 %v2094, %v2272
        %2274 = vmatmul.f32.gmra.mxu0 %v466
        %v2275 = vpop.f32.mrf.mxu0
        %v2276 = vadd.f32 %v2097, %v2275
        %2277 = vmatmul.f32.gmra.mxu0 %v467
        %v2278 = vpop.f32.mrf.mxu0
        %v2279 = vadd.f32 %v2100, %v2278
        %2280 = vmatmul.f32.gmra.mxu0 %v468
        %v2281 = vpop.f32.mrf.mxu0
        %v2282 = vadd.f32 %v2103, %v2281
        %2283 = vmatmul.f32.gmra.mxu0 %v470
        %v2284 = vpop.f32.mrf.mxu0
        %v2285 = vadd.f32 %v2106, %v2284
        %2286 = vmatmul.f32.gmra.mxu0 %v471
        %v2287 = vpop.f32.mrf.mxu0
        %v2288 = vadd.f32 %v2109, %v2287
        %2289 = vmatmul.f32.gmra.mxu0 %v472
        %v2290 = vpop.f32.mrf.mxu0
        %v2291 = vadd.f32 %v2112, %v2290
        %2292 = vmatmul.f32.gmra.mxu0 %v474
        %v2293 = vpop.f32.mrf.mxu0
        %v2294 = vadd.f32 %v2115, %v2293
        %2295 = vmatmul.f32.gmra.mxu0 %v475
        %v2296 = vpop.f32.mrf.mxu0
        %v2297 = vadd.f32 %v2118, %v2296
        %2298 = vmatmul.f32.gmra.mxu0 %v476
        %v2299 = vpop.f32.mrf.mxu0
        %v2300 = vadd.f32 %v2121, %v2299
        %2301 = vmatmul.f32.gmra.mxu0 %v478
        %v2302 = vpop.f32.mrf.mxu0
        %v2303 = vadd.f32 %v2124, %v2302
        %2304 = vmatmul.f32.gmra.mxu0 %v479
        %v2305 = vpop.f32.mrf.mxu0
        %v2306 = vadd.f32 %v2127, %v2305
        %2307 = vmatmul.f32.gmra.mxu0 %v480
        %v2308 = vpop.f32.mrf.mxu0
        %v2309 = vadd.f32 %v2130, %v2308
        %2310 = vmatmul.f32.gmra.mxu0 %v482
        %v2311 = vpop.f32.mrf.mxu0
        %v2312 = vadd.f32 %v2133, %v2311
        %2313 = vmatmul.f32.gmra.mxu0 %v483
        %v2314 = vpop.f32.mrf.mxu0
        %v2315 = vadd.f32 %v2136, %v2314
        %2316 = vmatmul.f32.gmra.mxu0 %v484
        %v2317 = vpop.f32.mrf.mxu0
        %v2318 = vadd.f32 %v2139, %v2317
        %2319 = vmatmul.f32.gmra.mxu0 %v486
        %v2320 = vpop.f32.mrf.mxu0
        %v2321 = vadd.f32 %v2142, %v2320
        %2322 = vmatmul.f32.gmra.mxu0 %v487
        %v2323 = vpop.f32.mrf.mxu0
        %v2324 = vadd.f32 %v2145, %v2323
        %2325 = vmatmul.f32.gmra.mxu0 %v488
        %v2326 = vpop.f32.mrf.mxu0
        %v2327 = vadd.f32 %v2148, %v2326
        %2328 = vmatmul.f32.gmra.mxu0 %v490
        %v2329 = vpop.f32.mrf.mxu0
        %v2330 = vadd.f32 %v2151, %v2329
        %2331 = vmatmul.f32.gmra.mxu0 %v491
        %v2332 = vpop.f32.mrf.mxu0
        %v2333 = vadd.f32 %v2154, %v2332
        %2334 = vmatmul.f32.gmra.mxu0 %v492
        %v2335 = vpop.f32.mrf.mxu0
        %v2336 = vadd.f32 %v2157, %v2335
        %2337 = vmatmul.f32.gmra.mxu0 %v494
        %v2338 = vpop.f32.mrf.mxu0
        %v2339 = vadd.f32 %v2160, %v2338
        %2340 = vmatmul.f32.gmra.mxu0 %v495
        %v2341 = vpop.f32.mrf.mxu0
        %v2342 = vadd.f32 %v2163, %v2341
        %2343 = vmatmul.f32.gmra.mxu0 %v496
        %v2344 = vpop.f32.mrf.mxu0
        %v2345 = vadd.f32 %v2166, %v2344
        %2346 = vmatmul.f32.gmra.mxu0 %v498
        %v2347 = vpop.f32.mrf.mxu0
        %v2348 = vadd.f32 %v2169, %v2347
        %2349 = vmatmul.f32.gmra.mxu0 %v499
        %v2350 = vpop.f32.mrf.mxu0
        %v2351 = vadd.f32 %v2172, %v2350
        %2352 = vmatmul.f32.gmra.mxu0 %v500
        %v2353 = vpop.f32.mrf.mxu0
        %v2354 = vadd.f32 %v2175, %v2353
        %2355 = vmatmul.f32.gmra.mxu0 %v502
        %v2356 = vpop.f32.mrf.mxu0
        %v2357 = vadd.f32 %v2178, %v2356
        %2358 = vmatmul.f32.gmra.mxu0 %v503
        %v2359 = vpop.f32.mrf.mxu0
        %v2360 = vadd.f32 %v2181, %v2359
        %2361 = vmatmul.f32.gmra.mxu0 %v504
        %v2362 = vpop.f32.mrf.mxu0
        %v2363 = vadd.f32 %v2184, %v2362
        %2364 = vmatmul.f32.gmra.mxu0 %v506
        %v2365 = vpop.f32.mrf.mxu0
        %v2366 = vadd.f32 %v2187, %v2365
        %2367 = vmatmul.f32.gmra.mxu0 %v507
        %v2368 = vpop.f32.mrf.mxu0
        %v2369 = vadd.f32 %v2190, %v2368
        %2370 = vmatmul.f32.gmra.mxu0 %v508
        %v2371 = vpop.f32.mrf.mxu0
        %v2372 = vadd.f32 %v2193, %v2371
        %2373 = vmatmul.f32.gmra.mxu0 %v510
        %v2374 = vpop.f32.mrf.mxu0
        %v2375 = vadd.f32 %v2196, %v2374
        %2376 = vmatmul.f32.gmra.mxu0 %v511
        %v2377 = vpop.f32.mrf.mxu0
        %v2378 = vadd.f32 %v2199, %v2377
        %2379 = vmatmul.f32.gmra.mxu0 %v512
        %v2380 = vpop.f32.mrf.mxu0
        %v2381 = vadd.f32 %v2202, %v2380
        %2382 = vmatmul.f32.gmra.mxu0 %v514
        %v2383 = vpop.f32.mrf.mxu0
        %v2384 = vadd.f32 %v2205, %v2383
        %2385 = vmatmul.f32.gmra.mxu0 %v515
        %v2386 = vpop.f32.mrf.mxu0
        %v2387 = vadd.f32 %v2208, %v2386
        %2388 = vmatmul.f32.gmra.mxu0 %v516
        %v2389 = vpop.f32.mrf.mxu0
        %v2390 = vadd.f32 %v2211, %v2389
        %2391 = vmatmul.f32.gmra.mxu0 %v518
        %v2392 = vpop.f32.mrf.mxu0
        %v2393 = vadd.f32 %v2214, %v2392
        %2394 = vmatmul.f32.gmra.mxu0 %v519
        %v2395 = vpop.f32.mrf.mxu0
        %v2396 = vadd.f32 %v2217, %v2395
        %2397 = vmatmul.f32.gmra.mxu0 %v520
        %v2398 = vpop.f32.mrf.mxu0
        %v2399 = vadd.f32 %v2220, %v2398
        %2400 = vdwg.mxu0
        %2401 = vmatpush.msra.mxu0 %v1131
        %2402 = vmatpush.msra.mxu0 %v1130
        %2403 = vmatpush.msra.mxu0 %v1129
        %2404 = vmatpush.msra.mxu0 %v1128
        %2405 = vmatpush.msra.mxu0 %v1127
        %2406 = vmatpush.msra.mxu0 %v1126
        %2407 = vmatpush.msra.mxu0 %v1125
        %2408 = vmatpush.msra.mxu0 %v1124
        %2409 = vmatpush.msra.mxu0 %v1123
        %2410 = vmatpush.msra.mxu0 %v1122
        %2411 = vmatpush.msra.mxu0 %v1121
        %2412 = vmatpush.msra.mxu0 %v1120
        %2413 = vmatpush.msra.mxu0 %v1119
        %2414 = vmatpush.msra.mxu0 %v1118
        %2415 = vmatpush.msra.mxu0 %v1117
        %2416 = vmatpush.msra.mxu0 %v1116
        %2417 = vmatmul.f32.gmra.mxu0 %v611
        %v2418 = vpop.f32.mrf.mxu0
        %v2419 = vadd.f32 %v2240, %v2418
        %2420 = vmatmul.f32.gmra.mxu0 %v613
        %v2421 = vpop.f32.mrf.mxu0
        %v2422 = vadd.f32 %v2243, %v2421
        %2423 = vmatmul.f32.gmra.mxu0 %v615
        %v2424 = vpop.f32.mrf.mxu0
        %v2425 = vadd.f32 %v2246, %v2424
        %2426 = vmatmul.f32.gmra.mxu0 %v618
        %v2427 = vpop.f32.mrf.mxu0
        %v2428 = vadd.f32 %v2249, %v2427
        %2429 = vmatmul.f32.gmra.mxu0 %v620
        %v2430 = vpop.f32.mrf.mxu0
        %v2431 = vadd.f32 %v2252, %v2430
        %2432 = vmatmul.f32.gmra.mxu0 %v622
        %v2433 = vpop.f32.mrf.mxu0
        %v2434 = vadd.f32 %v2255, %v2433
        %2435 = vmatmul.f32.gmra.mxu0 %v625
        %v2436 = vpop.f32.mrf.mxu0
        %v2437 = vadd.f32 %v2258, %v2436
        %2438 = vmatmul.f32.gmra.mxu0 %v627
        %v2439 = vpop.f32.mrf.mxu0
        %v2440 = vadd.f32 %v2261, %v2439
        %2441 = vmatmul.f32.gmra.mxu0 %v629
        %v2442 = vpop.f32.mrf.mxu0
        %v2443 = vadd.f32 %v2264, %v2442
        %2444 = vmatmul.f32.gmra.mxu0 %v632
        %v2445 = vpop.f32.mrf.mxu0
        %v2446 = vadd.f32 %v2267, %v2445
        %2447 = vmatmul.f32.gmra.mxu0 %v634
        %v2448 = vpop.f32.mrf.mxu0
        %v2449 = vadd.f32 %v2270, %v2448
        %2450 = vmatmul.f32.gmra.mxu0 %v636
        %v2451 = vpop.f32.mrf.mxu0
        %v2452 = vadd.f32 %v2273, %v2451
        %2453 = vmatmul.f32.gmra.mxu0 %v639
        %v2454 = vpop.f32.mrf.mxu0
        %v2455 = vadd.f32 %v2276, %v2454
        %2456 = vmatmul.f32.gmra.mxu0 %v641
        %v2457 = vpop.f32.mrf.mxu0
        %v2458 = vadd.f32 %v2279, %v2457
        %2459 = vmatmul.f32.gmra.mxu0 %v643
        %v2460 = vpop.f32.mrf.mxu0
        %v2461 = vadd.f32 %v2282, %v2460
        %2462 = vmatmul.f32.gmra.mxu0 %v646
        %v2463 = vpop.f32.mrf.mxu0
        %v2464 = vadd.f32 %v2285, %v2463
        %2465 = vmatmul.f32.gmra.mxu0 %v648
        %v2466 = vpop.f32.mrf.mxu0
        %v2467 = vadd.f32 %v2288, %v2466
        %2468 = vmatmul.f32.gmra.mxu0 %v650
        %v2469 = vpop.f32.mrf.mxu0
        %v2470 = vadd.f32 %v2291, %v2469
        %2471 = vmatmul.f32.gmra.mxu0 %v653
        %v2472 = vpop.f32.mrf.mxu0
        %v2473 = vadd.f32 %v2294, %v2472
        %2474 = vmatmul.f32.gmra.mxu0 %v655
        %v2475 = vpop.f32.mrf.mxu0
        %v2476 = vadd.f32 %v2297, %v2475
        %2477 = vmatmul.f32.gmra.mxu0 %v657
        %v2478 = vpop.f32.mrf.mxu0
        %v2479 = vadd.f32 %v2300, %v2478
        %2480 = vmatmul.f32.gmra.mxu0 %v660
        %v2481 = vpop.f32.mrf.mxu0
        %v2482 = vadd.f32 %v2303, %v2481
        %2483 = vmatmul.f32.gmra.mxu0 %v662
        %v2484 = vpop.f32.mrf.mxu0
        %v2485 = vadd.f32 %v2306, %v2484
        %2486 = vmatmul.f32.gmra.mxu0 %v664
        %v2487 = vpop.f32.mrf.mxu0
        %v2488 = vadd.f32 %v2309, %v2487
        %2489 = vmatmul.f32.gmra.mxu0 %v667
        %v2490 = vpop.f32.mrf.mxu0
        %v2491 = vadd.f32 %v2312, %v2490
        %2492 = vmatmul.f32.gmra.mxu0 %v669
        %v2493 = vpop.f32.mrf.mxu0
        %v2494 = vadd.f32 %v2315, %v2493
        %2495 = vmatmul.f32.gmra.mxu0 %v671
        %v2496 = vpop.f32.mrf.mxu0
        %v2497 = vadd.f32 %v2318, %v2496
        %2498 = vmatmul.f32.gmra.mxu0 %v674
        %v2499 = vpop.f32.mrf.mxu0
        %v2500 = vadd.f32 %v2321, %v2499
        %2501 = vmatmul.f32.gmra.mxu0 %v676
        %v2502 = vpop.f32.mrf.mxu0
        %v2503 = vadd.f32 %v2324, %v2502
        %2504 = vmatmul.f32.gmra.mxu0 %v678
        %v2505 = vpop.f32.mrf.mxu0
        %v2506 = vadd.f32 %v2327, %v2505
        %2507 = vmatmul.f32.gmra.mxu0 %v681
        %v2508 = vpop.f32.mrf.mxu0
        %v2509 = vadd.f32 %v2330, %v2508
        %2510 = vmatmul.f32.gmra.mxu0 %v683
        %v2511 = vpop.f32.mrf.mxu0
        %v2512 = vadd.f32 %v2333, %v2511
        %2513 = vmatmul.f32.gmra.mxu0 %v685
        %v2514 = vpop.f32.mrf.mxu0
        %v2515 = vadd.f32 %v2336, %v2514
        %2516 = vmatmul.f32.gmra.mxu0 %v688
        %v2517 = vpop.f32.mrf.mxu0
        %v2518 = vadd.f32 %v2339, %v2517
        %2519 = vmatmul.f32.gmra.mxu0 %v690
        %v2520 = vpop.f32.mrf.mxu0
        %v2521 = vadd.f32 %v2342, %v2520
        %2522 = vmatmul.f32.gmra.mxu0 %v692
        %v2523 = vpop.f32.mrf.mxu0
        %v2524 = vadd.f32 %v2345, %v2523
        %2525 = vmatmul.f32.gmra.mxu0 %v695
        %v2526 = vpop.f32.mrf.mxu0
        %v2527 = vadd.f32 %v2348, %v2526
        %2528 = vmatmul.f32.gmra.mxu0 %v697
        %v2529 = vpop.f32.mrf.mxu0
        %v2530 = vadd.f32 %v2351, %v2529
        %2531 = vmatmul.f32.gmra.mxu0 %v699
        %v2532 = vpop.f32.mrf.mxu0
        %v2533 = vadd.f32 %v2354, %v2532
        %2534 = vmatmul.f32.gmra.mxu0 %v702
        %v2535 = vpop.f32.mrf.mxu0
        %v2536 = vadd.f32 %v2357, %v2535
        %2537 = vmatmul.f32.gmra.mxu0 %v704
        %v2538 = vpop.f32.mrf.mxu0
        %v2539 = vadd.f32 %v2360, %v2538
        %2540 = vmatmul.f32.gmra.mxu0 %v706
        %v2541 = vpop.f32.mrf.mxu0
        %v2542 = vadd.f32 %v2363, %v2541
        %2543 = vmatmul.f32.gmra.mxu0 %v709
        %v2544 = vpop.f32.mrf.mxu0
        %v2545 = vadd.f32 %v2366, %v2544
        %2546 = vmatmul.f32.gmra.mxu0 %v711
        %v2547 = vpop.f32.mrf.mxu0
        %v2548 = vadd.f32 %v2369, %v2547
        %2549 = vmatmul.f32.gmra.mxu0 %v713
        %v2550 = vpop.f32.mrf.mxu0
        %v2551 = vadd.f32 %v2372, %v2550
        %2552 = vmatmul.f32.gmra.mxu0 %v716
        %v2553 = vpop.f32.mrf.mxu0
        %v2554 = vadd.f32 %v2375, %v2553
        %2555 = vmatmul.f32.gmra.mxu0 %v718
        %v2556 = vpop.f32.mrf.mxu0
        %v2557 = vadd.f32 %v2378, %v2556
        %2558 = vmatmul.f32.gmra.mxu0 %v720
        %v2559 = vpop.f32.mrf.mxu0
        %v2560 = vadd.f32 %v2381, %v2559
        %2561 = vmatmul.f32.gmra.mxu0 %v962
        %v2562 = vpop.f32.mrf.mxu0
        %v2563 = vadd.f32 %v2384, %v2562
        %2564 = vmatmul.f32.gmra.mxu0 %v964
        %v2565 = vpop.f32.mrf.mxu0
        %v2566 = vadd.f32 %v2387, %v2565
        %2567 = vmatmul.f32.gmra.mxu0 %v966
        %v2568 = vpop.f32.mrf.mxu0
        %v2569 = vadd.f32 %v2390, %v2568
        %2570 = vmatmul.f32.gmra.mxu0 %v986
        %v2571 = vpop.f32.mrf.mxu0
        %v2572 = vadd.f32 %v2393, %v2571
        %2573 = vmatmul.f32.gmra.mxu0 %v988
        %v2574 = vpop.f32.mrf.mxu0
        %v2575 = vadd.f32 %v2396, %v2574
        %2576 = vmatmul.f32.gmra.mxu0 %v990
        %v2577 = vpop.f32.mrf.mxu0
        %v2578 = vadd.f32 %v2399, %v2577
        %2579 = vdwg.mxu0
        %2580 = vmatpush.msra.mxu0 %v1147
        %2581 = vmatpush.msra.mxu0 %v1146
        %2582 = vmatpush.msra.mxu0 %v1145
        %2583 = vmatpush.msra.mxu0 %v1144
        %2584 = vmatpush.msra.mxu0 %v1143
        %2585 = vmatpush.msra.mxu0 %v1142
        %2586 = vmatpush.msra.mxu0 %v1141
        %2587 = vmatpush.msra.mxu0 %v1140
        %2588 = vmatpush.msra.mxu0 %v1139
        %2589 = vmatpush.msra.mxu0 %v1138
        %2590 = vmatpush.msra.mxu0 %v1137
        %2591 = vmatpush.msra.mxu0 %v1136
        %2592 = vmatpush.msra.mxu0 %v1135
        %2593 = vmatpush.msra.mxu0 %v1134
        %2594 = vmatpush.msra.mxu0 %v1133
        %2595 = vmatpush.msra.mxu0 %v1132
        %2596 = vmatmul.f32.gmra.mxu0 %v792
        %v2597 = vpop.f32.mrf.mxu0
        %v2598 = vadd.f32 %v2419, %v2597
        %2599 = vmatmul.f32.gmra.mxu0 %v794
        %v2600 = vpop.f32.mrf.mxu0
        %v2601 = vadd.f32 %v2422, %v2600
        %2602 = vmatmul.f32.gmra.mxu0 %v796
        %v2603 = vpop.f32.mrf.mxu0
        %v2604 = vadd.f32 %v2425, %v2603
        %2605 = vmatmul.f32.gmra.mxu0 %v799
        %v2606 = vpop.f32.mrf.mxu0
        %v2607 = vadd.f32 %v2428, %v2606
        %2608 = vmatmul.f32.gmra.mxu0 %v801
        %v2609 = vpop.f32.mrf.mxu0
        %v2610 = vadd.f32 %v2431, %v2609
        %2611 = vmatmul.f32.gmra.mxu0 %v803
        %v2612 = vpop.f32.mrf.mxu0
        %v2613 = vadd.f32 %v2434, %v2612
        %2614 = vmatmul.f32.gmra.mxu0 %v806
        %v2615 = vpop.f32.mrf.mxu0
        %v2616 = vadd.f32 %v2437, %v2615
        %2617 = vmatmul.f32.gmra.mxu0 %v808
        %v2618 = vpop.f32.mrf.mxu0
        %v2619 = vadd.f32 %v2440, %v2618
        %2620 = vmatmul.f32.gmra.mxu0 %v810
        %v2621 = vpop.f32.mrf.mxu0
        %v2622 = vadd.f32 %v2443, %v2621
        %2623 = vmatmul.f32.gmra.mxu0 %v813
        %v2624 = vpop.f32.mrf.mxu0
        %v2625 = vadd.f32 %v2446, %v2624
        %2626 = vmatmul.f32.gmra.mxu0 %v815
        %v2627 = vpop.f32.mrf.mxu0
        %v2628 = vadd.f32 %v2449, %v2627
        %2629 = vmatmul.f32.gmra.mxu0 %v817
        %v2630 = vpop.f32.mrf.mxu0
        %v2631 = vadd.f32 %v2452, %v2630
        %2632 = vmatmul.f32.gmra.mxu0 %v820
        %v2633 = vpop.f32.mrf.mxu0
        %v2634 = vadd.f32 %v2455, %v2633
        %2635 = vmatmul.f32.gmra.mxu0 %v822
        %v2636 = vpop.f32.mrf.mxu0
        %v2637 = vadd.f32 %v2458, %v2636
        %2638 = vmatmul.f32.gmra.mxu0 %v824
        %v2639 = vpop.f32.mrf.mxu0
        %v2640 = vadd.f32 %v2461, %v2639
        %2641 = vmatmul.f32.gmra.mxu0 %v827
        %v2642 = vpop.f32.mrf.mxu0
        %v2643 = vadd.f32 %v2464, %v2642
        %2644 = vmatmul.f32.gmra.mxu0 %v829
        %v2645 = vpop.f32.mrf.mxu0
        %v2646 = vadd.f32 %v2467, %v2645
        %2647 = vmatmul.f32.gmra.mxu0 %v831
        %v2648 = vpop.f32.mrf.mxu0
        %v2649 = vadd.f32 %v2470, %v2648
        %2650 = vmatmul.f32.gmra.mxu0 %v834
        %v2651 = vpop.f32.mrf.mxu0
        %v2652 = vadd.f32 %v2473, %v2651
        %2653 = vmatmul.f32.gmra.mxu0 %v836
        %v2654 = vpop.f32.mrf.mxu0
        %v2655 = vadd.f32 %v2476, %v2654
        %2656 = vmatmul.f32.gmra.mxu0 %v838
        %v2657 = vpop.f32.mrf.mxu0
        %v2658 = vadd.f32 %v2479, %v2657
        %2659 = vmatmul.f32.gmra.mxu0 %v841
        %v2660 = vpop.f32.mrf.mxu0
        %v2661 = vadd.f32 %v2482, %v2660
        %2662 = vmatmul.f32.gmra.mxu0 %v843
        %v2663 = vpop.f32.mrf.mxu0
        %v2664 = vadd.f32 %v2485, %v2663
        %2665 = vmatmul.f32.gmra.mxu0 %v845
        %v2666 = vpop.f32.mrf.mxu0
        %v2667 = vadd.f32 %v2488, %v2666
        %2668 = vmatmul.f32.gmra.mxu0 %v848
        %v2669 = vpop.f32.mrf.mxu0
        %v2670 = vadd.f32 %v2491, %v2669
        %2671 = vmatmul.f32.gmra.mxu0 %v850
        %v2672 = vpop.f32.mrf.mxu0
        %v2673 = vadd.f32 %v2494, %v2672
        %2674 = vmatmul.f32.gmra.mxu0 %v852
        %v2675 = vpop.f32.mrf.mxu0
        %v2676 = vadd.f32 %v2497, %v2675
        %2677 = vmatmul.f32.gmra.mxu0 %v855
        %v2678 = vpop.f32.mrf.mxu0
        %v2679 = vadd.f32 %v2500, %v2678
        %2680 = vmatmul.f32.gmra.mxu0 %v857
        %v2681 = vpop.f32.mrf.mxu0
        %v2682 = vadd.f32 %v2503, %v2681
        %2683 = vmatmul.f32.gmra.mxu0 %v859
        %v2684 = vpop.f32.mrf.mxu0
        %v2685 = vadd.f32 %v2506, %v2684
        %2686 = vmatmul.f32.gmra.mxu0 %v862
        %v2687 = vpop.f32.mrf.mxu0
        %v2688 = vadd.f32 %v2509, %v2687
        %2689 = vmatmul.f32.gmra.mxu0 %v864
        %v2690 = vpop.f32.mrf.mxu0
        %v2691 = vadd.f32 %v2512, %v2690
        %2692 = vmatmul.f32.gmra.mxu0 %v866
        %v2693 = vpop.f32.mrf.mxu0
        %v2694 = vadd.f32 %v2515, %v2693
        %2695 = vmatmul.f32.gmra.mxu0 %v869
        %v2696 = vpop.f32.mrf.mxu0
        %v2697 = vadd.f32 %v2518, %v2696
        %2698 = vmatmul.f32.gmra.mxu0 %v871
        %v2699 = vpop.f32.mrf.mxu0
        %v2700 = vadd.f32 %v2521, %v2699
        %2701 = vmatmul.f32.gmra.mxu0 %v873
        %v2702 = vpop.f32.mrf.mxu0
        %v2703 = vadd.f32 %v2524, %v2702
        %2704 = vmatmul.f32.gmra.mxu0 %v876
        %v2705 = vpop.f32.mrf.mxu0
        %v2706 = vadd.f32 %v2527, %v2705
        %2707 = vmatmul.f32.gmra.mxu0 %v878
        %v2708 = vpop.f32.mrf.mxu0
        %v2709 = vadd.f32 %v2530, %v2708
        %2710 = vmatmul.f32.gmra.mxu0 %v880
        %v2711 = vpop.f32.mrf.mxu0
        %v2712 = vadd.f32 %v2533, %v2711
        %2713 = vmatmul.f32.gmra.mxu0 %v883
        %v2714 = vpop.f32.mrf.mxu0
        %v2715 = vadd.f32 %v2536, %v2714
        %2716 = vmatmul.f32.gmra.mxu0 %v885
        %v2717 = vpop.f32.mrf.mxu0
        %v2718 = vadd.f32 %v2539, %v2717
        %2719 = vmatmul.f32.gmra.mxu0 %v887
        %v2720 = vpop.f32.mrf.mxu0
        %v2721 = vadd.f32 %v2542, %v2720
        %2722 = vmatmul.f32.gmra.mxu0 %v890
        %v2723 = vpop.f32.mrf.mxu0
        %v2724 = vadd.f32 %v2545, %v2723
        %2725 = vmatmul.f32.gmra.mxu0 %v892
        %v2726 = vpop.f32.mrf.mxu0
        %v2727 = vadd.f32 %v2548, %v2726
        %2728 = vmatmul.f32.gmra.mxu0 %v894
        %v2729 = vpop.f32.mrf.mxu0
        %v2730 = vadd.f32 %v2551, %v2729
        %2731 = vmatmul.f32.gmra.mxu0 %v897
        %v2732 = vpop.f32.mrf.mxu0
        %v2733 = vadd.f32 %v2554, %v2732
        %2734 = vmatmul.f32.gmra.mxu0 %v899
        %v2735 = vpop.f32.mrf.mxu0
        %v2736 = vadd.f32 %v2557, %v2735
        %2737 = vmatmul.f32.gmra.mxu0 %v901
        %v2738 = vpop.f32.mrf.mxu0
        %v2739 = vadd.f32 %v2560, %v2738
        %2740 = vmatmul.f32.gmra.mxu0 %v972
        %v2741 = vpop.f32.mrf.mxu0
        %v2742 = vadd.f32 %v2563, %v2741
        %2743 = vmatmul.f32.gmra.mxu0 %v974
        %v2744 = vpop.f32.mrf.mxu0
        %v2745 = vadd.f32 %v2566, %v2744
        %2746 = vmatmul.f32.gmra.mxu0 %v976
        %v2747 = vpop.f32.mrf.mxu0
        %v2748 = vadd.f32 %v2569, %v2747
        %2749 = vmatmul.f32.gmra.mxu0 %v996
        %v2750 = vpop.f32.mrf.mxu0
        %v2751 = vadd.f32 %v2572, %v2750
        %2752 = vmatmul.f32.gmra.mxu0 %v998
        %v2753 = vpop.f32.mrf.mxu0
        %v2754 = vadd.f32 %v2575, %v2753
        %2755 = vmatmul.f32.gmra.mxu0 %v1000
        %v2756 = vpop.f32.mrf.mxu0
        %v2757 = vadd.f32 %v2578, %v2756
        %2758 = vdwg.mxu0
        %v2759 = vld [vmem:[%s2] sm:$0x1]
        %v2761 = vperm.slane %v2759, 0
        %v2763 = vmul.f32 %v2598, %v2761
        %v2764 = vmul.f32 %v2601, %v2761
        %v2765 = vmul.f32 %v2604, %v2761
        %v2766 = vmul.f32 %v2607, %v2761
        %v2767 = vmul.f32 %v2610, %v2761
        %v2768 = vmul.f32 %v2613, %v2761
        %v2769 = vmul.f32 %v2616, %v2761
        %v2770 = vmul.f32 %v2619, %v2761
        %v2771 = vmul.f32 %v2622, %v2761
        %v2772 = vmul.f32 %v2625, %v2761
        %v2773 = vmul.f32 %v2628, %v2761
        %v2774 = vmul.f32 %v2631, %v2761
        %v2775 = vmul.f32 %v2634, %v2761
        %v2776 = vmul.f32 %v2637, %v2761
        %v2777 = vmul.f32 %v2640, %v2761
        %v2778 = vmul.f32 %v2643, %v2761
        %v2779 = vmul.f32 %v2646, %v2761
        %v2780 = vmul.f32 %v2649, %v2761
        %v2781 = vmul.f32 %v2652, %v2761
        %v2782 = vmul.f32 %v2655, %v2761
        %v2783 = vmul.f32 %v2658, %v2761
        %v2784 = vmul.f32 %v2661, %v2761
        %v2785 = vmul.f32 %v2664, %v2761
        %v2786 = vmul.f32 %v2667, %v2761
        %v2787 = vmul.f32 %v2670, %v2761
        %v2788 = vmul.f32 %v2673, %v2761
        %v2789 = vmul.f32 %v2676, %v2761
        %v2790 = vmul.f32 %v2679, %v2761
        %v2791 = vmul.f32 %v2682, %v2761
        %v2792 = vmul.f32 %v2685, %v2761
        %v2793 = vmul.f32 %v2688, %v2761
        %v2794 = vmul.f32 %v2691, %v2761
        %v2795 = vmul.f32 %v2694, %v2761
        %v2796 = vmul.f32 %v2697, %v2761
        %v2797 = vmul.f32 %v2700, %v2761
        %v2798 = vmul.f32 %v2703, %v2761
        %v2799 = vmul.f32 %v2706, %v2761
        %v2800 = vmul.f32 %v2709, %v2761
        %v2801 = vmul.f32 %v2712, %v2761
        %v2802 = vmul.f32 %v2715, %v2761
        %v2803 = vmul.f32 %v2718, %v2761
        %v2804 = vmul.f32 %v2721, %v2761
        %v2805 = vmul.f32 %v2724, %v2761
        %v2806 = vmul.f32 %v2727, %v2761
        %v2807 = vmul.f32 %v2730, %v2761
        %v2808 = vmul.f32 %v2733, %v2761
        %v2809 = vmul.f32 %v2736, %v2761
        %v2810 = vmul.f32 %v2739, %v2761
        %v2811 = vmul.f32 %v2742, %v2761
        %v2812 = vmul.f32 %v2745, %v2761
        %v2813 = vmul.f32 %v2748, %v2761
        %v2814 = vmul.f32 %v2751, %v2761
        %v2815 = vmul.f32 %v2754, %v2761
        %v2816 = vmul.f32 %v2757, %v2761
        %v2817 = vld [vmem:[%s3] sm:$0x1]
        %v2819 = vperm.slane %v2817, 0
        %v2821 = vadd.f32 %v2763, %v2819
        %v2822 = vadd.f32 %v2764, %v2819
        %v2823 = vadd.f32 %v2765, %v2819
        %v2824 = vadd.f32 %v2766, %v2819
        %v2825 = vadd.f32 %v2767, %v2819
        %v2826 = vadd.f32 %v2768, %v2819
        %v2827 = vadd.f32 %v2769, %v2819
        %v2828 = vadd.f32 %v2770, %v2819
        %v2829 = vadd.f32 %v2771, %v2819
        %v2830 = vadd.f32 %v2772, %v2819
        %v2831 = vadd.f32 %v2773, %v2819
        %v2832 = vadd.f32 %v2774, %v2819
        %v2833 = vadd.f32 %v2775, %v2819
        %v2834 = vadd.f32 %v2776, %v2819
        %v2835 = vadd.f32 %v2777, %v2819
        %v2836 = vadd.f32 %v2778, %v2819
        %v2837 = vadd.f32 %v2779, %v2819
        %v2838 = vadd.f32 %v2780, %v2819
        %v2839 = vadd.f32 %v2781, %v2819
        %v2840 = vadd.f32 %v2782, %v2819
        %v2841 = vadd.f32 %v2783, %v2819
        %v2842 = vadd.f32 %v2784, %v2819
        %v2843 = vadd.f32 %v2785, %v2819
        %v2844 = vadd.f32 %v2786, %v2819
        %v2845 = vadd.f32 %v2787, %v2819
        %v2846 = vadd.f32 %v2788, %v2819
        %v2847 = vadd.f32 %v2789, %v2819
        %v2848 = vadd.f32 %v2790, %v2819
        %v2849 = vadd.f32 %v2791, %v2819
        %v2850 = vadd.f32 %v2792, %v2819
        %v2851 = vadd.f32 %v2793, %v2819
        %v2852 = vadd.f32 %v2794, %v2819
        %v2853 = vadd.f32 %v2795, %v2819
        %v2854 = vadd.f32 %v2796, %v2819
        %v2855 = vadd.f32 %v2797, %v2819
        %v2856 = vadd.f32 %v2798, %v2819
        %v2857 = vadd.f32 %v2799, %v2819
        %v2858 = vadd.f32 %v2800, %v2819
        %v2859 = vadd.f32 %v2801, %v2819
        %v2860 = vadd.f32 %v2802, %v2819
        %v2861 = vadd.f32 %v2803, %v2819
        %v2862 = vadd.f32 %v2804, %v2819
        %v2863 = vadd.f32 %v2805, %v2819
        %v2864 = vadd.f32 %v2806, %v2819
        %v2865 = vadd.f32 %v2807, %v2819
        %v2866 = vadd.f32 %v2808, %v2819
        %v2867 = vadd.f32 %v2809, %v2819
        %v2868 = vadd.f32 %v2810, %v2819
        %v2869 = vadd.f32 %v2811, %v2819
        %v2870 = vadd.f32 %v2812, %v2819
        %v2871 = vadd.f32 %v2813, %v2819
        %v2872 = vadd.f32 %v2814, %v2819
        %v2873 = vadd.f32 %v2815, %v2819
        %v2874 = vadd.f32 %v2816, %v2819
        %v2875 = vmax.f32 %v2821, 0.0
        %v2876 = vmax.f32 %v2822, 0.0
        %v2877 = vmax.f32 %v2823, 0.0
        %v2878 = vmax.f32 %v2824, 0.0
        %v2879 = vmax.f32 %v2825, 0.0
        %v2880 = vmax.f32 %v2826, 0.0
        %v2881 = vmax.f32 %v2827, 0.0
        %v2882 = vmax.f32 %v2828, 0.0
        %v2883 = vmax.f32 %v2829, 0.0
        %v2884 = vmax.f32 %v2830, 0.0
        %v2885 = vmax.f32 %v2831, 0.0
        %v2886 = vmax.f32 %v2832, 0.0
        %v2887 = vmax.f32 %v2833, 0.0
        %v2888 = vmax.f32 %v2834, 0.0
        %v2889 = vmax.f32 %v2835, 0.0
        %v2890 = vmax.f32 %v2836, 0.0
        %v2891 = vmax.f32 %v2837, 0.0
        %v2892 = vmax.f32 %v2838, 0.0
        %v2893 = vmax.f32 %v2839, 0.0
        %v2894 = vmax.f32 %v2840, 0.0
        %v2895 = vmax.f32 %v2841, 0.0
        %v2896 = vmax.f32 %v2842, 0.0
        %v2897 = vmax.f32 %v2843, 0.0
        %v2898 = vmax.f32 %v2844, 0.0
        %v2899 = vmax.f32 %v2845, 0.0
        %v2900 = vmax.f32 %v2846, 0.0
        %v2901 = vmax.f32 %v2847, 0.0
        %v2902 = vmax.f32 %v2848, 0.0
        %v2903 = vmax.f32 %v2849, 0.0
        %v2904 = vmax.f32 %v2850, 0.0
        %v2905 = vmax.f32 %v2851, 0.0
        %v2906 = vmax.f32 %v2852, 0.0
        %v2907 = vmax.f32 %v2853, 0.0
        %v2908 = vmax.f32 %v2854, 0.0
        %v2909 = vmax.f32 %v2855, 0.0
        %v2910 = vmax.f32 %v2856, 0.0
        %v2911 = vmax.f32 %v2857, 0.0
        %v2912 = vmax.f32 %v2858, 0.0
        %v2913 = vmax.f32 %v2859, 0.0
        %v2914 = vmax.f32 %v2860, 0.0
        %v2915 = vmax.f32 %v2861, 0.0
        %v2916 = vmax.f32 %v2862, 0.0
        %v2917 = vmax.f32 %v2863, 0.0
        %v2918 = vmax.f32 %v2864, 0.0
        %v2919 = vmax.f32 %v2865, 0.0
        %v2920 = vmax.f32 %v2866, 0.0
        %v2921 = vmax.f32 %v2867, 0.0
        %v2922 = vmax.f32 %v2868, 0.0
        %v2923 = vmax.f32 %v2869, 0.0
        %v2924 = vmax.f32 %v2870, 0.0
        %v2925 = vmax.f32 %v2871, 0.0
        %v2926 = vmax.f32 %v2872, 0.0
        %v2927 = vmax.f32 %v2873, 0.0
        %v2928 = vmax.f32 %v2874, 0.0
        %2929 = vst [vmem:[#allocation3] sm:$0xff] %v2875
        %2930 = vst [vmem:[#allocation3 + $0x8] sm:$0xff] %v2876
        %2931 = vst [vmem:[#allocation3 + $0x10] sm:$0xff] %v2877
        %2932 = vst [vmem:[#allocation3 + $0x18] sm:$0xff] %v2878
        %2933 = vst [vmem:[#allocation3 + $0x20] sm:$0xff] %v2879
        %2934 = vst [vmem:[#allocation3 + $0x28] sm:$0xff] %v2880
        %2935 = vst [vmem:[#allocation3 + $0x30] sm:$0xff] %v2881
        %2936 = vst [vmem:[#allocation3 + $0x38] sm:$0xff] %v2882
        %2937 = vst [vmem:[#allocation3 + $0x40] sm:$0xff] %v2883
        %2938 = vst [vmem:[#allocation3 + $0x48] sm:$0xff] %v2884
        %2939 = vst [vmem:[#allocation3 + $0x50] sm:$0xff] %v2885
        %2940 = vst [vmem:[#allocation3 + $0x58] sm:$0xff] %v2886
        %2941 = vst [vmem:[#allocation3 + $0x60] sm:$0xff] %v2887
        %2942 = vst [vmem:[#allocation3 + $0x68] sm:$0xff] %v2888
        %2943 = vst [vmem:[#allocation3 + $0x70] sm:$0xff] %v2889
        %2944 = vst [vmem:[#allocation3 + $0x78] sm:$0xff] %v2890
        %2945 = vst [vmem:[#allocation3 + $0x80] sm:$0xff] %v2891
        %2946 = vst [vmem:[#allocation3 + $0x88] sm:$0xff] %v2892
        %2947 = vst [vmem:[#allocation3 + $0x90] sm:$0xff] %v2893
        %2948 = vst [vmem:[#allocation3 + $0x98] sm:$0xff] %v2894
        %2949 = vst [vmem:[#allocation3 + $0xa0] sm:$0xff] %v2895
        %2950 = vst [vmem:[#allocation3 + $0xa8] sm:$0xff] %v2896
        %2951 = vst [vmem:[#allocation3 + $0xb0] sm:$0xff] %v2897
        %2952 = vst [vmem:[#allocation3 + $0xb8] sm:$0xff] %v2898
        %2953 = vst [vmem:[#allocation3 + $0xc0] sm:$0xff] %v2899
        %2954 = vst [vmem:[#allocation3 + $0xc8] sm:$0xff] %v2900
        %2955 = vst [vmem:[#allocation3 + $0xd0] sm:$0xff] %v2901
        %2956 = vst [vmem:[#allocation3 + $0xd8] sm:$0xff] %v2902
        %2957 = vst [vmem:[#allocation3 + $0xe0] sm:$0xff] %v2903
        %2958 = vst [vmem:[#allocation3 + $0xe8] sm:$0xff] %v2904
        %2959 = vst [vmem:[#allocation3 + $0xf0] sm:$0xff] %v2905
        %2960 = vst [vmem:[#allocation3 + $0xf8] sm:$0xff] %v2906
        %2961 = vst [vmem:[#allocation3 + $0x100] sm:$0xff] %v2907
        %2962 = vst [vmem:[#allocation3 + $0x108] sm:$0xff] %v2908
        %2963 = vst [vmem:[#allocation3 + $0x110] sm:$0xff] %v2909
        %2964 = vst [vmem:[#allocation3 + $0x118] sm:$0xff] %v2910
        %2965 = vst [vmem:[#allocation3 + $0x120] sm:$0xff] %v2911
        %2966 = vst [vmem:[#allocation3 + $0x128] sm:$0xff] %v2912
        %2967 = vst [vmem:[#allocation3 + $0x130] sm:$0xff] %v2913
        %2968 = vst [vmem:[#allocation3 + $0x138] sm:$0xff] %v2914
        %2969 = vst [vmem:[#allocation3 + $0x140] sm:$0xff] %v2915
        %2970 = vst [vmem:[#allocation3 + $0x148] sm:$0xff] %v2916
        %2971 = vst [vmem:[#allocation3 + $0x150] sm:$0xff] %v2917
        %2972 = vst [vmem:[#allocation3 + $0x158] sm:$0xff] %v2918
        %2973 = vst [vmem:[#allocation3 + $0x160] sm:$0xff] %v2919
        %2974 = vst [vmem:[#allocation3 + $0x168] sm:$0xff] %v2920
        %2975 = vst [vmem:[#allocation3 + $0x170] sm:$0xff] %v2921
        %2976 = vst [vmem:[#allocation3 + $0x178] sm:$0xff] %v2922
        %2977 = vst [vmem:[#allocation3 + $0x180] sm:$0xff] %v2923
        %2978 = vst [vmem:[#allocation3 + $0x188] sm:$0xff] %v2924
        %2979 = vst [vmem:[#allocation3 + $0x190] sm:$0xff] %v2925
        %2980 = vst [vmem:[#allocation3 + $0x198] sm:$0xff] %v2926
        %2981 = vst [vmem:[#allocation3 + $0x1a0] sm:$0xff] %v2927
        %2982 = vst [vmem:[#allocation3 + $0x1a8] sm:$0xff] %v2928
        %2983 = vst [vmem:[#allocation3] sm:$0x1] 0.0
        %2984 = vst [vmem:[#allocation3 + $0x18] sm:$0x1] 0.0
        %2985 = vst [vmem:[#allocation3 + $0x30] sm:$0x1] 0.0
        %2986 = vst [vmem:[#allocation3 + $0x48] sm:$0x1] 0.0
        %2987 = vst [vmem:[#allocation3 + $0x60] sm:$0x1] 0.0
        %2988 = vst [vmem:[#allocation3 + $0x78] sm:$0x1] 0.0
        %2989 = vst [vmem:[#allocation3 + $0x90] sm:$0x1] 0.0
        %2990 = vst [vmem:[#allocation3 + $0xa8] sm:$0x1] 0.0
        %2991 = vst [vmem:[#allocation3 + $0xc0] sm:$0x1] 0.0
        %2992 = vst [vmem:[#allocation3 + $0xd8] sm:$0x1] 0.0
        %2993 = vst [vmem:[#allocation3 + $0xf0] sm:$0x1] 0.0
        %2994 = vst [vmem:[#allocation3 + $0x108] sm:$0x1] 0.0
        %2995 = vst [vmem:[#allocation3 + $0x120] sm:$0x1] 0.0
        %2996 = vst [vmem:[#allocation3 + $0x138] sm:$0x1] 0.0
        %2997 = vst [vmem:[#allocation3 + $0x150] sm:$0x1] 0.0
        %2998 = vst [vmem:[#allocation3 + $0x168] sm:$0x1] 0.0
        %2999 = vst [vmem:[#allocation3 + $0x180] sm:$0x1] 0.0
        %3000 = vst [vmem:[#allocation3 + $0x198] sm:$0x1] 0.0
        %3001 = vst [vmem:[#allocation3 + $0x11] sm:$0x1] 0.0
        %3002 = vst [vmem:[#allocation3 + $0x29] sm:$0x1] 0.0
        %3003 = vst [vmem:[#allocation3 + $0x41] sm:$0x1] 0.0
        %3004 = vst [vmem:[#allocation3 + $0x59] sm:$0x1] 0.0
        %3005 = vst [vmem:[#allocation3 + $0x71] sm:$0x1] 0.0
        %3006 = vst [vmem:[#allocation3 + $0x89] sm:$0x1] 0.0
        %3007 = vst [vmem:[#allocation3 + $0xa1] sm:$0x1] 0.0
        %3008 = vst [vmem:[#allocation3 + $0xb9] sm:$0x1] 0.0
        %3009 = vst [vmem:[#allocation3 + $0xd1] sm:$0x1] 0.0
        %3010 = vst [vmem:[#allocation3 + $0xe9] sm:$0x1] 0.0
        %3011 = vst [vmem:[#allocation3 + $0x101] sm:$0x1] 0.0
        %3012 = vst [vmem:[#allocation3 + $0x119] sm:$0x1] 0.0
        %3013 = vst [vmem:[#allocation3 + $0x131] sm:$0x1] 0.0
        %3014 = vst [vmem:[#allocation3 + $0x149] sm:$0x1] 0.0
        %3015 = vst [vmem:[#allocation3 + $0x161] sm:$0x1] 0.0
        %3016 = vst [vmem:[#allocation3 + $0x179] sm:$0x1] 0.0
        %3017 = vst [vmem:[#allocation3 + $0x191] sm:$0x1] 0.0
        %3018 = vst [vmem:[#allocation3 + $0x1a9] sm:$0x1] 0.0
        // Predicated region
        $region65: #{tpu_custom_call.1} parent=43 // pred_check
          %p3019 = pneg %p292
        $region66: #{tpu_custom_call.1} parent=43 // pred_check_branch
          %3021 = sbr.rel (%p3019) target = $region68
        $region67: #{tpu_custom_call.1} parent=43 // pred_region
          %3022 = vst [vmem:[#allocation3] sm:$0xff] 0.0
          %3023 = vst [vmem:[#allocation3 + $0x8] sm:$0xff] 0.0
          %3024 = vst [vmem:[#allocation3 + $0x10] sm:$0xff] 0.0
          %s3025 = scalar_lea.vmem [#allocation3], 408
          %3026 = vst [vmem:[%s3025] sm:$0xff] 0.0
          %3027 = vst [vmem:[%s3025 + $0x8] sm:$0xff] 0.0
          %3028 = vst [vmem:[%s3025 + $0x10] sm:$0xff] 0.0
        $region68: #{tpu_custom_call.1} parent=43 // pred_fallthru
          _
        %v3029 = vld [vmem:[#allocation3] sm:$0xff]
        %v3030 = vld [vmem:[#allocation3 + $0x8] sm:$0xff]
        %v3031 = vld [vmem:[#allocation3 + $0x10] sm:$0xff]
        %v3032 = vld [vmem:[#allocation3 + $0x18] sm:$0xff]
        %v3033 = vld [vmem:[#allocation3 + $0x20] sm:$0xff]
        %v3034 = vld [vmem:[#allocation3 + $0x28] sm:$0xff]
        %v3035 = vld [vmem:[#allocation3 + $0x30] sm:$0xff]
        %v3036 = vld [vmem:[#allocation3 + $0x38] sm:$0xff]
        %v3037 = vld [vmem:[#allocation3 + $0x40] sm:$0xff]
        %v3038 = vld [vmem:[#allocation3 + $0x48] sm:$0xff]
        %v3039 = vld [vmem:[#allocation3 + $0x50] sm:$0xff]
        %v3040 = vld [vmem:[#allocation3 + $0x58] sm:$0xff]
        %v3041 = vld [vmem:[#allocation3 + $0x60] sm:$0xff]
        %v3042 = vld [vmem:[#allocation3 + $0x68] sm:$0xff]
        %v3043 = vld [vmem:[#allocation3 + $0x70] sm:$0xff]
        %v3044 = vld [vmem:[#allocation3 + $0x78] sm:$0xff]
        %v3045 = vld [vmem:[#allocation3 + $0x80] sm:$0xff]
        %v3046 = vld [vmem:[#allocation3 + $0x88] sm:$0xff]
        %v3047 = vld [vmem:[#allocation3 + $0x90] sm:$0xff]
        %v3048 = vld [vmem:[#allocation3 + $0x98] sm:$0xff]
        %v3049 = vld [vmem:[#allocation3 + $0xa0] sm:$0xff]
        %v3050 = vld [vmem:[#allocation3 + $0xa8] sm:$0xff]
        %v3051 = vld [vmem:[#allocation3 + $0xb0] sm:$0xff]
        %v3052 = vld [vmem:[#allocation3 + $0xb8] sm:$0xff]
        %v3053 = vld [vmem:[#allocation3 + $0xc0] sm:$0xff]
        %v3054 = vld [vmem:[#allocation3 + $0xc8] sm:$0xff]
        %v3055 = vld [vmem:[#allocation3 + $0xd0] sm:$0xff]
        %v3056 = vld [vmem:[#allocation3 + $0xd8] sm:$0xff]
        %v3057 = vld [vmem:[#allocation3 + $0xe0] sm:$0xff]
        %v3058 = vld [vmem:[#allocation3 + $0xe8] sm:$0xff]
        %v3059 = vld [vmem:[#allocation3 + $0xf0] sm:$0xff]
        %v3060 = vld [vmem:[#allocation3 + $0xf8] sm:$0xff]
        %v3061 = vld [vmem:[#allocation3 + $0x100] sm:$0xff]
        %v3062 = vld [vmem:[#allocation3 + $0x108] sm:$0xff]
        %v3063 = vld [vmem:[#allocation3 + $0x110] sm:$0xff]
        %v3064 = vld [vmem:[#allocation3 + $0x118] sm:$0xff]
        %v3065 = vld [vmem:[#allocation3 + $0x120] sm:$0xff]
        %v3066 = vld [vmem:[#allocation3 + $0x128] sm:$0xff]
        %v3067 = vld [vmem:[#allocation3 + $0x130] sm:$0xff]
        %v3068 = vld [vmem:[#allocation3 + $0x138] sm:$0xff]
        %v3069 = vld [vmem:[#allocation3 + $0x140] sm:$0xff]
        %v3070 = vld [vmem:[#allocation3 + $0x148] sm:$0xff]
        %v3071 = vld [vmem:[#allocation3 + $0x150] sm:$0xff]
        %v3072 = vld [vmem:[#allocation3 + $0x158] sm:$0xff]
        %v3073 = vld [vmem:[#allocation3 + $0x160] sm:$0xff]
        %v3074 = vld [vmem:[#allocation3 + $0x168] sm:$0xff]
        %v3075 = vld [vmem:[#allocation3 + $0x170] sm:$0xff]
        %v3076 = vld [vmem:[#allocation3 + $0x178] sm:$0xff]
        %v3077 = vld [vmem:[#allocation3 + $0x180] sm:$0xff]
        %v3078 = vld [vmem:[#allocation3 + $0x188] sm:$0xff]
        %v3079 = vld [vmem:[#allocation3 + $0x190] sm:$0xff]
        %v3080 = vld [vmem:[#allocation3 + $0x198] sm:$0xff]
        %v3081 = vld [vmem:[#allocation3 + $0x1a0] sm:$0xff]
        %v3082 = vld [vmem:[#allocation3 + $0x1a8] sm:$0xff]
        %v3131 = vrot.slane %v3029, 1
        %v3132 = vrot.slane %v3030, 1
        %v3133 = vsel %vm594, %v3131, %v3132
        %v3134 = vrot.slane %v3031, 1
        %v3135 = vsel %vm594, %v3132, %v3134
        %v3136 = vrot.slane %v3032, 1
        %v3137 = vrot.slane %v3033, 1
        %v3138 = vsel %vm594, %v3136, %v3137
        %v3139 = vrot.slane %v3034, 1
        %v3140 = vsel %vm594, %v3137, %v3139
        %v3141 = vrot.slane %v3035, 1
        %v3142 = vrot.slane %v3036, 1
        %v3143 = vsel %vm594, %v3141, %v3142
        %v3144 = vrot.slane %v3037, 1
        %v3145 = vsel %vm594, %v3142, %v3144
        %v3146 = vrot.slane %v3038, 1
        %v3147 = vrot.slane %v3039, 1
        %v3148 = vsel %vm594, %v3146, %v3147
        %v3149 = vrot.slane %v3040, 1
        %v3150 = vsel %vm594, %v3147, %v3149
        %v3151 = vrot.slane %v3041, 1
        %v3152 = vrot.slane %v3042, 1
        %v3153 = vsel %vm594, %v3151, %v3152
        %v3154 = vrot.slane %v3043, 1
        %v3155 = vsel %vm594, %v3152, %v3154
        %v3156 = vrot.slane %v3044, 1
        %v3157 = vrot.slane %v3045, 1
        %v3158 = vsel %vm594, %v3156, %v3157
        %v3159 = vrot.slane %v3046, 1
        %v3160 = vsel %vm594, %v3157, %v3159
        %v3161 = vrot.slane %v3047, 1
        %v3162 = vrot.slane %v3048, 1
        %v3163 = vsel %vm594, %v3161, %v3162
        %v3164 = vrot.slane %v3049, 1
        %v3165 = vsel %vm594, %v3162, %v3164
        %v3166 = vrot.slane %v3050, 1
        %v3167 = vrot.slane %v3051, 1
        %v3168 = vsel %vm594, %v3166, %v3167
        %v3169 = vrot.slane %v3052, 1
        %v3170 = vsel %vm594, %v3167, %v3169
        %v3171 = vrot.slane %v3053, 1
        %v3172 = vrot.slane %v3054, 1
        %v3173 = vsel %vm594, %v3171, %v3172
        %v3174 = vrot.slane %v3055, 1
        %v3175 = vsel %vm594, %v3172, %v3174
        %v3176 = vrot.slane %v3056, 1
        %v3177 = vrot.slane %v3057, 1
        %v3178 = vsel %vm594, %v3176, %v3177
        %v3179 = vrot.slane %v3058, 1
        %v3180 = vsel %vm594, %v3177, %v3179
        %v3181 = vrot.slane %v3059, 1
        %v3182 = vrot.slane %v3060, 1
        %v3183 = vsel %vm594, %v3181, %v3182
        %v3184 = vrot.slane %v3061, 1
        %v3185 = vsel %vm594, %v3182, %v3184
        %v3186 = vrot.slane %v3062, 1
        %v3187 = vrot.slane %v3063, 1
        %v3188 = vsel %vm594, %v3186, %v3187
        %v3189 = vrot.slane %v3064, 1
        %v3190 = vsel %vm594, %v3187, %v3189
        %v3191 = vrot.slane %v3065, 1
        %v3192 = vrot.slane %v3066, 1
        %v3193 = vsel %vm594, %v3191, %v3192
        %v3194 = vrot.slane %v3067, 1
        %v3195 = vsel %vm594, %v3192, %v3194
        %v3196 = vrot.slane %v3068, 1
        %v3197 = vrot.slane %v3069, 1
        %v3198 = vsel %vm594, %v3196, %v3197
        %v3199 = vrot.slane %v3070, 1
        %v3200 = vsel %vm594, %v3197, %v3199
        %v3201 = vrot.slane %v3071, 1
        %v3202 = vrot.slane %v3072, 1
        %v3203 = vsel %vm594, %v3201, %v3202
        %v3204 = vrot.slane %v3073, 1
        %v3205 = vsel %vm594, %v3202, %v3204
        %v3206 = vrot.slane %v3074, 1
        %v3207 = vrot.slane %v3075, 1
        %v3208 = vsel %vm594, %v3206, %v3207
        %v3209 = vrot.slane %v3076, 1
        %v3210 = vsel %vm594, %v3207, %v3209
        %v3243 = vrot.slane %v3029, 2
        %v3244 = vrot.slane %v3030, 2
        %v3245 = vsel %vm775, %v3243, %v3244
        %v3246 = vrot.slane %v3031, 2
        %v3247 = vsel %vm775, %v3244, %v3246
        %v3248 = vrot.slane %v3032, 2
        %v3249 = vrot.slane %v3033, 2
        %v3250 = vsel %vm775, %v3248, %v3249
        %v3251 = vrot.slane %v3034, 2
        %v3252 = vsel %vm775, %v3249, %v3251
        %v3253 = vrot.slane %v3035, 2
        %v3254 = vrot.slane %v3036, 2
        %v3255 = vsel %vm775, %v3253, %v3254
        %v3256 = vrot.slane %v3037, 2
        %v3257 = vsel %vm775, %v3254, %v3256
        %v3258 = vrot.slane %v3038, 2
        %v3259 = vrot.slane %v3039, 2
        %v3260 = vsel %vm775, %v3258, %v3259
        %v3261 = vrot.slane %v3040, 2
        %v3262 = vsel %vm775, %v3259, %v3261
        %v3263 = vrot.slane %v3041, 2
        %v3264 = vrot.slane %v3042, 2
        %v3265 = vsel %vm775, %v3263, %v3264
        %v3266 = vrot.slane %v3043, 2
        %v3267 = vsel %vm775, %v3264, %v3266
        %v3268 = vrot.slane %v3044, 2
        %v3269 = vrot.slane %v3045, 2
        %v3270 = vsel %vm775, %v3268, %v3269
        %v3271 = vrot.slane %v3046, 2
        %v3272 = vsel %vm775, %v3269, %v3271
        %v3273 = vrot.slane %v3047, 2
        %v3274 = vrot.slane %v3048, 2
        %v3275 = vsel %vm775, %v3273, %v3274
        %v3276 = vrot.slane %v3049, 2
        %v3277 = vsel %vm775, %v3274, %v3276
        %v3278 = vrot.slane %v3050, 2
        %v3279 = vrot.slane %v3051, 2
        %v3280 = vsel %vm775, %v3278, %v3279
        %v3281 = vrot.slane %v3052, 2
        %v3282 = vsel %vm775, %v3279, %v3281
        %v3283 = vrot.slane %v3053, 2
        %v3284 = vrot.slane %v3054, 2
        %v3285 = vsel %vm775, %v3283, %v3284
        %v3286 = vrot.slane %v3055, 2
        %v3287 = vsel %vm775, %v3284, %v3286
        %v3288 = vrot.slane %v3056, 2
        %v3289 = vrot.slane %v3057, 2
        %v3290 = vsel %vm775, %v3288, %v3289
        %v3291 = vrot.slane %v3058, 2
        %v3292 = vsel %vm775, %v3289, %v3291
        %v3293 = vrot.slane %v3059, 2
        %v3294 = vrot.slane %v3060, 2
        %v3295 = vsel %vm775, %v3293, %v3294
        %v3296 = vrot.slane %v3061, 2
        %v3297 = vsel %vm775, %v3294, %v3296
        %v3298 = vrot.slane %v3062, 2
        %v3299 = vrot.slane %v3063, 2
        %v3300 = vsel %vm775, %v3298, %v3299
        %v3301 = vrot.slane %v3064, 2
        %v3302 = vsel %vm775, %v3299, %v3301
        %v3303 = vrot.slane %v3065, 2
        %v3304 = vrot.slane %v3066, 2
        %v3305 = vsel %vm775, %v3303, %v3304
        %v3306 = vrot.slane %v3067, 2
        %v3307 = vsel %vm775, %v3304, %v3306
        %v3308 = vrot.slane %v3068, 2
        %v3309 = vrot.slane %v3069, 2
        %v3310 = vsel %vm775, %v3308, %v3309
        %v3311 = vrot.slane %v3070, 2
        %v3312 = vsel %vm775, %v3309, %v3311
        %v3313 = vrot.slane %v3071, 2
        %v3314 = vrot.slane %v3072, 2
        %v3315 = vsel %vm775, %v3313, %v3314
        %v3316 = vrot.slane %v3073, 2
        %v3317 = vsel %vm775, %v3314, %v3316
        %v3318 = vrot.slane %v3074, 2
        %v3319 = vrot.slane %v3075, 2
        %v3320 = vsel %vm775, %v3318, %v3319
        %v3321 = vrot.slane %v3076, 2
        %v3322 = vsel %vm775, %v3319, %v3321
        %v3358 = vrot.slane %v3077, 1
        %v3359 = vrot.slane %v3078, 1
        %v3360 = vsel %vm594, %v3358, %v3359
        %v3361 = vrot.slane %v3079, 1
        %v3362 = vsel %vm594, %v3359, %v3361
        %v3365 = vrot.slane %v3077, 2
        %v3366 = vrot.slane %v3078, 2
        %v3367 = vsel %vm775, %v3365, %v3366
        %v3368 = vrot.slane %v3079, 2
        %v3369 = vsel %vm775, %v3366, %v3368
        %v3375 = vrot.slane %v3080, 1
        %v3376 = vrot.slane %v3081, 1
        %v3377 = vsel %vm594, %v3375, %v3376
        %v3378 = vrot.slane %v3082, 1
        %v3379 = vsel %vm594, %v3376, %v3378
        %v3382 = vrot.slane %v3080, 2
        %v3383 = vrot.slane %v3081, 2
        %v3384 = vsel %vm775, %v3382, %v3383
        %v3385 = vrot.slane %v3082, 2
        %v3386 = vsel %vm775, %v3383, %v3385
        %v3389 = vld [vmem:[#allocation8] sm:$0xff]
        %v3390 = vld [vmem:[#allocation8 + $0x8] sm:$0xff]
        %v3391 = vld [vmem:[#allocation8 + $0x10] sm:$0xff]
        %v3392 = vld [vmem:[#allocation8 + $0x18] sm:$0xff]
        %v3393 = vld [vmem:[#allocation8 + $0x20] sm:$0xff]
        %v3394 = vld [vmem:[#allocation8 + $0x28] sm:$0xff]
        %v3395 = vld [vmem:[#allocation8 + $0x30] sm:$0xff]
        %v3396 = vld [vmem:[#allocation8 + $0x38] sm:$0xff]
        %v3397 = vld [vmem:[#allocation8 + $0x40] sm:$0xff]
        %v3398 = vld [vmem:[#allocation8 + $0x48] sm:$0xff]
        %v3399 = vld [vmem:[#allocation8 + $0x50] sm:$0xff]
        %v3400 = vld [vmem:[#allocation8 + $0x58] sm:$0xff]
        %v3401 = vld [vmem:[#allocation8 + $0x60] sm:$0xff]
        %v3402 = vld [vmem:[#allocation8 + $0x68] sm:$0xff]
        %v3403 = vld [vmem:[#allocation8 + $0x70] sm:$0xff]
        %v3404 = vld [vmem:[#allocation8 + $0x78] sm:$0xff]
        %v3405 = vld [vmem:[#allocation8 + $0x80] sm:$0xff]
        %v3406 = vld [vmem:[#allocation8 + $0x88] sm:$0xff]
        %v3407 = vld [vmem:[#allocation8 + $0x90] sm:$0xff]
        %v3408 = vld [vmem:[#allocation8 + $0x98] sm:$0xff]
        %v3409 = vld [vmem:[#allocation8 + $0xa0] sm:$0xff]
        %v3410 = vld [vmem:[#allocation8 + $0xa8] sm:$0xff]
        %v3411 = vld [vmem:[#allocation8 + $0xb0] sm:$0xff]
        %v3412 = vld [vmem:[#allocation8 + $0xb8] sm:$0xff]
        %v3413 = vld [vmem:[#allocation8 + $0xc0] sm:$0xff]
        %v3414 = vld [vmem:[#allocation8 + $0xc8] sm:$0xff]
        %v3415 = vld [vmem:[#allocation8 + $0xd0] sm:$0xff]
        %v3416 = vld [vmem:[#allocation8 + $0xd8] sm:$0xff]
        %v3417 = vld [vmem:[#allocation8 + $0xe0] sm:$0xff]
        %v3418 = vld [vmem:[#allocation8 + $0xe8] sm:$0xff]
        %v3419 = vld [vmem:[#allocation8 + $0xf0] sm:$0xff]
        %v3420 = vld [vmem:[#allocation8 + $0xf8] sm:$0xff]
        %v3421 = vld [vmem:[#allocation8 + $0x100] sm:$0xff]
        %v3422 = vld [vmem:[#allocation8 + $0x108] sm:$0xff]
        %v3423 = vld [vmem:[#allocation8 + $0x110] sm:$0xff]
        %v3424 = vld [vmem:[#allocation8 + $0x118] sm:$0xff]
        %v3425 = vld [vmem:[#allocation8 + $0x120] sm:$0xff]
        %v3426 = vld [vmem:[#allocation8 + $0x128] sm:$0xff]
        %v3427 = vld [vmem:[#allocation8 + $0x130] sm:$0xff]
        %v3428 = vld [vmem:[#allocation8 + $0x138] sm:$0xff]
        %v3429 = vld [vmem:[#allocation8 + $0x140] sm:$0xff]
        %v3430 = vld [vmem:[#allocation8 + $0x148] sm:$0xff]
        %v3431 = vld [vmem:[#allocation8 + $0x150] sm:$0xff]
        %v3432 = vld [vmem:[#allocation8 + $0x158] sm:$0xff]
        %v3433 = vld [vmem:[#allocation8 + $0x160] sm:$0xff]
        %v3434 = vld [vmem:[#allocation8 + $0x168] sm:$0xff]
        %v3435 = vld [vmem:[#allocation8 + $0x170] sm:$0xff]
        %v3436 = vld [vmem:[#allocation8 + $0x178] sm:$0xff]
        %v3437 = vld [vmem:[#allocation8 + $0x180] sm:$0xff]
        %v3438 = vld [vmem:[#allocation8 + $0x188] sm:$0xff]
        %v3439 = vld [vmem:[#allocation8 + $0x190] sm:$0xff]
        %v3440 = vld [vmem:[#allocation8 + $0x198] sm:$0xff]
        %v3441 = vld [vmem:[#allocation8 + $0x1a0] sm:$0xff]
        %v3442 = vld [vmem:[#allocation8 + $0x1a8] sm:$0xff]
        %v3443 = vld [vmem:[#allocation8 + $0x1b0] sm:$0xff]
        %v3444 = vld [vmem:[#allocation8 + $0x1b8] sm:$0xff]
        %v3445 = vld [vmem:[#allocation8 + $0x1c0] sm:$0xff]
        %v3446 = vld [vmem:[#allocation8 + $0x1c8] sm:$0xff]
        %v3447 = vld [vmem:[#allocation8 + $0x1d0] sm:$0xff]
        %v3448 = vld [vmem:[#allocation8 + $0x1d8] sm:$0xff]
        %v3449 = vld [vmem:[#allocation8 + $0x1e0] sm:$0xff]
        %v3450 = vld [vmem:[#allocation8 + $0x1e8] sm:$0xff]
        %v3451 = vld [vmem:[#allocation8 + $0x1f0] sm:$0xff]
        %v3452 = vld [vmem:[#allocation8 + $0x1f8] sm:$0xff]
        %v3453 = vld [vmem:[#allocation8 + $0x200] sm:$0xff]
        %v3454 = vld [vmem:[#allocation8 + $0x208] sm:$0xff]
        %v3455 = vld [vmem:[#allocation8 + $0x210] sm:$0xff]
        %v3456 = vld [vmem:[#allocation8 + $0x218] sm:$0xff]
        %v3457 = vld [vmem:[#allocation8 + $0x220] sm:$0xff]
        %v3458 = vld [vmem:[#allocation8 + $0x228] sm:$0xff]
        %v3459 = vld [vmem:[#allocation8 + $0x230] sm:$0xff]
        %v3460 = vld [vmem:[#allocation8 + $0x238] sm:$0xff]
        %v3461 = vld [vmem:[#allocation8 + $0x240] sm:$0xff]
        %v3462 = vld [vmem:[#allocation8 + $0x248] sm:$0xff]
        %v3463 = vld [vmem:[#allocation8 + $0x250] sm:$0xff]
        %v3464 = vld [vmem:[#allocation8 + $0x258] sm:$0xff]
        %v3465 = vld [vmem:[#allocation8 + $0x260] sm:$0xff]
        %v3466 = vld [vmem:[#allocation8 + $0x268] sm:$0xff]
        %v3467 = vld [vmem:[#allocation8 + $0x270] sm:$0xff]
        %v3468 = vld [vmem:[#allocation8 + $0x278] sm:$0xff]
        %v3469 = vld [vmem:[#allocation8 + $0x280] sm:$0xff]
        %v3470 = vld [vmem:[#allocation8 + $0x288] sm:$0xff]
        %v3471 = vld [vmem:[#allocation8 + $0x290] sm:$0xff]
        %v3472 = vld [vmem:[#allocation8 + $0x298] sm:$0xff]
        %v3473 = vld [vmem:[#allocation8 + $0x2a0] sm:$0xff]
        %v3474 = vld [vmem:[#allocation8 + $0x2a8] sm:$0xff]
        %v3475 = vld [vmem:[#allocation8 + $0x2b0] sm:$0xff]
        %v3476 = vld [vmem:[#allocation8 + $0x2b8] sm:$0xff]
        %v3477 = vld [vmem:[#allocation8 + $0x2c0] sm:$0xff]
        %v3478 = vld [vmem:[#allocation8 + $0x2c8] sm:$0xff]
        %v3479 = vld [vmem:[#allocation8 + $0x2d0] sm:$0xff]
        %v3480 = vld [vmem:[#allocation8 + $0x2d8] sm:$0xff]
        %v3481 = vld [vmem:[#allocation8 + $0x2e0] sm:$0xff]
        %v3482 = vld [vmem:[#allocation8 + $0x2e8] sm:$0xff]
        %v3483 = vld [vmem:[#allocation8 + $0x2f0] sm:$0xff]
        %v3484 = vld [vmem:[#allocation8 + $0x2f8] sm:$0xff]
        %v3485 = vld [vmem:[#allocation8 + $0x300] sm:$0xff]
        %v3486 = vld [vmem:[#allocation8 + $0x308] sm:$0xff]
        %v3487 = vld [vmem:[#allocation8 + $0x310] sm:$0xff]
        %v3488 = vld [vmem:[#allocation8 + $0x318] sm:$0xff]
        %v3489 = vld [vmem:[#allocation8 + $0x320] sm:$0xff]
        %v3490 = vld [vmem:[#allocation8 + $0x328] sm:$0xff]
        %v3491 = vld [vmem:[#allocation8 + $0x330] sm:$0xff]
        %v3492 = vld [vmem:[#allocation8 + $0x338] sm:$0xff]
        %v3493 = vld [vmem:[#allocation8 + $0x340] sm:$0xff]
        %v3494 = vld [vmem:[#allocation8 + $0x348] sm:$0xff]
        %v3495 = vld [vmem:[#allocation8 + $0x350] sm:$0xff]
        %v3496 = vld [vmem:[#allocation8 + $0x358] sm:$0xff]
        %v3497 = vld [vmem:[#allocation8 + $0x360] sm:$0xff]
        %v3498 = vld [vmem:[#allocation8 + $0x368] sm:$0xff]
        %v3499 = vld [vmem:[#allocation8 + $0x370] sm:$0xff]
        %v3500 = vld [vmem:[#allocation8 + $0x378] sm:$0xff]
        %v3501 = vld [vmem:[#allocation8 + $0x380] sm:$0xff]
        %v3502 = vld [vmem:[#allocation8 + $0x388] sm:$0xff]
        %v3503 = vld [vmem:[#allocation8 + $0x390] sm:$0xff]
        %v3504 = vld [vmem:[#allocation8 + $0x398] sm:$0xff]
        %v3505 = vld [vmem:[#allocation8 + $0x3a0] sm:$0xff]
        %v3506 = vld [vmem:[#allocation8 + $0x3a8] sm:$0xff]
        %v3507 = vld [vmem:[#allocation8 + $0x3b0] sm:$0xff]
        %v3508 = vld [vmem:[#allocation8 + $0x3b8] sm:$0xff]
        %v3509 = vld [vmem:[#allocation8 + $0x3c0] sm:$0xff]
        %v3510 = vld [vmem:[#allocation8 + $0x3c8] sm:$0xff]
        %v3511 = vld [vmem:[#allocation8 + $0x3d0] sm:$0xff]
        %v3512 = vld [vmem:[#allocation8 + $0x3d8] sm:$0xff]
        %v3513 = vld [vmem:[#allocation8 + $0x3e0] sm:$0xff]
        %v3514 = vld [vmem:[#allocation8 + $0x3e8] sm:$0xff]
        %v3515 = vld [vmem:[#allocation8 + $0x3f0] sm:$0xff]
        %v3516 = vld [vmem:[#allocation8 + $0x3f8] sm:$0xff]
        %v3517 = vld [vmem:[#allocation8 + $0x400] sm:$0xff]
        %v3518 = vld [vmem:[#allocation8 + $0x408] sm:$0xff]
        %v3519 = vld [vmem:[#allocation8 + $0x410] sm:$0xff]
        %v3520 = vld [vmem:[#allocation8 + $0x418] sm:$0xff]
        %v3521 = vld [vmem:[#allocation8 + $0x420] sm:$0xff]
        %v3522 = vld [vmem:[#allocation8 + $0x428] sm:$0xff]
        %v3523 = vld [vmem:[#allocation8 + $0x430] sm:$0xff]
        %v3524 = vld [vmem:[#allocation8 + $0x438] sm:$0xff]
        %v3525 = vld [vmem:[#allocation8 + $0x440] sm:$0xff]
        %v3526 = vld [vmem:[#allocation8 + $0x448] sm:$0xff]
        %v3527 = vld [vmem:[#allocation8 + $0x450] sm:$0xff]
        %v3528 = vld [vmem:[#allocation8 + $0x458] sm:$0xff]
        %v3529 = vld [vmem:[#allocation8 + $0x460] sm:$0xff]
        %v3530 = vld [vmem:[#allocation8 + $0x468] sm:$0xff]
        %v3531 = vld [vmem:[#allocation8 + $0x470] sm:$0xff]
        %v3532 = vld [vmem:[#allocation8 + $0x478] sm:$0xff]
        %3533 = vmatpush.msra.mxu0 %v3404
        %3534 = vmatpush.msra.mxu0 %v3403
        %3535 = vmatpush.msra.mxu0 %v3402
        %3536 = vmatpush.msra.mxu0 %v3401
        %3537 = vmatpush.msra.mxu0 %v3400
        %3538 = vmatpush.msra.mxu0 %v3399
        %3539 = vmatpush.msra.mxu0 %v3398
        %3540 = vmatpush.msra.mxu0 %v3397
        %3541 = vmatpush.msra.mxu0 %v3396
        %3542 = vmatpush.msra.mxu0 %v3395
        %3543 = vmatpush.msra.mxu0 %v3394
        %3544 = vmatpush.msra.mxu0 %v3393
        %3545 = vmatpush.msra.mxu0 %v3392
        %3546 = vmatpush.msra.mxu0 %v3391
        %3547 = vmatpush.msra.mxu0 %v3390
        %3548 = vmatpush.msra.mxu0 %v3389
        %3549 = vmatmul.f32.gmra.mxu0 %v3029
        %v3550 = vpop.f32.mrf.mxu0
        %v3551 = vadd.f32 0.0, %v3550
        %3552 = vmatmul.f32.gmra.mxu0 %v3030
        %v3553 = vpop.f32.mrf.mxu0
        %v3554 = vadd.f32 0.0, %v3553
        %3555 = vmatmul.f32.gmra.mxu0 %v3032
        %v3556 = vpop.f32.mrf.mxu0
        %v3557 = vadd.f32 0.0, %v3556
        %3558 = vmatmul.f32.gmra.mxu0 %v3033
        %v3559 = vpop.f32.mrf.mxu0
        %v3560 = vadd.f32 0.0, %v3559
        %3561 = vmatmul.f32.gmra.mxu0 %v3035
        %v3562 = vpop.f32.mrf.mxu0
        %v3563 = vadd.f32 0.0, %v3562
        %3564 = vmatmul.f32.gmra.mxu0 %v3036
        %v3565 = vpop.f32.mrf.mxu0
        %v3566 = vadd.f32 0.0, %v3565
        %3567 = vmatmul.f32.gmra.mxu0 %v3038
        %v3568 = vpop.f32.mrf.mxu0
        %v3569 = vadd.f32 0.0, %v3568
        %3570 = vmatmul.f32.gmra.mxu0 %v3039
        %v3571 = vpop.f32.mrf.mxu0
        %v3572 = vadd.f32 0.0, %v3571
        %3573 = vmatmul.f32.gmra.mxu0 %v3041
        %v3574 = vpop.f32.mrf.mxu0
        %v3575 = vadd.f32 0.0, %v3574
        %3576 = vmatmul.f32.gmra.mxu0 %v3042
        %v3577 = vpop.f32.mrf.mxu0
        %v3578 = vadd.f32 0.0, %v3577
        %3579 = vmatmul.f32.gmra.mxu0 %v3044
        %v3580 = vpop.f32.mrf.mxu0
        %v3581 = vadd.f32 0.0, %v3580
        %3582 = vmatmul.f32.gmra.mxu0 %v3045
        %v3583 = vpop.f32.mrf.mxu0
        %v3584 = vadd.f32 0.0, %v3583
        %3585 = vmatmul.f32.gmra.mxu0 %v3047
        %v3586 = vpop.f32.mrf.mxu0
        %v3587 = vadd.f32 0.0, %v3586
        %3588 = vmatmul.f32.gmra.mxu0 %v3048
        %v3589 = vpop.f32.mrf.mxu0
        %v3590 = vadd.f32 0.0, %v3589
        %3591 = vmatmul.f32.gmra.mxu0 %v3050
        %v3592 = vpop.f32.mrf.mxu0
        %v3593 = vadd.f32 0.0, %v3592
        %3594 = vmatmul.f32.gmra.mxu0 %v3051
        %v3595 = vpop.f32.mrf.mxu0
        %v3596 = vadd.f32 0.0, %v3595
        %3597 = vmatmul.f32.gmra.mxu0 %v3053
        %v3598 = vpop.f32.mrf.mxu0
        %v3599 = vadd.f32 0.0, %v3598
        %3600 = vmatmul.f32.gmra.mxu0 %v3054
        %v3601 = vpop.f32.mrf.mxu0
        %v3602 = vadd.f32 0.0, %v3601
        %3603 = vmatmul.f32.gmra.mxu0 %v3056
        %v3604 = vpop.f32.mrf.mxu0
        %v3605 = vadd.f32 0.0, %v3604
        %3606 = vmatmul.f32.gmra.mxu0 %v3057
        %v3607 = vpop.f32.mrf.mxu0
        %v3608 = vadd.f32 0.0, %v3607
        %3609 = vmatmul.f32.gmra.mxu0 %v3059
        %v3610 = vpop.f32.mrf.mxu0
        %v3611 = vadd.f32 0.0, %v3610
        %3612 = vmatmul.f32.gmra.mxu0 %v3060
        %v3613 = vpop.f32.mrf.mxu0
        %v3614 = vadd.f32 0.0, %v3613
        %3615 = vmatmul.f32.gmra.mxu0 %v3062
        %v3616 = vpop.f32.mrf.mxu0
        %v3617 = vadd.f32 0.0, %v3616
        %3618 = vmatmul.f32.gmra.mxu0 %v3063
        %v3619 = vpop.f32.mrf.mxu0
        %v3620 = vadd.f32 0.0, %v3619
        %3621 = vmatmul.f32.gmra.mxu0 %v3065
        %v3622 = vpop.f32.mrf.mxu0
        %v3623 = vadd.f32 0.0, %v3622
        %3624 = vmatmul.f32.gmra.mxu0 %v3066
        %v3625 = vpop.f32.mrf.mxu0
        %v3626 = vadd.f32 0.0, %v3625
        %3627 = vmatmul.f32.gmra.mxu0 %v3068
        %v3628 = vpop.f32.mrf.mxu0
        %v3629 = vadd.f32 0.0, %v3628
        %3630 = vmatmul.f32.gmra.mxu0 %v3069
        %v3631 = vpop.f32.mrf.mxu0
        %v3632 = vadd.f32 0.0, %v3631
        %3633 = vmatmul.f32.gmra.mxu0 %v3071
        %v3634 = vpop.f32.mrf.mxu0
        %v3635 = vadd.f32 0.0, %v3634
        %3636 = vmatmul.f32.gmra.mxu0 %v3072
        %v3637 = vpop.f32.mrf.mxu0
        %v3638 = vadd.f32 0.0, %v3637
        %3639 = vmatmul.f32.gmra.mxu0 %v3074
        %v3640 = vpop.f32.mrf.mxu0
        %v3641 = vadd.f32 0.0, %v3640
        %3642 = vmatmul.f32.gmra.mxu0 %v3075
        %v3643 = vpop.f32.mrf.mxu0
        %v3644 = vadd.f32 0.0, %v3643
        %3645 = vdwg.mxu0
        %3646 = vmatpush.msra.mxu0 %v3420
        %3647 = vmatpush.msra.mxu0 %v3419
        %3648 = vmatpush.msra.mxu0 %v3418
        %3649 = vmatpush.msra.mxu0 %v3417
        %3650 = vmatpush.msra.mxu0 %v3416
        %3651 = vmatpush.msra.mxu0 %v3415
        %3652 = vmatpush.msra.mxu0 %v3414
        %3653 = vmatpush.msra.mxu0 %v3413
        %3654 = vmatpush.msra.mxu0 %v3412
        %3655 = vmatpush.msra.mxu0 %v3411
        %3656 = vmatpush.msra.mxu0 %v3410
        %3657 = vmatpush.msra.mxu0 %v3409
        %3658 = vmatpush.msra.mxu0 %v3408
        %3659 = vmatpush.msra.mxu0 %v3407
        %3660 = vmatpush.msra.mxu0 %v3406
        %3661 = vmatpush.msra.mxu0 %v3405
        %3662 = vmatmul.f32.gmra.mxu0 %v3133
        %v3663 = vpop.f32.mrf.mxu0
        %v3664 = vadd.f32 %v3551, %v3663
        %3665 = vmatmul.f32.gmra.mxu0 %v3135
        %v3666 = vpop.f32.mrf.mxu0
        %v3667 = vadd.f32 %v3554, %v3666
        %3668 = vmatmul.f32.gmra.mxu0 %v3138
        %v3669 = vpop.f32.mrf.mxu0
        %v3670 = vadd.f32 %v3557, %v3669
        %3671 = vmatmul.f32.gmra.mxu0 %v3140
        %v3672 = vpop.f32.mrf.mxu0
        %v3673 = vadd.f32 %v3560, %v3672
        %3674 = vmatmul.f32.gmra.mxu0 %v3143
        %v3675 = vpop.f32.mrf.mxu0
        %v3676 = vadd.f32 %v3563, %v3675
        %3677 = vmatmul.f32.gmra.mxu0 %v3145
        %v3678 = vpop.f32.mrf.mxu0
        %v3679 = vadd.f32 %v3566, %v3678
        %3680 = vmatmul.f32.gmra.mxu0 %v3148
        %v3681 = vpop.f32.mrf.mxu0
        %v3682 = vadd.f32 %v3569, %v3681
        %3683 = vmatmul.f32.gmra.mxu0 %v3150
        %v3684 = vpop.f32.mrf.mxu0
        %v3685 = vadd.f32 %v3572, %v3684
        %3686 = vmatmul.f32.gmra.mxu0 %v3153
        %v3687 = vpop.f32.mrf.mxu0
        %v3688 = vadd.f32 %v3575, %v3687
        %3689 = vmatmul.f32.gmra.mxu0 %v3155
        %v3690 = vpop.f32.mrf.mxu0
        %v3691 = vadd.f32 %v3578, %v3690
        %3692 = vmatmul.f32.gmra.mxu0 %v3158
        %v3693 = vpop.f32.mrf.mxu0
        %v3694 = vadd.f32 %v3581, %v3693
        %3695 = vmatmul.f32.gmra.mxu0 %v3160
        %v3696 = vpop.f32.mrf.mxu0
        %v3697 = vadd.f32 %v3584, %v3696
        %3698 = vmatmul.f32.gmra.mxu0 %v3163
        %v3699 = vpop.f32.mrf.mxu0
        %v3700 = vadd.f32 %v3587, %v3699
        %3701 = vmatmul.f32.gmra.mxu0 %v3165
        %v3702 = vpop.f32.mrf.mxu0
        %v3703 = vadd.f32 %v3590, %v3702
        %3704 = vmatmul.f32.gmra.mxu0 %v3168
        %v3705 = vpop.f32.mrf.mxu0
        %v3706 = vadd.f32 %v3593, %v3705
        %3707 = vmatmul.f32.gmra.mxu0 %v3170
        %v3708 = vpop.f32.mrf.mxu0
        %v3709 = vadd.f32 %v3596, %v3708
        %3710 = vmatmul.f32.gmra.mxu0 %v3173
        %v3711 = vpop.f32.mrf.mxu0
        %v3712 = vadd.f32 %v3599, %v3711
        %3713 = vmatmul.f32.gmra.mxu0 %v3175
        %v3714 = vpop.f32.mrf.mxu0
        %v3715 = vadd.f32 %v3602, %v3714
        %3716 = vmatmul.f32.gmra.mxu0 %v3178
        %v3717 = vpop.f32.mrf.mxu0
        %v3718 = vadd.f32 %v3605, %v3717
        %3719 = vmatmul.f32.gmra.mxu0 %v3180
        %v3720 = vpop.f32.mrf.mxu0
        %v3721 = vadd.f32 %v3608, %v3720
        %3722 = vmatmul.f32.gmra.mxu0 %v3183
        %v3723 = vpop.f32.mrf.mxu0
        %v3724 = vadd.f32 %v3611, %v3723
        %3725 = vmatmul.f32.gmra.mxu0 %v3185
        %v3726 = vpop.f32.mrf.mxu0
        %v3727 = vadd.f32 %v3614, %v3726
        %3728 = vmatmul.f32.gmra.mxu0 %v3188
        %v3729 = vpop.f32.mrf.mxu0
        %v3730 = vadd.f32 %v3617, %v3729
        %3731 = vmatmul.f32.gmra.mxu0 %v3190
        %v3732 = vpop.f32.mrf.mxu0
        %v3733 = vadd.f32 %v3620, %v3732
        %3734 = vmatmul.f32.gmra.mxu0 %v3193
        %v3735 = vpop.f32.mrf.mxu0
        %v3736 = vadd.f32 %v3623, %v3735
        %3737 = vmatmul.f32.gmra.mxu0 %v3195
        %v3738 = vpop.f32.mrf.mxu0
        %v3739 = vadd.f32 %v3626, %v3738
        %3740 = vmatmul.f32.gmra.mxu0 %v3198
        %v3741 = vpop.f32.mrf.mxu0
        %v3742 = vadd.f32 %v3629, %v3741
        %3743 = vmatmul.f32.gmra.mxu0 %v3200
        %v3744 = vpop.f32.mrf.mxu0
        %v3745 = vadd.f32 %v3632, %v3744
        %3746 = vmatmul.f32.gmra.mxu0 %v3203
        %v3747 = vpop.f32.mrf.mxu0
        %v3748 = vadd.f32 %v3635, %v3747
        %3749 = vmatmul.f32.gmra.mxu0 %v3205
        %v3750 = vpop.f32.mrf.mxu0
        %v3751 = vadd.f32 %v3638, %v3750
        %3752 = vmatmul.f32.gmra.mxu0 %v3208
        %v3753 = vpop.f32.mrf.mxu0
        %v3754 = vadd.f32 %v3641, %v3753
        %3755 = vmatmul.f32.gmra.mxu0 %v3210
        %v3756 = vpop.f32.mrf.mxu0
        %v3757 = vadd.f32 %v3644, %v3756
        %3758 = vdwg.mxu0
        %3759 = vmatpush.msra.mxu0 %v3436
        %3760 = vmatpush.msra.mxu0 %v3435
        %3761 = vmatpush.msra.mxu0 %v3434
        %3762 = vmatpush.msra.mxu0 %v3433
        %3763 = vmatpush.msra.mxu0 %v3432
        %3764 = vmatpush.msra.mxu0 %v3431
        %3765 = vmatpush.msra.mxu0 %v3430
        %3766 = vmatpush.msra.mxu0 %v3429
        %3767 = vmatpush.msra.mxu0 %v3428
        %3768 = vmatpush.msra.mxu0 %v3427
        %3769 = vmatpush.msra.mxu0 %v3426
        %3770 = vmatpush.msra.mxu0 %v3425
        %3771 = vmatpush.msra.mxu0 %v3424
        %3772 = vmatpush.msra.mxu0 %v3423
        %3773 = vmatpush.msra.mxu0 %v3422
        %3774 = vmatpush.msra.mxu0 %v3421
        %3775 = vmatmul.f32.gmra.mxu0 %v3245
        %v3776 = vpop.f32.mrf.mxu0
        %v3777 = vadd.f32 %v3664, %v3776
        %3778 = vmatmul.f32.gmra.mxu0 %v3247
        %v3779 = vpop.f32.mrf.mxu0
        %v3780 = vadd.f32 %v3667, %v3779
        %3781 = vmatmul.f32.gmra.mxu0 %v3250
        %v3782 = vpop.f32.mrf.mxu0
        %v3783 = vadd.f32 %v3670, %v3782
        %3784 = vmatmul.f32.gmra.mxu0 %v3252
        %v3785 = vpop.f32.mrf.mxu0
        %v3786 = vadd.f32 %v3673, %v3785
        %3787 = vmatmul.f32.gmra.mxu0 %v3255
        %v3788 = vpop.f32.mrf.mxu0
        %v3789 = vadd.f32 %v3676, %v3788
        %3790 = vmatmul.f32.gmra.mxu0 %v3257
        %v3791 = vpop.f32.mrf.mxu0
        %v3792 = vadd.f32 %v3679, %v3791
        %3793 = vmatmul.f32.gmra.mxu0 %v3260
        %v3794 = vpop.f32.mrf.mxu0
        %v3795 = vadd.f32 %v3682, %v3794
        %3796 = vmatmul.f32.gmra.mxu0 %v3262
        %v3797 = vpop.f32.mrf.mxu0
        %v3798 = vadd.f32 %v3685, %v3797
        %3799 = vmatmul.f32.gmra.mxu0 %v3265
        %v3800 = vpop.f32.mrf.mxu0
        %v3801 = vadd.f32 %v3688, %v3800
        %3802 = vmatmul.f32.gmra.mxu0 %v3267
        %v3803 = vpop.f32.mrf.mxu0
        %v3804 = vadd.f32 %v3691, %v3803
        %3805 = vmatmul.f32.gmra.mxu0 %v3270
        %v3806 = vpop.f32.mrf.mxu0
        %v3807 = vadd.f32 %v3694, %v3806
        %3808 = vmatmul.f32.gmra.mxu0 %v3272
        %v3809 = vpop.f32.mrf.mxu0
        %v3810 = vadd.f32 %v3697, %v3809
        %3811 = vmatmul.f32.gmra.mxu0 %v3275
        %v3812 = vpop.f32.mrf.mxu0
        %v3813 = vadd.f32 %v3700, %v3812
        %3814 = vmatmul.f32.gmra.mxu0 %v3277
        %v3815 = vpop.f32.mrf.mxu0
        %v3816 = vadd.f32 %v3703, %v3815
        %3817 = vmatmul.f32.gmra.mxu0 %v3280
        %v3818 = vpop.f32.mrf.mxu0
        %v3819 = vadd.f32 %v3706, %v3818
        %3820 = vmatmul.f32.gmra.mxu0 %v3282
        %v3821 = vpop.f32.mrf.mxu0
        %v3822 = vadd.f32 %v3709, %v3821
        %3823 = vmatmul.f32.gmra.mxu0 %v3285
        %v3824 = vpop.f32.mrf.mxu0
        %v3825 = vadd.f32 %v3712, %v3824
        %3826 = vmatmul.f32.gmra.mxu0 %v3287
        %v3827 = vpop.f32.mrf.mxu0
        %v3828 = vadd.f32 %v3715, %v3827
        %3829 = vmatmul.f32.gmra.mxu0 %v3290
        %v3830 = vpop.f32.mrf.mxu0
        %v3831 = vadd.f32 %v3718, %v3830
        %3832 = vmatmul.f32.gmra.mxu0 %v3292
        %v3833 = vpop.f32.mrf.mxu0
        %v3834 = vadd.f32 %v3721, %v3833
        %3835 = vmatmul.f32.gmra.mxu0 %v3295
        %v3836 = vpop.f32.mrf.mxu0
        %v3837 = vadd.f32 %v3724, %v3836
        %3838 = vmatmul.f32.gmra.mxu0 %v3297
        %v3839 = vpop.f32.mrf.mxu0
        %v3840 = vadd.f32 %v3727, %v3839
        %3841 = vmatmul.f32.gmra.mxu0 %v3300
        %v3842 = vpop.f32.mrf.mxu0
        %v3843 = vadd.f32 %v3730, %v3842
        %3844 = vmatmul.f32.gmra.mxu0 %v3302
        %v3845 = vpop.f32.mrf.mxu0
        %v3846 = vadd.f32 %v3733, %v3845
        %3847 = vmatmul.f32.gmra.mxu0 %v3305
        %v3848 = vpop.f32.mrf.mxu0
        %v3849 = vadd.f32 %v3736, %v3848
        %3850 = vmatmul.f32.gmra.mxu0 %v3307
        %v3851 = vpop.f32.mrf.mxu0
        %v3852 = vadd.f32 %v3739, %v3851
        %3853 = vmatmul.f32.gmra.mxu0 %v3310
        %v3854 = vpop.f32.mrf.mxu0
        %v3855 = vadd.f32 %v3742, %v3854
        %3856 = vmatmul.f32.gmra.mxu0 %v3312
        %v3857 = vpop.f32.mrf.mxu0
        %v3858 = vadd.f32 %v3745, %v3857
        %3859 = vmatmul.f32.gmra.mxu0 %v3315
        %v3860 = vpop.f32.mrf.mxu0
        %v3861 = vadd.f32 %v3748, %v3860
        %3862 = vmatmul.f32.gmra.mxu0 %v3317
        %v3863 = vpop.f32.mrf.mxu0
        %v3864 = vadd.f32 %v3751, %v3863
        %3865 = vmatmul.f32.gmra.mxu0 %v3320
        %v3866 = vpop.f32.mrf.mxu0
        %v3867 = vadd.f32 %v3754, %v3866
        %3868 = vmatmul.f32.gmra.mxu0 %v3322
        %v3869 = vpop.f32.mrf.mxu0
        %v3870 = vadd.f32 %v3757, %v3869
        %3871 = vdwg.mxu0
        %3872 = vmatpush.msra.mxu0 %v3452
        %3873 = vmatpush.msra.mxu0 %v3451
        %3874 = vmatpush.msra.mxu0 %v3450
        %3875 = vmatpush.msra.mxu0 %v3449
        %3876 = vmatpush.msra.mxu0 %v3448
        %3877 = vmatpush.msra.mxu0 %v3447
        %3878 = vmatpush.msra.mxu0 %v3446
        %3879 = vmatpush.msra.mxu0 %v3445
        %3880 = vmatpush.msra.mxu0 %v3444
        %3881 = vmatpush.msra.mxu0 %v3443
        %3882 = vmatpush.msra.mxu0 %v3442
        %3883 = vmatpush.msra.mxu0 %v3441
        %3884 = vmatpush.msra.mxu0 %v3440
        %3885 = vmatpush.msra.mxu0 %v3439
        %3886 = vmatpush.msra.mxu0 %v3438
        %3887 = vmatpush.msra.mxu0 %v3437
        %3888 = vmatmul.f32.gmra.mxu0 %v3032
        %v3889 = vpop.f32.mrf.mxu0
        %v3890 = vadd.f32 %v3777, %v3889
        %3891 = vmatmul.f32.gmra.mxu0 %v3033
        %v3892 = vpop.f32.mrf.mxu0
        %v3893 = vadd.f32 %v3780, %v3892
        %3894 = vmatmul.f32.gmra.mxu0 %v3035
        %v3895 = vpop.f32.mrf.mxu0
        %v3896 = vadd.f32 %v3783, %v3895
        %3897 = vmatmul.f32.gmra.mxu0 %v3036
        %v3898 = vpop.f32.mrf.mxu0
        %v3899 = vadd.f32 %v3786, %v3898
        %3900 = vmatmul.f32.gmra.mxu0 %v3038
        %v3901 = vpop.f32.mrf.mxu0
        %v3902 = vadd.f32 %v3789, %v3901
        %3903 = vmatmul.f32.gmra.mxu0 %v3039
        %v3904 = vpop.f32.mrf.mxu0
        %v3905 = vadd.f32 %v3792, %v3904
        %3906 = vmatmul.f32.gmra.mxu0 %v3041
        %v3907 = vpop.f32.mrf.mxu0
        %v3908 = vadd.f32 %v3795, %v3907
        %3909 = vmatmul.f32.gmra.mxu0 %v3042
        %v3910 = vpop.f32.mrf.mxu0
        %v3911 = vadd.f32 %v3798, %v3910
        %3912 = vmatmul.f32.gmra.mxu0 %v3044
        %v3913 = vpop.f32.mrf.mxu0
        %v3914 = vadd.f32 %v3801, %v3913
        %3915 = vmatmul.f32.gmra.mxu0 %v3045
        %v3916 = vpop.f32.mrf.mxu0
        %v3917 = vadd.f32 %v3804, %v3916
        %3918 = vmatmul.f32.gmra.mxu0 %v3047
        %v3919 = vpop.f32.mrf.mxu0
        %v3920 = vadd.f32 %v3807, %v3919
        %3921 = vmatmul.f32.gmra.mxu0 %v3048
        %v3922 = vpop.f32.mrf.mxu0
        %v3923 = vadd.f32 %v3810, %v3922
        %3924 = vmatmul.f32.gmra.mxu0 %v3050
        %v3925 = vpop.f32.mrf.mxu0
        %v3926 = vadd.f32 %v3813, %v3925
        %3927 = vmatmul.f32.gmra.mxu0 %v3051
        %v3928 = vpop.f32.mrf.mxu0
        %v3929 = vadd.f32 %v3816, %v3928
        %3930 = vmatmul.f32.gmra.mxu0 %v3053
        %v3931 = vpop.f32.mrf.mxu0
        %v3932 = vadd.f32 %v3819, %v3931
        %3933 = vmatmul.f32.gmra.mxu0 %v3054
        %v3934 = vpop.f32.mrf.mxu0
        %v3935 = vadd.f32 %v3822, %v3934
        %3936 = vmatmul.f32.gmra.mxu0 %v3056
        %v3937 = vpop.f32.mrf.mxu0
        %v3938 = vadd.f32 %v3825, %v3937
        %3939 = vmatmul.f32.gmra.mxu0 %v3057
        %v3940 = vpop.f32.mrf.mxu0
        %v3941 = vadd.f32 %v3828, %v3940
        %3942 = vmatmul.f32.gmra.mxu0 %v3059
        %v3943 = vpop.f32.mrf.mxu0
        %v3944 = vadd.f32 %v3831, %v3943
        %3945 = vmatmul.f32.gmra.mxu0 %v3060
        %v3946 = vpop.f32.mrf.mxu0
        %v3947 = vadd.f32 %v3834, %v3946
        %3948 = vmatmul.f32.gmra.mxu0 %v3062
        %v3949 = vpop.f32.mrf.mxu0
        %v3950 = vadd.f32 %v3837, %v3949
        %3951 = vmatmul.f32.gmra.mxu0 %v3063
        %v3952 = vpop.f32.mrf.mxu0
        %v3953 = vadd.f32 %v3840, %v3952
        %3954 = vmatmul.f32.gmra.mxu0 %v3065
        %v3955 = vpop.f32.mrf.mxu0
        %v3956 = vadd.f32 %v3843, %v3955
        %3957 = vmatmul.f32.gmra.mxu0 %v3066
        %v3958 = vpop.f32.mrf.mxu0
        %v3959 = vadd.f32 %v3846, %v3958
        %3960 = vmatmul.f32.gmra.mxu0 %v3068
        %v3961 = vpop.f32.mrf.mxu0
        %v3962 = vadd.f32 %v3849, %v3961
        %3963 = vmatmul.f32.gmra.mxu0 %v3069
        %v3964 = vpop.f32.mrf.mxu0
        %v3965 = vadd.f32 %v3852, %v3964
        %3966 = vmatmul.f32.gmra.mxu0 %v3071
        %v3967 = vpop.f32.mrf.mxu0
        %v3968 = vadd.f32 %v3855, %v3967
        %3969 = vmatmul.f32.gmra.mxu0 %v3072
        %v3970 = vpop.f32.mrf.mxu0
        %v3971 = vadd.f32 %v3858, %v3970
        %3972 = vmatmul.f32.gmra.mxu0 %v3074
        %v3973 = vpop.f32.mrf.mxu0
        %v3974 = vadd.f32 %v3861, %v3973
        %3975 = vmatmul.f32.gmra.mxu0 %v3075
        %v3976 = vpop.f32.mrf.mxu0
        %v3977 = vadd.f32 %v3864, %v3976
        %3978 = vmatmul.f32.gmra.mxu0 %v3077
        %v3979 = vpop.f32.mrf.mxu0
        %v3980 = vadd.f32 %v3867, %v3979
        %3981 = vmatmul.f32.gmra.mxu0 %v3078
        %v3982 = vpop.f32.mrf.mxu0
        %v3983 = vadd.f32 %v3870, %v3982
        %3984 = vdwg.mxu0
        %3985 = vmatpush.msra.mxu0 %v3468
        %3986 = vmatpush.msra.mxu0 %v3467
        %3987 = vmatpush.msra.mxu0 %v3466
        %3988 = vmatpush.msra.mxu0 %v3465
        %3989 = vmatpush.msra.mxu0 %v3464
        %3990 = vmatpush.msra.mxu0 %v3463
        %3991 = vmatpush.msra.mxu0 %v3462
        %3992 = vmatpush.msra.mxu0 %v3461
        %3993 = vmatpush.msra.mxu0 %v3460
        %3994 = vmatpush.msra.mxu0 %v3459
        %3995 = vmatpush.msra.mxu0 %v3458
        %3996 = vmatpush.msra.mxu0 %v3457
        %3997 = vmatpush.msra.mxu0 %v3456
        %3998 = vmatpush.msra.mxu0 %v3455
        %3999 = vmatpush.msra.mxu0 %v3454
        %4000 = vmatpush.msra.mxu0 %v3453
        %4001 = vmatmul.f32.gmra.mxu0 %v3138
        %v4002 = vpop.f32.mrf.mxu0
        %v4003 = vadd.f32 %v3890, %v4002
        %4004 = vmatmul.f32.gmra.mxu0 %v3140
        %v4005 = vpop.f32.mrf.mxu0
        %v4006 = vadd.f32 %v3893, %v4005
        %4007 = vmatmul.f32.gmra.mxu0 %v3143
        %v4008 = vpop.f32.mrf.mxu0
        %v4009 = vadd.f32 %v3896, %v4008
        %4010 = vmatmul.f32.gmra.mxu0 %v3145
        %v4011 = vpop.f32.mrf.mxu0
        %v4012 = vadd.f32 %v3899, %v4011
        %4013 = vmatmul.f32.gmra.mxu0 %v3148
        %v4014 = vpop.f32.mrf.mxu0
        %v4015 = vadd.f32 %v3902, %v4014
        %4016 = vmatmul.f32.gmra.mxu0 %v3150
        %v4017 = vpop.f32.mrf.mxu0
        %v4018 = vadd.f32 %v3905, %v4017
        %4019 = vmatmul.f32.gmra.mxu0 %v3153
        %v4020 = vpop.f32.mrf.mxu0
        %v4021 = vadd.f32 %v3908, %v4020
        %4022 = vmatmul.f32.gmra.mxu0 %v3155
        %v4023 = vpop.f32.mrf.mxu0
        %v4024 = vadd.f32 %v3911, %v4023
        %4025 = vmatmul.f32.gmra.mxu0 %v3158
        %v4026 = vpop.f32.mrf.mxu0
        %v4027 = vadd.f32 %v3914, %v4026
        %4028 = vmatmul.f32.gmra.mxu0 %v3160
        %v4029 = vpop.f32.mrf.mxu0
        %v4030 = vadd.f32 %v3917, %v4029
        %4031 = vmatmul.f32.gmra.mxu0 %v3163
        %v4032 = vpop.f32.mrf.mxu0
        %v4033 = vadd.f32 %v3920, %v4032
        %4034 = vmatmul.f32.gmra.mxu0 %v3165
        %v4035 = vpop.f32.mrf.mxu0
        %v4036 = vadd.f32 %v3923, %v4035
        %4037 = vmatmul.f32.gmra.mxu0 %v3168
        %v4038 = vpop.f32.mrf.mxu0
        %v4039 = vadd.f32 %v3926, %v4038
        %4040 = vmatmul.f32.gmra.mxu0 %v3170
        %v4041 = vpop.f32.mrf.mxu0
        %v4042 = vadd.f32 %v3929, %v4041
        %4043 = vmatmul.f32.gmra.mxu0 %v3173
        %v4044 = vpop.f32.mrf.mxu0
        %v4045 = vadd.f32 %v3932, %v4044
        %4046 = vmatmul.f32.gmra.mxu0 %v3175
        %v4047 = vpop.f32.mrf.mxu0
        %v4048 = vadd.f32 %v3935, %v4047
        %4049 = vmatmul.f32.gmra.mxu0 %v3178
        %v4050 = vpop.f32.mrf.mxu0
        %v4051 = vadd.f32 %v3938, %v4050
        %4052 = vmatmul.f32.gmra.mxu0 %v3180
        %v4053 = vpop.f32.mrf.mxu0
        %v4054 = vadd.f32 %v3941, %v4053
        %4055 = vmatmul.f32.gmra.mxu0 %v3183
        %v4056 = vpop.f32.mrf.mxu0
        %v4057 = vadd.f32 %v3944, %v4056
        %4058 = vmatmul.f32.gmra.mxu0 %v3185
        %v4059 = vpop.f32.mrf.mxu0
        %v4060 = vadd.f32 %v3947, %v4059
        %4061 = vmatmul.f32.gmra.mxu0 %v3188
        %v4062 = vpop.f32.mrf.mxu0
        %v4063 = vadd.f32 %v3950, %v4062
        %4064 = vmatmul.f32.gmra.mxu0 %v3190
        %v4065 = vpop.f32.mrf.mxu0
        %v4066 = vadd.f32 %v3953, %v4065
        %4067 = vmatmul.f32.gmra.mxu0 %v3193
        %v4068 = vpop.f32.mrf.mxu0
        %v4069 = vadd.f32 %v3956, %v4068
        %4070 = vmatmul.f32.gmra.mxu0 %v3195
        %v4071 = vpop.f32.mrf.mxu0
        %v4072 = vadd.f32 %v3959, %v4071
        %4073 = vmatmul.f32.gmra.mxu0 %v3198
        %v4074 = vpop.f32.mrf.mxu0
        %v4075 = vadd.f32 %v3962, %v4074
        %4076 = vmatmul.f32.gmra.mxu0 %v3200
        %v4077 = vpop.f32.mrf.mxu0
        %v4078 = vadd.f32 %v3965, %v4077
        %4079 = vmatmul.f32.gmra.mxu0 %v3203
        %v4080 = vpop.f32.mrf.mxu0
        %v4081 = vadd.f32 %v3968, %v4080
        %4082 = vmatmul.f32.gmra.mxu0 %v3205
        %v4083 = vpop.f32.mrf.mxu0
        %v4084 = vadd.f32 %v3971, %v4083
        %4085 = vmatmul.f32.gmra.mxu0 %v3208
        %v4086 = vpop.f32.mrf.mxu0
        %v4087 = vadd.f32 %v3974, %v4086
        %4088 = vmatmul.f32.gmra.mxu0 %v3210
        %v4089 = vpop.f32.mrf.mxu0
        %v4090 = vadd.f32 %v3977, %v4089
        %4091 = vmatmul.f32.gmra.mxu0 %v3360
        %v4092 = vpop.f32.mrf.mxu0
        %v4093 = vadd.f32 %v3980, %v4092
        %4094 = vmatmul.f32.gmra.mxu0 %v3362
        %v4095 = vpop.f32.mrf.mxu0
        %v4096 = vadd.f32 %v3983, %v4095
        %4097 = vdwg.mxu0
        %4098 = vmatpush.msra.mxu0 %v3484
        %4099 = vmatpush.msra.mxu0 %v3483
        %4100 = vmatpush.msra.mxu0 %v3482
        %4101 = vmatpush.msra.mxu0 %v3481
        %4102 = vmatpush.msra.mxu0 %v3480
        %4103 = vmatpush.msra.mxu0 %v3479
        %4104 = vmatpush.msra.mxu0 %v3478
        %4105 = vmatpush.msra.mxu0 %v3477
        %4106 = vmatpush.msra.mxu0 %v3476
        %4107 = vmatpush.msra.mxu0 %v3475
        %4108 = vmatpush.msra.mxu0 %v3474
        %4109 = vmatpush.msra.mxu0 %v3473
        %4110 = vmatpush.msra.mxu0 %v3472
        %4111 = vmatpush.msra.mxu0 %v3471
        %4112 = vmatpush.msra.mxu0 %v3470
        %4113 = vmatpush.msra.mxu0 %v3469
        %4114 = vmatmul.f32.gmra.mxu0 %v3250
        %v4115 = vpop.f32.mrf.mxu0
        %v4116 = vadd.f32 %v4003, %v4115
        %4117 = vmatmul.f32.gmra.mxu0 %v3252
        %v4118 = vpop.f32.mrf.mxu0
        %v4119 = vadd.f32 %v4006, %v4118
        %4120 = vmatmul.f32.gmra.mxu0 %v3255
        %v4121 = vpop.f32.mrf.mxu0
        %v4122 = vadd.f32 %v4009, %v4121
        %4123 = vmatmul.f32.gmra.mxu0 %v3257
        %v4124 = vpop.f32.mrf.mxu0
        %v4125 = vadd.f32 %v4012, %v4124
        %4126 = vmatmul.f32.gmra.mxu0 %v3260
        %v4127 = vpop.f32.mrf.mxu0
        %v4128 = vadd.f32 %v4015, %v4127
        %4129 = vmatmul.f32.gmra.mxu0 %v3262
        %v4130 = vpop.f32.mrf.mxu0
        %v4131 = vadd.f32 %v4018, %v4130
        %4132 = vmatmul.f32.gmra.mxu0 %v3265
        %v4133 = vpop.f32.mrf.mxu0
        %v4134 = vadd.f32 %v4021, %v4133
        %4135 = vmatmul.f32.gmra.mxu0 %v3267
        %v4136 = vpop.f32.mrf.mxu0
        %v4137 = vadd.f32 %v4024, %v4136
        %4138 = vmatmul.f32.gmra.mxu0 %v3270
        %v4139 = vpop.f32.mrf.mxu0
        %v4140 = vadd.f32 %v4027, %v4139
        %4141 = vmatmul.f32.gmra.mxu0 %v3272
        %v4142 = vpop.f32.mrf.mxu0
        %v4143 = vadd.f32 %v4030, %v4142
        %4144 = vmatmul.f32.gmra.mxu0 %v3275
        %v4145 = vpop.f32.mrf.mxu0
        %v4146 = vadd.f32 %v4033, %v4145
        %4147 = vmatmul.f32.gmra.mxu0 %v3277
        %v4148 = vpop.f32.mrf.mxu0
        %v4149 = vadd.f32 %v4036, %v4148
        %4150 = vmatmul.f32.gmra.mxu0 %v3280
        %v4151 = vpop.f32.mrf.mxu0
        %v4152 = vadd.f32 %v4039, %v4151
        %4153 = vmatmul.f32.gmra.mxu0 %v3282
        %v4154 = vpop.f32.mrf.mxu0
        %v4155 = vadd.f32 %v4042, %v4154
        %4156 = vmatmul.f32.gmra.mxu0 %v3285
        %v4157 = vpop.f32.mrf.mxu0
        %v4158 = vadd.f32 %v4045, %v4157
        %4159 = vmatmul.f32.gmra.mxu0 %v3287
        %v4160 = vpop.f32.mrf.mxu0
        %v4161 = vadd.f32 %v4048, %v4160
        %4162 = vmatmul.f32.gmra.mxu0 %v3290
        %v4163 = vpop.f32.mrf.mxu0
        %v4164 = vadd.f32 %v4051, %v4163
        %4165 = vmatmul.f32.gmra.mxu0 %v3292
        %v4166 = vpop.f32.mrf.mxu0
        %v4167 = vadd.f32 %v4054, %v4166
        %4168 = vmatmul.f32.gmra.mxu0 %v3295
        %v4169 = vpop.f32.mrf.mxu0
        %v4170 = vadd.f32 %v4057, %v4169
        %4171 = vmatmul.f32.gmra.mxu0 %v3297
        %v4172 = vpop.f32.mrf.mxu0
        %v4173 = vadd.f32 %v4060, %v4172
        %4174 = vmatmul.f32.gmra.mxu0 %v3300
        %v4175 = vpop.f32.mrf.mxu0
        %v4176 = vadd.f32 %v4063, %v4175
        %4177 = vmatmul.f32.gmra.mxu0 %v3302
        %v4178 = vpop.f32.mrf.mxu0
        %v4179 = vadd.f32 %v4066, %v4178
        %4180 = vmatmul.f32.gmra.mxu0 %v3305
        %v4181 = vpop.f32.mrf.mxu0
        %v4182 = vadd.f32 %v4069, %v4181
        %4183 = vmatmul.f32.gmra.mxu0 %v3307
        %v4184 = vpop.f32.mrf.mxu0
        %v4185 = vadd.f32 %v4072, %v4184
        %4186 = vmatmul.f32.gmra.mxu0 %v3310
        %v4187 = vpop.f32.mrf.mxu0
        %v4188 = vadd.f32 %v4075, %v4187
        %4189 = vmatmul.f32.gmra.mxu0 %v3312
        %v4190 = vpop.f32.mrf.mxu0
        %v4191 = vadd.f32 %v4078, %v4190
        %4192 = vmatmul.f32.gmra.mxu0 %v3315
        %v4193 = vpop.f32.mrf.mxu0
        %v4194 = vadd.f32 %v4081, %v4193
        %4195 = vmatmul.f32.gmra.mxu0 %v3317
        %v4196 = vpop.f32.mrf.mxu0
        %v4197 = vadd.f32 %v4084, %v4196
        %4198 = vmatmul.f32.gmra.mxu0 %v3320
        %v4199 = vpop.f32.mrf.mxu0
        %v4200 = vadd.f32 %v4087, %v4199
        %4201 = vmatmul.f32.gmra.mxu0 %v3322
        %v4202 = vpop.f32.mrf.mxu0
        %v4203 = vadd.f32 %v4090, %v4202
        %4204 = vmatmul.f32.gmra.mxu0 %v3367
        %v4205 = vpop.f32.mrf.mxu0
        %v4206 = vadd.f32 %v4093, %v4205
        %4207 = vmatmul.f32.gmra.mxu0 %v3369
        %v4208 = vpop.f32.mrf.mxu0
        %v4209 = vadd.f32 %v4096, %v4208
        %4210 = vdwg.mxu0
        %4211 = vmatpush.msra.mxu0 %v3500
        %4212 = vmatpush.msra.mxu0 %v3499
        %4213 = vmatpush.msra.mxu0 %v3498
        %4214 = vmatpush.msra.mxu0 %v3497
        %4215 = vmatpush.msra.mxu0 %v3496
        %4216 = vmatpush.msra.mxu0 %v3495
        %4217 = vmatpush.msra.mxu0 %v3494
        %4218 = vmatpush.msra.mxu0 %v3493
        %4219 = vmatpush.msra.mxu0 %v3492
        %4220 = vmatpush.msra.mxu0 %v3491
        %4221 = vmatpush.msra.mxu0 %v3490
        %4222 = vmatpush.msra.mxu0 %v3489
        %4223 = vmatpush.msra.mxu0 %v3488
        %4224 = vmatpush.msra.mxu0 %v3487
        %4225 = vmatpush.msra.mxu0 %v3486
        %4226 = vmatpush.msra.mxu0 %v3485
        %4227 = vmatmul.f32.gmra.mxu0 %v3035
        %v4228 = vpop.f32.mrf.mxu0
        %v4229 = vadd.f32 %v4116, %v4228
        %4230 = vmatmul.f32.gmra.mxu0 %v3036
        %v4231 = vpop.f32.mrf.mxu0
        %v4232 = vadd.f32 %v4119, %v4231
        %4233 = vmatmul.f32.gmra.mxu0 %v3038
        %v4234 = vpop.f32.mrf.mxu0
        %v4235 = vadd.f32 %v4122, %v4234
        %4236 = vmatmul.f32.gmra.mxu0 %v3039
        %v4237 = vpop.f32.mrf.mxu0
        %v4238 = vadd.f32 %v4125, %v4237
        %4239 = vmatmul.f32.gmra.mxu0 %v3041
        %v4240 = vpop.f32.mrf.mxu0
        %v4241 = vadd.f32 %v4128, %v4240
        %4242 = vmatmul.f32.gmra.mxu0 %v3042
        %v4243 = vpop.f32.mrf.mxu0
        %v4244 = vadd.f32 %v4131, %v4243
        %4245 = vmatmul.f32.gmra.mxu0 %v3044
        %v4246 = vpop.f32.mrf.mxu0
        %v4247 = vadd.f32 %v4134, %v4246
        %4248 = vmatmul.f32.gmra.mxu0 %v3045
        %v4249 = vpop.f32.mrf.mxu0
        %v4250 = vadd.f32 %v4137, %v4249
        %4251 = vmatmul.f32.gmra.mxu0 %v3047
        %v4252 = vpop.f32.mrf.mxu0
        %v4253 = vadd.f32 %v4140, %v4252
        %4254 = vmatmul.f32.gmra.mxu0 %v3048
        %v4255 = vpop.f32.mrf.mxu0
        %v4256 = vadd.f32 %v4143, %v4255
        %4257 = vmatmul.f32.gmra.mxu0 %v3050
        %v4258 = vpop.f32.mrf.mxu0
        %v4259 = vadd.f32 %v4146, %v4258
        %4260 = vmatmul.f32.gmra.mxu0 %v3051
        %v4261 = vpop.f32.mrf.mxu0
        %v4262 = vadd.f32 %v4149, %v4261
        %4263 = vmatmul.f32.gmra.mxu0 %v3053
        %v4264 = vpop.f32.mrf.mxu0
        %v4265 = vadd.f32 %v4152, %v4264
        %4266 = vmatmul.f32.gmra.mxu0 %v3054
        %v4267 = vpop.f32.mrf.mxu0
        %v4268 = vadd.f32 %v4155, %v4267
        %4269 = vmatmul.f32.gmra.mxu0 %v3056
        %v4270 = vpop.f32.mrf.mxu0
        %v4271 = vadd.f32 %v4158, %v4270
        %4272 = vmatmul.f32.gmra.mxu0 %v3057
        %v4273 = vpop.f32.mrf.mxu0
        %v4274 = vadd.f32 %v4161, %v4273
        %4275 = vmatmul.f32.gmra.mxu0 %v3059
        %v4276 = vpop.f32.mrf.mxu0
        %v4277 = vadd.f32 %v4164, %v4276
        %4278 = vmatmul.f32.gmra.mxu0 %v3060
        %v4279 = vpop.f32.mrf.mxu0
        %v4280 = vadd.f32 %v4167, %v4279
        %4281 = vmatmul.f32.gmra.mxu0 %v3062
        %v4282 = vpop.f32.mrf.mxu0
        %v4283 = vadd.f32 %v4170, %v4282
        %4284 = vmatmul.f32.gmra.mxu0 %v3063
        %v4285 = vpop.f32.mrf.mxu0
        %v4286 = vadd.f32 %v4173, %v4285
        %4287 = vmatmul.f32.gmra.mxu0 %v3065
        %v4288 = vpop.f32.mrf.mxu0
        %v4289 = vadd.f32 %v4176, %v4288
        %4290 = vmatmul.f32.gmra.mxu0 %v3066
        %v4291 = vpop.f32.mrf.mxu0
        %v4292 = vadd.f32 %v4179, %v4291
        %4293 = vmatmul.f32.gmra.mxu0 %v3068
        %v4294 = vpop.f32.mrf.mxu0
        %v4295 = vadd.f32 %v4182, %v4294
        %4296 = vmatmul.f32.gmra.mxu0 %v3069
        %v4297 = vpop.f32.mrf.mxu0
        %v4298 = vadd.f32 %v4185, %v4297
        %4299 = vmatmul.f32.gmra.mxu0 %v3071
        %v4300 = vpop.f32.mrf.mxu0
        %v4301 = vadd.f32 %v4188, %v4300
        %4302 = vmatmul.f32.gmra.mxu0 %v3072
        %v4303 = vpop.f32.mrf.mxu0
        %v4304 = vadd.f32 %v4191, %v4303
        %4305 = vmatmul.f32.gmra.mxu0 %v3074
        %v4306 = vpop.f32.mrf.mxu0
        %v4307 = vadd.f32 %v4194, %v4306
        %4308 = vmatmul.f32.gmra.mxu0 %v3075
        %v4309 = vpop.f32.mrf.mxu0
        %v4310 = vadd.f32 %v4197, %v4309
        %4311 = vmatmul.f32.gmra.mxu0 %v3077
        %v4312 = vpop.f32.mrf.mxu0
        %v4313 = vadd.f32 %v4200, %v4312
        %4314 = vmatmul.f32.gmra.mxu0 %v3078
        %v4315 = vpop.f32.mrf.mxu0
        %v4316 = vadd.f32 %v4203, %v4315
        %4317 = vmatmul.f32.gmra.mxu0 %v3080
        %v4318 = vpop.f32.mrf.mxu0
        %v4319 = vadd.f32 %v4206, %v4318
        %4320 = vmatmul.f32.gmra.mxu0 %v3081
        %v4321 = vpop.f32.mrf.mxu0
        %v4322 = vadd.f32 %v4209, %v4321
        %4323 = vdwg.mxu0
        %4324 = vmatpush.msra.mxu0 %v3516
        %4325 = vmatpush.msra.mxu0 %v3515
        %4326 = vmatpush.msra.mxu0 %v3514
        %4327 = vmatpush.msra.mxu0 %v3513
        %4328 = vmatpush.msra.mxu0 %v3512
        %4329 = vmatpush.msra.mxu0 %v3511
        %4330 = vmatpush.msra.mxu0 %v3510
        %4331 = vmatpush.msra.mxu0 %v3509
        %4332 = vmatpush.msra.mxu0 %v3508
        %4333 = vmatpush.msra.mxu0 %v3507
        %4334 = vmatpush.msra.mxu0 %v3506
        %4335 = vmatpush.msra.mxu0 %v3505
        %4336 = vmatpush.msra.mxu0 %v3504
        %4337 = vmatpush.msra.mxu0 %v3503
        %4338 = vmatpush.msra.mxu0 %v3502
        %4339 = vmatpush.msra.mxu0 %v3501
        %4340 = vmatmul.f32.gmra.mxu0 %v3143
        %v4341 = vpop.f32.mrf.mxu0
        %v4342 = vadd.f32 %v4229, %v4341
        %4343 = vmatmul.f32.gmra.mxu0 %v3145
        %v4344 = vpop.f32.mrf.mxu0
        %v4345 = vadd.f32 %v4232, %v4344
        %4346 = vmatmul.f32.gmra.mxu0 %v3148
        %v4347 = vpop.f32.mrf.mxu0
        %v4348 = vadd.f32 %v4235, %v4347
        %4349 = vmatmul.f32.gmra.mxu0 %v3150
        %v4350 = vpop.f32.mrf.mxu0
        %v4351 = vadd.f32 %v4238, %v4350
        %4352 = vmatmul.f32.gmra.mxu0 %v3153
        %v4353 = vpop.f32.mrf.mxu0
        %v4354 = vadd.f32 %v4241, %v4353
        %4355 = vmatmul.f32.gmra.mxu0 %v3155
        %v4356 = vpop.f32.mrf.mxu0
        %v4357 = vadd.f32 %v4244, %v4356
        %4358 = vmatmul.f32.gmra.mxu0 %v3158
        %v4359 = vpop.f32.mrf.mxu0
        %v4360 = vadd.f32 %v4247, %v4359
        %4361 = vmatmul.f32.gmra.mxu0 %v3160
        %v4362 = vpop.f32.mrf.mxu0
        %v4363 = vadd.f32 %v4250, %v4362
        %4364 = vmatmul.f32.gmra.mxu0 %v3163
        %v4365 = vpop.f32.mrf.mxu0
        %v4366 = vadd.f32 %v4253, %v4365
        %4367 = vmatmul.f32.gmra.mxu0 %v3165
        %v4368 = vpop.f32.mrf.mxu0
        %v4369 = vadd.f32 %v4256, %v4368
        %4370 = vmatmul.f32.gmra.mxu0 %v3168
        %v4371 = vpop.f32.mrf.mxu0
        %v4372 = vadd.f32 %v4259, %v4371
        %4373 = vmatmul.f32.gmra.mxu0 %v3170
        %v4374 = vpop.f32.mrf.mxu0
        %v4375 = vadd.f32 %v4262, %v4374
        %4376 = vmatmul.f32.gmra.mxu0 %v3173
        %v4377 = vpop.f32.mrf.mxu0
        %v4378 = vadd.f32 %v4265, %v4377
        %4379 = vmatmul.f32.gmra.mxu0 %v3175
        %v4380 = vpop.f32.mrf.mxu0
        %v4381 = vadd.f32 %v4268, %v4380
        %4382 = vmatmul.f32.gmra.mxu0 %v3178
        %v4383 = vpop.f32.mrf.mxu0
        %v4384 = vadd.f32 %v4271, %v4383
        %4385 = vmatmul.f32.gmra.mxu0 %v3180
        %v4386 = vpop.f32.mrf.mxu0
        %v4387 = vadd.f32 %v4274, %v4386
        %4388 = vmatmul.f32.gmra.mxu0 %v3183
        %v4389 = vpop.f32.mrf.mxu0
        %v4390 = vadd.f32 %v4277, %v4389
        %4391 = vmatmul.f32.gmra.mxu0 %v3185
        %v4392 = vpop.f32.mrf.mxu0
        %v4393 = vadd.f32 %v4280, %v4392
        %4394 = vmatmul.f32.gmra.mxu0 %v3188
        %v4395 = vpop.f32.mrf.mxu0
        %v4396 = vadd.f32 %v4283, %v4395
        %4397 = vmatmul.f32.gmra.mxu0 %v3190
        %v4398 = vpop.f32.mrf.mxu0
        %v4399 = vadd.f32 %v4286, %v4398
        %4400 = vmatmul.f32.gmra.mxu0 %v3193
        %v4401 = vpop.f32.mrf.mxu0
        %v4402 = vadd.f32 %v4289, %v4401
        %4403 = vmatmul.f32.gmra.mxu0 %v3195
        %v4404 = vpop.f32.mrf.mxu0
        %v4405 = vadd.f32 %v4292, %v4404
        %4406 = vmatmul.f32.gmra.mxu0 %v3198
        %v4407 = vpop.f32.mrf.mxu0
        %v4408 = vadd.f32 %v4295, %v4407
        %4409 = vmatmul.f32.gmra.mxu0 %v3200
        %v4410 = vpop.f32.mrf.mxu0
        %v4411 = vadd.f32 %v4298, %v4410
        %4412 = vmatmul.f32.gmra.mxu0 %v3203
        %v4413 = vpop.f32.mrf.mxu0
        %v4414 = vadd.f32 %v4301, %v4413
        %4415 = vmatmul.f32.gmra.mxu0 %v3205
        %v4416 = vpop.f32.mrf.mxu0
        %v4417 = vadd.f32 %v4304, %v4416
        %4418 = vmatmul.f32.gmra.mxu0 %v3208
        %v4419 = vpop.f32.mrf.mxu0
        %v4420 = vadd.f32 %v4307, %v4419
        %4421 = vmatmul.f32.gmra.mxu0 %v3210
        %v4422 = vpop.f32.mrf.mxu0
        %v4423 = vadd.f32 %v4310, %v4422
        %4424 = vmatmul.f32.gmra.mxu0 %v3360
        %v4425 = vpop.f32.mrf.mxu0
        %v4426 = vadd.f32 %v4313, %v4425
        %4427 = vmatmul.f32.gmra.mxu0 %v3362
        %v4428 = vpop.f32.mrf.mxu0
        %v4429 = vadd.f32 %v4316, %v4428
        %4430 = vmatmul.f32.gmra.mxu0 %v3377
        %v4431 = vpop.f32.mrf.mxu0
        %v4432 = vadd.f32 %v4319, %v4431
        %4433 = vmatmul.f32.gmra.mxu0 %v3379
        %v4434 = vpop.f32.mrf.mxu0
        %v4435 = vadd.f32 %v4322, %v4434
        %4436 = vdwg.mxu0
        %4437 = vmatpush.msra.mxu0 %v3532
        %4438 = vmatpush.msra.mxu0 %v3531
        %4439 = vmatpush.msra.mxu0 %v3530
        %4440 = vmatpush.msra.mxu0 %v3529
        %4441 = vmatpush.msra.mxu0 %v3528
        %4442 = vmatpush.msra.mxu0 %v3527
        %4443 = vmatpush.msra.mxu0 %v3526
        %4444 = vmatpush.msra.mxu0 %v3525
        %4445 = vmatpush.msra.mxu0 %v3524
        %4446 = vmatpush.msra.mxu0 %v3523
        %4447 = vmatpush.msra.mxu0 %v3522
        %4448 = vmatpush.msra.mxu0 %v3521
        %4449 = vmatpush.msra.mxu0 %v3520
        %4450 = vmatpush.msra.mxu0 %v3519
        %4451 = vmatpush.msra.mxu0 %v3518
        %4452 = vmatpush.msra.mxu0 %v3517
        %4453 = vmatmul.f32.gmra.mxu0 %v3255
        %v4454 = vpop.f32.mrf.mxu0
        %v4455 = vadd.f32 %v4342, %v4454
        %4456 = vmatmul.f32.gmra.mxu0 %v3257
        %v4457 = vpop.f32.mrf.mxu0
        %v4458 = vadd.f32 %v4345, %v4457
        %4459 = vmatmul.f32.gmra.mxu0 %v3260
        %v4460 = vpop.f32.mrf.mxu0
        %v4461 = vadd.f32 %v4348, %v4460
        %4462 = vmatmul.f32.gmra.mxu0 %v3262
        %v4463 = vpop.f32.mrf.mxu0
        %v4464 = vadd.f32 %v4351, %v4463
        %4465 = vmatmul.f32.gmra.mxu0 %v3265
        %v4466 = vpop.f32.mrf.mxu0
        %v4467 = vadd.f32 %v4354, %v4466
        %4468 = vmatmul.f32.gmra.mxu0 %v3267
        %v4469 = vpop.f32.mrf.mxu0
        %v4470 = vadd.f32 %v4357, %v4469
        %4471 = vmatmul.f32.gmra.mxu0 %v3270
        %v4472 = vpop.f32.mrf.mxu0
        %v4473 = vadd.f32 %v4360, %v4472
        %4474 = vmatmul.f32.gmra.mxu0 %v3272
        %v4475 = vpop.f32.mrf.mxu0
        %v4476 = vadd.f32 %v4363, %v4475
        %4477 = vmatmul.f32.gmra.mxu0 %v3275
        %v4478 = vpop.f32.mrf.mxu0
        %v4479 = vadd.f32 %v4366, %v4478
        %4480 = vmatmul.f32.gmra.mxu0 %v3277
        %v4481 = vpop.f32.mrf.mxu0
        %v4482 = vadd.f32 %v4369, %v4481
        %4483 = vmatmul.f32.gmra.mxu0 %v3280
        %v4484 = vpop.f32.mrf.mxu0
        %v4485 = vadd.f32 %v4372, %v4484
        %4486 = vmatmul.f32.gmra.mxu0 %v3282
        %v4487 = vpop.f32.mrf.mxu0
        %v4488 = vadd.f32 %v4375, %v4487
        %4489 = vmatmul.f32.gmra.mxu0 %v3285
        %v4490 = vpop.f32.mrf.mxu0
        %v4491 = vadd.f32 %v4378, %v4490
        %4492 = vmatmul.f32.gmra.mxu0 %v3287
        %v4493 = vpop.f32.mrf.mxu0
        %v4494 = vadd.f32 %v4381, %v4493
        %4495 = vmatmul.f32.gmra.mxu0 %v3290
        %v4496 = vpop.f32.mrf.mxu0
        %v4497 = vadd.f32 %v4384, %v4496
        %4498 = vmatmul.f32.gmra.mxu0 %v3292
        %v4499 = vpop.f32.mrf.mxu0
        %v4500 = vadd.f32 %v4387, %v4499
        %4501 = vmatmul.f32.gmra.mxu0 %v3295
        %v4502 = vpop.f32.mrf.mxu0
        %v4503 = vadd.f32 %v4390, %v4502
        %4504 = vmatmul.f32.gmra.mxu0 %v3297
        %v4505 = vpop.f32.mrf.mxu0
        %v4506 = vadd.f32 %v4393, %v4505
        %4507 = vmatmul.f32.gmra.mxu0 %v3300
        %v4508 = vpop.f32.mrf.mxu0
        %v4509 = vadd.f32 %v4396, %v4508
        %4510 = vmatmul.f32.gmra.mxu0 %v3302
        %v4511 = vpop.f32.mrf.mxu0
        %v4512 = vadd.f32 %v4399, %v4511
        %4513 = vmatmul.f32.gmra.mxu0 %v3305
        %v4514 = vpop.f32.mrf.mxu0
        %v4515 = vadd.f32 %v4402, %v4514
        %4516 = vmatmul.f32.gmra.mxu0 %v3307
        %v4517 = vpop.f32.mrf.mxu0
        %v4518 = vadd.f32 %v4405, %v4517
        %4519 = vmatmul.f32.gmra.mxu0 %v3310
        %v4520 = vpop.f32.mrf.mxu0
        %v4521 = vadd.f32 %v4408, %v4520
        %4522 = vmatmul.f32.gmra.mxu0 %v3312
        %v4523 = vpop.f32.mrf.mxu0
        %v4524 = vadd.f32 %v4411, %v4523
        %4525 = vmatmul.f32.gmra.mxu0 %v3315
        %v4526 = vpop.f32.mrf.mxu0
        %v4527 = vadd.f32 %v4414, %v4526
        %4528 = vmatmul.f32.gmra.mxu0 %v3317
        %v4529 = vpop.f32.mrf.mxu0
        %v4530 = vadd.f32 %v4417, %v4529
        %4531 = vmatmul.f32.gmra.mxu0 %v3320
        %v4532 = vpop.f32.mrf.mxu0
        %v4533 = vadd.f32 %v4420, %v4532
        %4534 = vmatmul.f32.gmra.mxu0 %v3322
        %v4535 = vpop.f32.mrf.mxu0
        %v4536 = vadd.f32 %v4423, %v4535
        %4537 = vmatmul.f32.gmra.mxu0 %v3367
        %v4538 = vpop.f32.mrf.mxu0
        %v4539 = vadd.f32 %v4426, %v4538
        %4540 = vmatmul.f32.gmra.mxu0 %v3369
        %v4541 = vpop.f32.mrf.mxu0
        %v4542 = vadd.f32 %v4429, %v4541
        %4543 = vmatmul.f32.gmra.mxu0 %v3384
        %v4544 = vpop.f32.mrf.mxu0
        %v4545 = vadd.f32 %v4432, %v4544
        %4546 = vmatmul.f32.gmra.mxu0 %v3386
        %v4547 = vpop.f32.mrf.mxu0
        %v4548 = vadd.f32 %v4435, %v4547
        %4549 = vdwg.mxu0
        %v4550 = vld [vmem:[%s5] sm:$0x1]
        %v4552 = vperm.slane %v4550, 0
        %v4554 = vmul.f32 %v4455, %v4552
        %v4555 = vmul.f32 %v4458, %v4552
        %v4556 = vmul.f32 %v4461, %v4552
        %v4557 = vmul.f32 %v4464, %v4552
        %v4558 = vmul.f32 %v4467, %v4552
        %v4559 = vmul.f32 %v4470, %v4552
        %v4560 = vmul.f32 %v4473, %v4552
        %v4561 = vmul.f32 %v4476, %v4552
        %v4562 = vmul.f32 %v4479, %v4552
        %v4563 = vmul.f32 %v4482, %v4552
        %v4564 = vmul.f32 %v4485, %v4552
        %v4565 = vmul.f32 %v4488, %v4552
        %v4566 = vmul.f32 %v4491, %v4552
        %v4567 = vmul.f32 %v4494, %v4552
        %v4568 = vmul.f32 %v4497, %v4552
        %v4569 = vmul.f32 %v4500, %v4552
        %v4570 = vmul.f32 %v4503, %v4552
        %v4571 = vmul.f32 %v4506, %v4552
        %v4572 = vmul.f32 %v4509, %v4552
        %v4573 = vmul.f32 %v4512, %v4552
        %v4574 = vmul.f32 %v4515, %v4552
        %v4575 = vmul.f32 %v4518, %v4552
        %v4576 = vmul.f32 %v4521, %v4552
        %v4577 = vmul.f32 %v4524, %v4552
        %v4578 = vmul.f32 %v4527, %v4552
        %v4579 = vmul.f32 %v4530, %v4552
        %v4580 = vmul.f32 %v4533, %v4552
        %v4581 = vmul.f32 %v4536, %v4552
        %v4582 = vmul.f32 %v4539, %v4552
        %v4583 = vmul.f32 %v4542, %v4552
        %v4584 = vmul.f32 %v4545, %v4552
        %v4585 = vmul.f32 %v4548, %v4552
        %v4586 = vld [vmem:[%s6] sm:$0x1]
        %v4588 = vperm.slane %v4586, 0
        %v4590 = vadd.f32 %v4554, %v4588
        %v4591 = vadd.f32 %v4555, %v4588
        %v4592 = vadd.f32 %v4556, %v4588
        %v4593 = vadd.f32 %v4557, %v4588
        %v4594 = vadd.f32 %v4558, %v4588
        %v4595 = vadd.f32 %v4559, %v4588
        %v4596 = vadd.f32 %v4560, %v4588
        %v4597 = vadd.f32 %v4561, %v4588
        %v4598 = vadd.f32 %v4562, %v4588
        %v4599 = vadd.f32 %v4563, %v4588
        %v4600 = vadd.f32 %v4564, %v4588
        %v4601 = vadd.f32 %v4565, %v4588
        %v4602 = vadd.f32 %v4566, %v4588
        %v4603 = vadd.f32 %v4567, %v4588
        %v4604 = vadd.f32 %v4568, %v4588
        %v4605 = vadd.f32 %v4569, %v4588
        %v4606 = vadd.f32 %v4570, %v4588
        %v4607 = vadd.f32 %v4571, %v4588
        %v4608 = vadd.f32 %v4572, %v4588
        %v4609 = vadd.f32 %v4573, %v4588
        %v4610 = vadd.f32 %v4574, %v4588
        %v4611 = vadd.f32 %v4575, %v4588
        %v4612 = vadd.f32 %v4576, %v4588
        %v4613 = vadd.f32 %v4577, %v4588
        %v4614 = vadd.f32 %v4578, %v4588
        %v4615 = vadd.f32 %v4579, %v4588
        %v4616 = vadd.f32 %v4580, %v4588
        %v4617 = vadd.f32 %v4581, %v4588
        %v4618 = vadd.f32 %v4582, %v4588
        %v4619 = vadd.f32 %v4583, %v4588
        %v4620 = vadd.f32 %v4584, %v4588
        %v4621 = vadd.f32 %v4585, %v4588
        %v4622 = vmax.f32 %v4590, 0.0
        %v4623 = vmax.f32 %v4591, 0.0
        %v4624 = vmax.f32 %v4592, 0.0
        %v4625 = vmax.f32 %v4593, 0.0
        %v4626 = vmax.f32 %v4594, 0.0
        %v4627 = vmax.f32 %v4595, 0.0
        %v4628 = vmax.f32 %v4596, 0.0
        %v4629 = vmax.f32 %v4597, 0.0
        %v4630 = vmax.f32 %v4598, 0.0
        %v4631 = vmax.f32 %v4599, 0.0
        %v4632 = vmax.f32 %v4600, 0.0
        %v4633 = vmax.f32 %v4601, 0.0
        %v4634 = vmax.f32 %v4602, 0.0
        %v4635 = vmax.f32 %v4603, 0.0
        %v4636 = vmax.f32 %v4604, 0.0
        %v4637 = vmax.f32 %v4605, 0.0
        %v4638 = vmax.f32 %v4606, 0.0
        %v4639 = vmax.f32 %v4607, 0.0
        %v4640 = vmax.f32 %v4608, 0.0
        %v4641 = vmax.f32 %v4609, 0.0
        %v4642 = vmax.f32 %v4610, 0.0
        %v4643 = vmax.f32 %v4611, 0.0
        %v4644 = vmax.f32 %v4612, 0.0
        %v4645 = vmax.f32 %v4613, 0.0
        %v4646 = vmax.f32 %v4614, 0.0
        %v4647 = vmax.f32 %v4615, 0.0
        %v4648 = vmax.f32 %v4616, 0.0
        %v4649 = vmax.f32 %v4617, 0.0
        %v4650 = vmax.f32 %v4618, 0.0
        %v4651 = vmax.f32 %v4619, 0.0
        %v4652 = vmax.f32 %v4620, 0.0
        %v4653 = vmax.f32 %v4621, 0.0
        %4654 = vst [vmem:[%s278] sm:$0xff] %v4622
        %4655 = vst [vmem:[%s278 + $0x8] sm:$0xff] %v4623
        %4656 = vst [vmem:[%s278 + $0x10] sm:$0xff] %v4624
        %4657 = vst [vmem:[%s278 + $0x18] sm:$0xff] %v4625
        %4658 = vst [vmem:[%s278 + $0x20] sm:$0xff] %v4626
        %4659 = vst [vmem:[%s278 + $0x28] sm:$0xff] %v4627
        %4660 = vst [vmem:[%s278 + $0x30] sm:$0xff] %v4628
        %4661 = vst [vmem:[%s278 + $0x38] sm:$0xff] %v4629
        %4662 = vst [vmem:[%s278 + $0x40] sm:$0xff] %v4630
        %4663 = vst [vmem:[%s278 + $0x48] sm:$0xff] %v4631
        %4664 = vst [vmem:[%s278 + $0x50] sm:$0xff] %v4632
        %4665 = vst [vmem:[%s278 + $0x58] sm:$0xff] %v4633
        %4666 = vst [vmem:[%s278 + $0x60] sm:$0xff] %v4634
        %4667 = vst [vmem:[%s278 + $0x68] sm:$0xff] %v4635
        %4668 = vst [vmem:[%s278 + $0x70] sm:$0xff] %v4636
        %4669 = vst [vmem:[%s278 + $0x78] sm:$0xff] %v4637
        %4670 = vst [vmem:[%s278 + $0x80] sm:$0xff] %v4638
        %4671 = vst [vmem:[%s278 + $0x88] sm:$0xff] %v4639
        %4672 = vst [vmem:[%s278 + $0x90] sm:$0xff] %v4640
        %4673 = vst [vmem:[%s278 + $0x98] sm:$0xff] %v4641
        %4674 = vst [vmem:[%s278 + $0xa0] sm:$0xff] %v4642
        %4675 = vst [vmem:[%s278 + $0xa8] sm:$0xff] %v4643
        %4676 = vst [vmem:[%s278 + $0xb0] sm:$0xff] %v4644
        %4677 = vst [vmem:[%s278 + $0xb8] sm:$0xff] %v4645
        %4678 = vst [vmem:[%s278 + $0xc0] sm:$0xff] %v4646
        %4679 = vst [vmem:[%s278 + $0xc8] sm:$0xff] %v4647
        %4680 = vst [vmem:[%s278 + $0xd0] sm:$0xff] %v4648
        %4681 = vst [vmem:[%s278 + $0xd8] sm:$0xff] %v4649
        %4682 = vst [vmem:[%s278 + $0xe0] sm:$0xff] %v4650
        %4683 = vst [vmem:[%s278 + $0xe8] sm:$0xff] %v4651
        %4684 = vst [vmem:[%s278 + $0xf0] sm:$0xff] %v4652
        %4685 = vst [vmem:[%s278 + $0xf8] sm:$0xff] %v4653
        %s4686 = sand.u32 %s171, 1
        %s4687 = scalar_lea.sflag [#allocation7], %s4686
        %s4688 = sand.u32 %s171, 1
        %s4689 = smul.addr %s4688, 256
        %s4690 = scalar_lea.vmem [#allocation10], %s4689
        // Predicated region
        $region69: #{tpu_custom_call.1} parent=43 // pred_check
          %p4691 = pneg %p181
        $region70: #{tpu_custom_call.1} parent=43 // pred_check_branch
          %4693 = sbr.rel (%p4691) target = $region72
        $region71: #{tpu_custom_call.1} parent=43 // pred_region
          %s4694 = smul.u32 16, %s28
          %4696 = vsyncadd %s4687, 0
          %s4697 = smul.addr %s4694, 2
          %s4698 = smul.addr %s27, 32
          %s4699 = sadd.s32 %s4697, %s4698
          %s4700 = smul.addr %s4699, 8
          %s4701 = scalar_lea.hbm %s7, %s4700
          %s4702 = sshll.u32 %s4690, 4
          %s4703 = int_to_ptr.vmem [resolvable:$true] %s4702
          %s4704 = sshll.u32 %s4701, 4
          %s4705 = int_to_ptr.hbm [resolvable:$true] %s4704
          %4710 = dma.vmem_to_hbm [thread:$0]  %s4703, 4096, %s4705, %s4687, 128, 128, 8
        $region72: #{tpu_custom_call.1} parent=43 // pred_fallthru
          _
      $region44: #{tpu_custom_call.1} parent=5 // pred_fallthru
        _
      %p4711 = scmp.le.s32.totalorder 2, %s18
      // Predicated region
      $region73: #{tpu_custom_call.1} parent=5 // pred_check
        %p4712 = pneg %p4711
      $region74: #{tpu_custom_call.1} parent=5 // pred_check_branch
        %4714 = sbr.rel (%p4712) target = $region76
      $region75: #{tpu_custom_call.1} parent=5 // pred_region
        %s4715 = ssub.s32 %s18, 2
        // Predicated region
        $region77: #{tpu_custom_call.1} parent=75 // pred_check
          %p4716 = pneg %p187
        $region78: #{tpu_custom_call.1} parent=75 // pred_check_branch
          %4718 = sbr.rel (%p4716) target = $region80
        $region79: #{tpu_custom_call.1} parent=75 // pred_region
          %s4719 = sand.u32 %s172, 1
          %s4720 = scalar_lea.sflag [#allocation7], %s4719
          %s4721 = sand.u32 %s172, 1
          %s4722 = smul.addr %s4721, 256
          %s4723 = scalar_lea.vmem [#allocation10], %s4722
          %4725 = dma.done %s4720, 4096
        $region80: #{tpu_custom_call.1} parent=75 // pred_fallthru
          _
      $region76: #{tpu_custom_call.1} parent=5 // pred_fallthru
        _
    $region6: #{tpu_custom_call.1} parent=1 // loop_footer
      %s22 = sadd.s32 1, %s18
    $region7: #{tpu_custom_call.1} parent=1 // loop_footer_branch
      %17 = sbr.rel target = $region3
    $region8: #{tpu_custom_call.1} parent=1 // loop_exit
      _
    %4726 = vsyncpa [#allocation6], 1
    %s4727 = scalar_lea.sflag [#allocation6], 1
    %4728 = vsyncpa %s4727, 1
    %4729 = vsyncpa [#allocation9], 1
    %4730 = vsyncpa [#allocation7], 1
    %s4731 = scalar_lea.sflag [#allocation7], 1
    %4732 = vsyncpa %s4731, 1
  %4733 = vsyncmov [#allocation4]
  %s4734 = vpop.sfrf %4733
  %p4735 = scmp.eq.s32.totalorder %s4734, 0
  %p4736 = pneg %p4735
  %4738 = shalt.err (%p4736)
  %s4739 = scalar_lea.sflag [#allocation4], 1
  %4740 = vsyncmov %s4739
  %s4741 = vpop.sfrf %4740
  %p4742 = scmp.eq.s32.totalorder %s4741, 0
  %p4743 = pneg %p4742
  %4745 = shalt.err (%p4743)
  %s4746 = scalar_lea.sflag [#allocation4], 2
  %4747 = vsyncmov %s4746
  %s4748 = vpop.sfrf %4747
  %p4749 = scmp.eq.s32.totalorder %s4748, 0
  %p4750 = pneg %p4749
  %4752 = shalt.err (%p4750)
  %s4753 = scalar_lea.sflag [#allocation4], 3
  %4754 = vsyncmov %s4753
  %s4755 = vpop.sfrf %4754
  %p4756 = scmp.eq.s32.totalorder %s4755, 0
  %p4757 = pneg %p4756
  %4759 = shalt.err (%p4757)
  %s4760 = scalar_lea.sflag [#allocation4], 4
  %4761 = vsyncmov %s4760
  %s4762 = vpop.sfrf %4761
  %p4763 = scmp.eq.s32.totalorder %s4762, 0
  %p4764 = pneg %p4763
  %4766 = shalt.err (%p4764)
  %s4767 = scalar_lea.sflag [#allocation4], 5
  %4768 = vsyncmov %s4767
  %s4769 = vpop.sfrf %4768
  %p4770 = scmp.eq.s32.totalorder %s4769, 0
  %p4771 = pneg %p4770
  %4773 = shalt.err (%p4771)

</llo_original>
